<compile_context>
chip_gen: v7x
topology: tpu7x:2x2x1
jax: 0.10.0
libtpu: 0.0.40
codegen_flags: <defaults>
</compile_context>

<pallas_src>
import functools

import jax
import jax.numpy as jnp
from jax.experimental import pallas as pl
from jax.experimental.pallas import tpu as pltpu

EPS = 1e-5  # nn.InstanceNorm2d default (affine=False, biased variance)


def _resblock_kernel(masks_ref, x_ref, w1_ref, w2_ref, o_ref, *, H, W, NB):
    HW = H * W
    cdt = w1_ref.dtype                       # MXU operand dtype (bf16 by default)

    mm = masks_ref[...]                      # (4, HW) int32 {0,1} boundary masks
    top       = mm[0:1, :] != 0              # (1, HW) — broadcasts over channels
    bottom    = mm[1:2, :] != 0
    first_col = mm[2:3, :] != 0
    last_col  = mm[3:4, :] != 0

    ones_col = jnp.ones((HW, 1), jnp.float32)   # MXU-based spatial reductions
    inv_hw = 1.0 / HW

    def conv3x3(inp, w_ref):
        # inp: (C, HW) f32, flattened row-major (h, w).  Reflection padding is
        # folded into static lane shifts + boundary selects; each of the 9 taps
        # is contracted immediately (accumulating dot) -> no im2col slab.
        # Taps are built in f32 (v5e has no native bf16 VPU) and cast to the
        # weight dtype only at the dot operand.
        up = jnp.roll(inp, W, axis=1)        # [p] = inp[p - W]   (row h-1)
        dn = jnp.roll(inp, -W, axis=1)       # [p] = inp[p + W]   (row h+1)
        rows = (jnp.where(top, dn, up),      # dy = -1 (reflect at h = 0)
                inp,                         # dy =  0
                jnp.where(bottom, up, dn))   # dy = +1 (reflect at h = H-1)
        acc = jnp.zeros((w_ref.shape[1], HW), jnp.float32)
        k = 0
        for r in rows:
            lf = jnp.roll(r, 1, axis=1)      # [p] = r[p - 1]     (col w-1)
            rt = jnp.roll(r, -1, axis=1)     # [p] = r[p + 1]     (col w+1)
            for tap in (jnp.where(first_col, rt, lf),   # dx = -1 (reflect w=0)
                        r,                              # dx =  0
                        jnp.where(last_col, lf, rt)):   # dx = +1 (reflect w=W-1)
                acc = acc + jnp.dot(w_ref[k], tap.astype(cdt),
                                    preferred_element_type=jnp.float32)
                k += 1
        return acc

    def inst_norm(y):                        # (C, HW) f32; stats over spatial axis
        s1 = jnp.dot(y, ones_col, preferred_element_type=jnp.float32)      # (C,1)
        s2 = jnp.dot(y * y, ones_col, preferred_element_type=jnp.float32)  # (C,1)
        mean = s1 * inv_hw
        var = s2 * inv_hw - mean * mean      # one-pass, f32 accumulation
        return (y - mean) * jax.lax.rsqrt(var + EPS)

    for nb in range(NB):                     # static loop; NB small per grid step
        xs = x_ref[nb].astype(jnp.float32)   # (C, HW)
        y = jnp.maximum(inst_norm(conv3x3(xs, w1_ref)), 0.0)   # conv1 + IN + ReLU
        z = inst_norm(conv3x3(y, w2_ref))                      # conv2 + IN
        o_ref[nb] = (xs + z).astype(o_ref.dtype)               # residual add


def _reflect_masks(H, W):
    """(4, HW) int32 masks: [h==0, h==H-1, w==0, w==W-1] for pad=1 reflection."""
    pos = jnp.arange(H * W, dtype=jnp.int32)
    h, w = pos // W, pos % W
    return jnp.stack([h == 0, h == H - 1, w == 0, w == W - 1]).astype(jnp.int32)


def residual_block(x_nchw, params, *, batch_block=None):
    """PyTorch-facing entry point: x is (N, C, H, W); result is (N, C, H, W)."""
    N, C, H, W = x_nchw.shape
    assert H >= 2 and W >= 2, "reflection pad=1 requires H >= 2 and W >= 2"
    HW = H * W
    x_flat = x_nchw.reshape(N, C, HW)            # free reshape; HW is lane-dense
    w1, w2 = params["w1"], params["w2"]          # (9, C, C) in compute dtype

    # Samples per grid step: fold as much batch as fits a modest VMEM budget so
    # per-step DMAs are large (the grid is a serial loop on 1 TC).
    per_sample = C * HW * x_flat.dtype.itemsize
    if batch_block is None:
        batch_block = max(1, min(N, (4 << 20) // max(per_sample, 1)))
    NB = int(batch_block)
    while N % NB:
        NB -= 1

    masks = _reflect_masks(H, W)                 # (4, HW) int32, resident

    flops = N * 2 * (2 * C * C * 9 * HW)         # two 3x3 convs
    bytes_accessed = (2 * x_flat.size * x_flat.dtype.itemsize
                      + (w1.size + w2.size) * w1.dtype.itemsize
                      + masks.size * masks.dtype.itemsize)
    block_bytes = NB * per_sample
    vmem_limit = int(min(100 << 20, max(32 << 20, 16 * block_bytes)))

    out = pl.pallas_call(
        functools.partial(_resblock_kernel, H=H, W=W, NB=NB),
        out_shape=jax.ShapeDtypeStruct((N, C, HW), x_nchw.dtype),
        grid=(N // NB,),
        in_specs=[
            pl.BlockSpec((4, HW), lambda b: (0, 0)),          # boundary masks
            pl.BlockSpec((NB, C, HW), lambda b: (b, 0, 0)),   # x
            pl.BlockSpec((9, C, C), lambda b: (0, 0, 0)),     # conv1 weights
            pl.BlockSpec((9, C, C), lambda b: (0, 0, 0)),     # conv2 weights
        ],
        out_specs=pl.BlockSpec((NB, C, HW), lambda b: (b, 0, 0)),
        compiler_params=pltpu.CompilerParams(
            dimension_semantics=("parallel",),
            vmem_limit_bytes=vmem_limit),
        cost_estimate=pl.CostEstimate(
            flops=flops, transcendentals=2 * N * C,
            bytes_accessed=bytes_accessed),
    )(masks, x_flat, w1, w2)
    return out.reshape(N, C, H, W)


def init_params(key, C, compute_dtype=jnp.bfloat16):
    """PyTorch-layout weights + the (9, C_out, C_in) kernel repack in compute_dtype."""
    k1, k2, k3, k4 = jax.random.split(key, 4)
    scale = 1.0 / float(jnp.sqrt(9.0 * C))
    K1 = jax.random.uniform(k1, (C, C, 3, 3), jnp.float32, -scale, scale)
    K2 = jax.random.uniform(k2, (C, C, 3, 3), jnp.float32, -scale, scale)
    b1 = jax.random.uniform(k3, (C,), jnp.float32, -scale, scale)
    b2 = jax.random.uniform(k4, (C,), jnp.float32, -scale, scale)
    # (C_out, C_in, ky, kx) -> (ky, kx, C_out, C_in) -> (9, C_out, C_in)
    w1 = jnp.transpose(K1, (2, 3, 0, 1)).reshape(9, C, C).astype(compute_dtype)
    w2 = jnp.transpose(K2, (2, 3, 0, 1)).reshape(9, C, C).astype(compute_dtype)
    # Conv biases are NOT passed to the kernel: a per-channel constant is exactly
    # cancelled by the affine=False InstanceNorm that follows each conv.
    return {"K1": K1, "K2": K2, "b1": b1, "b2": b2, "w1": w1, "w2": w2}


# ---------------- pure-JAX reference (correctness check, bias included) -------
def _ref_conv_in(x, K, b):
    xp = jnp.pad(x, ((0, 0), (0, 0), (1, 1), (1, 1)), mode="reflect")
    y = jax.lax.conv_general_dilated(
        xp, K, window_strides=(1, 1), padding="VALID",
        dimension_numbers=("NCHW", "OIHW", "NCHW"))
    y = y + b.reshape(1, -1, 1, 1)
    mean = jnp.mean(y, axis=(2, 3), keepdims=True)
    var = jnp.mean((y - mean) ** 2, axis=(2, 3), keepdims=True)
    return (y - mean) / jnp.sqrt(var + EPS)


def residual_block_ref(x, params):
    y = jax.nn.relu(_ref_conv_in(x, params["K1"], params["b1"]))
    y = _ref_conv_in(y, params["K2"], params["b2"])
    return x + y


if __name__ == "__main__":
    key = jax.random.PRNGKey(0)
    kx, kp = jax.random.split(key)

    N, C, H, W = 2, 8, 16, 16          # NCHW, as in the PyTorch module
    x = jax.random.normal(kx, (N, C, H, W), jnp.float32)

    # f32-weight path: tight check of the fused-kernel algorithm.
    params_f32 = init_params(kp, C, compute_dtype=jnp.float32)
    ref = jax.block_until_ready(residual_block_ref(x, params_f32))
    out_f32 = jax.block_until_ready(residual_block(x, params_f32))
    assert out_f32.shape == (N, C, H, W)
    err_f32 = float(jnp.max(jnp.abs(out_f32 - ref)))
    assert err_f32 < 1e-3, f"f32 mismatch vs reference: {err_f32}"

    # bf16-weight path (default fast path): same weights quantized to bf16,
    # looser tolerance to cover bf16 tap/weight rounding.
    params_bf16 = init_params(kp, C, compute_dtype=jnp.bfloat16)
    out_bf16 = jax.block_until_ready(residual_block(x, params_bf16))
    err_bf16 = float(jnp.max(jnp.abs(out_bf16 - ref)))
    assert err_bf16 < 2e-1, f"bf16 mismatch vs reference: {err_bf16}"

    print("KERNEL_OK")
</pallas_src>

<mosaic_0001>
module attributes {stable_mosaic.version = 11 : i64} {
  func.func @_resblock_kernel(%arg0: i32, %arg1: memref<4x256xi32, #tpu.memory_space<vmem>>, %arg2: memref<2x8x256xf32, #tpu.memory_space<vmem>>, %arg3: memref<9x8x8xf32, #tpu.memory_space<vmem>>, %arg4: memref<9x8x8xf32, #tpu.memory_space<vmem>>, %arg5: memref<2x8x256xf32, #tpu.memory_space<vmem>>) attributes {dimension_semantics = [#tpu.dimension_semantics<parallel>], iteration_bounds = array<i64: 1>, scalar_prefetch = 0 : i64, scratch_operands = 0 : i64, tpu.core_type = #tpu.core_type<tc>, window_params = [{pipeline_mode = #tpu.pipeline_mode<synchronous>, transform_indices = @transform_0, window_bounds = array<i64: 4, 256>}, {transform_indices = @transform_1, window_bounds = array<i64: 2, 8, 256>}, {pipeline_mode = #tpu.pipeline_mode<synchronous>, transform_indices = @transform_2, window_bounds = array<i64: 9, 8, 8>}, {pipeline_mode = #tpu.pipeline_mode<synchronous>, transform_indices = @transform_3, window_bounds = array<i64: 9, 8, 8>}, {transform_indices = @transform_4, window_bounds = array<i64: 2, 8, 256>}]} {
    %c0 = arith.constant 0 : index
    %c0_0 = arith.constant 0 : index
    %0 = vector.load %arg1[%c0, %c0_0] : memref<4x256xi32, #tpu.memory_space<vmem>>, vector<4x256xi32>
    %1 = vector.extract_strided_slice %0 {offsets = [0, 0], sizes = [1, 256], strides = [1, 1]} : vector<4x256xi32> to vector<1x256xi32>
    %c0_i32 = arith.constant 0 : i32
    %2 = vector.broadcast %c0_i32 : i32 to vector<1x256xi32>
    %3 = arith.cmpi ne, %1, %2 : vector<1x256xi32>
    %4 = vector.extract_strided_slice %0 {offsets = [1, 0], sizes = [1, 256], strides = [1, 1]} : vector<4x256xi32> to vector<1x256xi32>
    %c0_i32_1 = arith.constant 0 : i32
    %5 = vector.broadcast %c0_i32_1 : i32 to vector<1x256xi32>
    %6 = arith.cmpi ne, %4, %5 : vector<1x256xi32>
    %7 = vector.extract_strided_slice %0 {offsets = [2, 0], sizes = [1, 256], strides = [1, 1]} : vector<4x256xi32> to vector<1x256xi32>
    %c0_i32_2 = arith.constant 0 : i32
    %8 = vector.broadcast %c0_i32_2 : i32 to vector<1x256xi32>
    %9 = arith.cmpi ne, %7, %8 : vector<1x256xi32>
    %10 = vector.extract_strided_slice %0 {offsets = [3, 0], sizes = [1, 256], strides = [1, 1]} : vector<4x256xi32> to vector<1x256xi32>
    %c0_i32_3 = arith.constant 0 : i32
    %11 = vector.broadcast %c0_i32_3 : i32 to vector<1x256xi32>
    %12 = arith.cmpi ne, %10, %11 : vector<1x256xi32>
    %cst = arith.constant 1.000000e+00 : f32
    %13 = vector.broadcast %cst : f32 to vector<256x1xf32>
    %c0_4 = arith.constant 0 : index
    %c0_5 = arith.constant 0 : index
    %c0_6 = arith.constant 0 : index
    %14 = vector.load %arg2[%c0_4, %c0_5, %c0_6] : memref<2x8x256xf32, #tpu.memory_space<vmem>>, vector<1x8x256xf32>
    %15 = vector.shape_cast %14 : vector<1x8x256xf32> to vector<8x256xf32>
    %16 = vector.extract_strided_slice %15 {offsets = [0, 240], sizes = [8, 16], strides = [1, 1]} : vector<8x256xf32> to vector<8x16xf32>
    %17 = vector.extract_strided_slice %15 {offsets = [0, 0], sizes = [8, 240], strides = [1, 1]} : vector<8x256xf32> to vector<8x240xf32>
    %18 = tpu.concatenate %16, %17 in 1 : vector<8x16xf32>, vector<8x240xf32> -> vector<8x256xf32>
    %19 = vector.extract_strided_slice %15 {offsets = [0, 16], sizes = [8, 240], strides = [1, 1]} : vector<8x256xf32> to vector<8x240xf32>
    %20 = vector.extract_strided_slice %15 {offsets = [0, 0], sizes = [8, 16], strides = [1, 1]} : vector<8x256xf32> to vector<8x16xf32>
    %21 = tpu.concatenate %19, %20 in 1 : vector<8x240xf32>, vector<8x16xf32> -> vector<8x256xf32>
    %22 = vector.shape_cast %3 : vector<1x256xi1> to vector<1x256xi1>
    %23 = vector.broadcast %22 : vector<1x256xi1> to vector<8x256xi1>
    %24 = arith.select %23, %21, %18 : vector<8x256xi1>, vector<8x256xf32>
    %25 = vector.shape_cast %6 : vector<1x256xi1> to vector<1x256xi1>
    %26 = vector.broadcast %25 : vector<1x256xi1> to vector<8x256xi1>
    %27 = arith.select %26, %18, %21 : vector<8x256xi1>, vector<8x256xf32>
    %cst_7 = arith.constant 0.000000e+00 : f32
    %28 = vector.broadcast %cst_7 : f32 to vector<8x256xf32>
    %29 = vector.extract_strided_slice %24 {offsets = [0, 255], sizes = [8, 1], strides = [1, 1]} : vector<8x256xf32> to vector<8x1xf32>
    %30 = vector.extract_strided_slice %24 {offsets = [0, 0], sizes = [8, 255], strides = [1, 1]} : vector<8x256xf32> to vector<8x255xf32>
    %31 = tpu.concatenate %29, %30 in 1 : vector<8x1xf32>, vector<8x255xf32> -> vector<8x256xf32>
    %32 = vector.extract_strided_slice %24 {offsets = [0, 1], sizes = [8, 255], strides = [1, 1]} : vector<8x256xf32> to vector<8x255xf32>
    %33 = vector.extract_strided_slice %24 {offsets = [0, 0], sizes = [8, 1], strides = [1, 1]} : vector<8x256xf32> to vector<8x1xf32>
    %34 = tpu.concatenate %32, %33 in 1 : vector<8x255xf32>, vector<8x1xf32> -> vector<8x256xf32>
    %35 = vector.shape_cast %9 : vector<1x256xi1> to vector<1x256xi1>
    %36 = vector.broadcast %35 : vector<1x256xi1> to vector<8x256xi1>
    %37 = arith.select %36, %34, %31 : vector<8x256xi1>, vector<8x256xf32>
    %38 = vector.shape_cast %12 : vector<1x256xi1> to vector<1x256xi1>
    %39 = vector.broadcast %38 : vector<1x256xi1> to vector<8x256xi1>
    %40 = arith.select %39, %31, %34 : vector<8x256xi1>, vector<8x256xf32>
    %c0_8 = arith.constant 0 : index
    %c0_9 = arith.constant 0 : index
    %c0_10 = arith.constant 0 : index
    %41 = vector.load %arg3[%c0_8, %c0_9, %c0_10] : memref<9x8x8xf32, #tpu.memory_space<vmem>>, vector<1x8x8xf32>
    %42 = vector.shape_cast %41 : vector<1x8x8xf32> to vector<8x8xf32>
    %cst_11 = arith.constant dense<0.000000e+00> : vector<8x256xf32>
    %43 = tpu.matmul %42, %37, %cst_11 {dimension_numbers = #tpu.dot_dimension_numbers<[1], [0], [0], [1], [0, 0, 1, 1], [], []>} : vector<8x8xf32>, vector<8x256xf32>, vector<8x256xf32> -> vector<8x256xf32>
    %44 = arith.addf %28, %43 : vector<8x256xf32>
    %c1 = arith.constant 1 : index
    %c0_12 = arith.constant 0 : index
    %c0_13 = arith.constant 0 : index
    %45 = vector.load %arg3[%c1, %c0_12, %c0_13] : memref<9x8x8xf32, #tpu.memory_space<vmem>>, vector<1x8x8xf32>
    %46 = vector.shape_cast %45 : vector<1x8x8xf32> to vector<8x8xf32>
    %cst_14 = arith.constant dense<0.000000e+00> : vector<8x256xf32>
    %47 = tpu.matmul %46, %24, %cst_14 {dimension_numbers = #tpu.dot_dimension_numbers<[1], [0], [0], [1], [0, 0, 1, 1], [], []>} : vector<8x8xf32>, vector<8x256xf32>, vector<8x256xf32> -> vector<8x256xf32>
    %48 = arith.addf %44, %47 : vector<8x256xf32>
    %c2 = arith.constant 2 : index
    %c0_15 = arith.constant 0 : index
    %c0_16 = arith.constant 0 : index
    %49 = vector.load %arg3[%c2, %c0_15, %c0_16] : memref<9x8x8xf32, #tpu.memory_space<vmem>>, vector<1x8x8xf32>
    %50 = vector.shape_cast %49 : vector<1x8x8xf32> to vector<8x8xf32>
    %cst_17 = arith.constant dense<0.000000e+00> : vector<8x256xf32>
    %51 = tpu.matmul %50, %40, %cst_17 {dimension_numbers = #tpu.dot_dimension_numbers<[1], [0], [0], [1], [0, 0, 1, 1], [], []>} : vector<8x8xf32>, vector<8x256xf32>, vector<8x256xf32> -> vector<8x256xf32>
    %52 = arith.addf %48, %51 : vector<8x256xf32>
    %53 = vector.extract_strided_slice %15 {offsets = [0, 255], sizes = [8, 1], strides = [1, 1]} : vector<8x256xf32> to vector<8x1xf32>
    %54 = vector.extract_strided_slice %15 {offsets = [0, 0], sizes = [8, 255], strides = [1, 1]} : vector<8x256xf32> to vector<8x255xf32>
    %55 = tpu.concatenate %53, %54 in 1 : vector<8x1xf32>, vector<8x255xf32> -> vector<8x256xf32>
    %56 = vector.extract_strided_slice %15 {offsets = [0, 1], sizes = [8, 255], strides = [1, 1]} : vector<8x256xf32> to vector<8x255xf32>
    %57 = vector.extract_strided_slice %15 {offsets = [0, 0], sizes = [8, 1], strides = [1, 1]} : vector<8x256xf32> to vector<8x1xf32>
    %58 = tpu.concatenate %56, %57 in 1 : vector<8x255xf32>, vector<8x1xf32> -> vector<8x256xf32>
    %59 = vector.shape_cast %9 : vector<1x256xi1> to vector<1x256xi1>
    %60 = vector.broadcast %59 : vector<1x256xi1> to vector<8x256xi1>
    %61 = arith.select %60, %58, %55 : vector<8x256xi1>, vector<8x256xf32>
    %62 = vector.shape_cast %12 : vector<1x256xi1> to vector<1x256xi1>
    %63 = vector.broadcast %62 : vector<1x256xi1> to vector<8x256xi1>
    %64 = arith.select %63, %55, %58 : vector<8x256xi1>, vector<8x256xf32>
    %c3 = arith.constant 3 : index
    %c0_18 = arith.constant 0 : index
    %c0_19 = arith.constant 0 : index
    %65 = vector.load %arg3[%c3, %c0_18, %c0_19] : memref<9x8x8xf32, #tpu.memory_space<vmem>>, vector<1x8x8xf32>
    %66 = vector.shape_cast %65 : vector<1x8x8xf32> to vector<8x8xf32>
    %cst_20 = arith.constant dense<0.000000e+00> : vector<8x256xf32>
    %67 = tpu.matmul %66, %61, %cst_20 {dimension_numbers = #tpu.dot_dimension_numbers<[1], [0], [0], [1], [0, 0, 1, 1], [], []>} : vector<8x8xf32>, vector<8x256xf32>, vector<8x256xf32> -> vector<8x256xf32>
    %68 = arith.addf %52, %67 : vector<8x256xf32>
    %c4 = arith.constant 4 : index
    %c0_21 = arith.constant 0 : index
    %c0_22 = arith.constant 0 : index
    %69 = vector.load %arg3[%c4, %c0_21, %c0_22] : memref<9x8x8xf32, #tpu.memory_space<vmem>>, vector<1x8x8xf32>
    %70 = vector.shape_cast %69 : vector<1x8x8xf32> to vector<8x8xf32>
    %cst_23 = arith.constant dense<0.000000e+00> : vector<8x256xf32>
    %71 = tpu.matmul %70, %15, %cst_23 {dimension_numbers = #tpu.dot_dimension_numbers<[1], [0], [0], [1], [0, 0, 1, 1], [], []>} : vector<8x8xf32>, vector<8x256xf32>, vector<8x256xf32> -> vector<8x256xf32>
    %72 = arith.addf %68, %71 : vector<8x256xf32>
    %c5 = arith.constant 5 : index
    %c0_24 = arith.constant 0 : index
    %c0_25 = arith.constant 0 : index
    %73 = vector.load %arg3[%c5, %c0_24, %c0_25] : memref<9x8x8xf32, #tpu.memory_space<vmem>>, vector<1x8x8xf32>
    %74 = vector.shape_cast %73 : vector<1x8x8xf32> to vector<8x8xf32>
    %cst_26 = arith.constant dense<0.000000e+00> : vector<8x256xf32>
    %75 = tpu.matmul %74, %64, %cst_26 {dimension_numbers = #tpu.dot_dimension_numbers<[1], [0], [0], [1], [0, 0, 1, 1], [], []>} : vector<8x8xf32>, vector<8x256xf32>, vector<8x256xf32> -> vector<8x256xf32>
    %76 = arith.addf %72, %75 : vector<8x256xf32>
    %77 = vector.extract_strided_slice %27 {offsets = [0, 255], sizes = [8, 1], strides = [1, 1]} : vector<8x256xf32> to vector<8x1xf32>
    %78 = vector.extract_strided_slice %27 {offsets = [0, 0], sizes = [8, 255], strides = [1, 1]} : vector<8x256xf32> to vector<8x255xf32>
    %79 = tpu.concatenate %77, %78 in 1 : vector<8x1xf32>, vector<8x255xf32> -> vector<8x256xf32>
    %80 = vector.extract_strided_slice %27 {offsets = [0, 1], sizes = [8, 255], strides = [1, 1]} : vector<8x256xf32> to vector<8x255xf32>
    %81 = vector.extract_strided_slice %27 {offsets = [0, 0], sizes = [8, 1], strides = [1, 1]} : vector<8x256xf32> to vector<8x1xf32>
    %82 = tpu.concatenate %80, %81 in 1 : vector<8x255xf32>, vector<8x1xf32> -> vector<8x256xf32>
    %83 = vector.shape_cast %9 : vector<1x256xi1> to vector<1x256xi1>
    %84 = vector.broadcast %83 : vector<1x256xi1> to vector<8x256xi1>
    %85 = arith.select %84, %82, %79 : vector<8x256xi1>, vector<8x256xf32>
    %86 = vector.shape_cast %12 : vector<1x256xi1> to vector<1x256xi1>
    %87 = vector.broadcast %86 : vector<1x256xi1> to vector<8x256xi1>
    %88 = arith.select %87, %79, %82 : vector<8x256xi1>, vector<8x256xf32>
    %c6 = arith.constant 6 : index
    %c0_27 = arith.constant 0 : index
    %c0_28 = arith.constant 0 : index
    %89 = vector.load %arg3[%c6, %c0_27, %c0_28] : memref<9x8x8xf32, #tpu.memory_space<vmem>>, vector<1x8x8xf32>
    %90 = vector.shape_cast %89 : vector<1x8x8xf32> to vector<8x8xf32>
    %cst_29 = arith.constant dense<0.000000e+00> : vector<8x256xf32>
    %91 = tpu.matmul %90, %85, %cst_29 {dimension_numbers = #tpu.dot_dimension_numbers<[1], [0], [0], [1], [0, 0, 1, 1], [], []>} : vector<8x8xf32>, vector<8x256xf32>, vector<8x256xf32> -> vector<8x256xf32>
    %92 = arith.addf %76, %91 : vector<8x256xf32>
    %c7 = arith.constant 7 : index
    %c0_30 = arith.constant 0 : index
    %c0_31 = arith.constant 0 : index
    %93 = vector.load %arg3[%c7, %c0_30, %c0_31] : memref<9x8x8xf32, #tpu.memory_space<vmem>>, vector<1x8x8xf32>
    %94 = vector.shape_cast %93 : vector<1x8x8xf32> to vector<8x8xf32>
    %cst_32 = arith.constant dense<0.000000e+00> : vector<8x256xf32>
    %95 = tpu.matmul %94, %27, %cst_32 {dimension_numbers = #tpu.dot_dimension_numbers<[1], [0], [0], [1], [0, 0, 1, 1], [], []>} : vector<8x8xf32>, vector<8x256xf32>, vector<8x256xf32> -> vector<8x256xf32>
    %96 = arith.addf %92, %95 : vector<8x256xf32>
    %c8 = arith.constant 8 : index
    %c0_33 = arith.constant 0 : index
    %c0_34 = arith.constant 0 : index
    %97 = vector.load %arg3[%c8, %c0_33, %c0_34] : memref<9x8x8xf32, #tpu.memory_space<vmem>>, vector<1x8x8xf32>
    %98 = vector.shape_cast %97 : vector<1x8x8xf32> to vector<8x8xf32>
    %cst_35 = arith.constant dense<0.000000e+00> : vector<8x256xf32>
    %99 = tpu.matmul %98, %88, %cst_35 {dimension_numbers = #tpu.dot_dimension_numbers<[1], [0], [0], [1], [0, 0, 1, 1], [], []>} : vector<8x8xf32>, vector<8x256xf32>, vector<8x256xf32> -> vector<8x256xf32>
    %100 = arith.addf %96, %99 : vector<8x256xf32>
    %cst_36 = arith.constant dense<0.000000e+00> : vector<8x1xf32>
    %101 = tpu.matmul %100, %13, %cst_36 {dimension_numbers = #tpu.dot_dimension_numbers<[1], [0], [0], [1], [0, 0, 1, 1], [], []>} : vector<8x256xf32>, vector<256x1xf32>, vector<8x1xf32> -> vector<8x1xf32>
    %102 = arith.mulf %100, %100 : vector<8x256xf32>
    %cst_37 = arith.constant dense<0.000000e+00> : vector<8x1xf32>
    %103 = tpu.matmul %102, %13, %cst_37 {dimension_numbers = #tpu.dot_dimension_numbers<[1], [0], [0], [1], [0, 0, 1, 1], [], []>} : vector<8x256xf32>, vector<256x1xf32>, vector<8x1xf32> -> vector<8x1xf32>
    %cst_38 = arith.constant 3.906250e-03 : f32
    %104 = vector.broadcast %cst_38 : f32 to vector<8x1xf32>
    %105 = arith.mulf %101, %104 : vector<8x1xf32>
    %cst_39 = arith.constant 3.906250e-03 : f32
    %106 = vector.broadcast %cst_39 : f32 to vector<8x1xf32>
    %107 = arith.mulf %103, %106 : vector<8x1xf32>
    %108 = arith.mulf %105, %105 : vector<8x1xf32>
    %109 = arith.subf %107, %108 : vector<8x1xf32>
    %110 = vector.broadcast %105 : vector<8x1xf32> to vector<8x256xf32>
    %111 = arith.subf %100, %110 : vector<8x256xf32>
    %cst_40 = arith.constant 9.99999974E-6 : f32
    %112 = vector.broadcast %cst_40 : f32 to vector<8x1xf32>
    %113 = arith.addf %109, %112 : vector<8x1xf32>
    %114 = math.rsqrt %113 : vector<8x1xf32>
    %115 = vector.broadcast %114 : vector<8x1xf32> to vector<8x256xf32>
    %116 = arith.mulf %111, %115 : vector<8x256xf32>
    %cst_41 = arith.constant 0.000000e+00 : f32
    %117 = vector.broadcast %cst_41 : f32 to vector<8x256xf32>
    %118 = arith.maximumf %116, %117 : vector<8x256xf32>
    %119 = vector.extract_strided_slice %118 {offsets = [0, 240], sizes = [8, 16], strides = [1, 1]} : vector<8x256xf32> to vector<8x16xf32>
    %120 = vector.extract_strided_slice %118 {offsets = [0, 0], sizes = [8, 240], strides = [1, 1]} : vector<8x256xf32> to vector<8x240xf32>
    %121 = tpu.concatenate %119, %120 in 1 : vector<8x16xf32>, vector<8x240xf32> -> vector<8x256xf32>
    %122 = vector.extract_strided_slice %118 {offsets = [0, 16], sizes = [8, 240], strides = [1, 1]} : vector<8x256xf32> to vector<8x240xf32>
    %123 = vector.extract_strided_slice %118 {offsets = [0, 0], sizes = [8, 16], strides = [1, 1]} : vector<8x256xf32> to vector<8x16xf32>
    %124 = tpu.concatenate %122, %123 in 1 : vector<8x240xf32>, vector<8x16xf32> -> vector<8x256xf32>
    %125 = vector.shape_cast %3 : vector<1x256xi1> to vector<1x256xi1>
    %126 = vector.broadcast %125 : vector<1x256xi1> to vector<8x256xi1>
    %127 = arith.select %126, %124, %121 : vector<8x256xi1>, vector<8x256xf32>
    %128 = vector.shape_cast %6 : vector<1x256xi1> to vector<1x256xi1>
    %129 = vector.broadcast %128 : vector<1x256xi1> to vector<8x256xi1>
    %130 = arith.select %129, %121, %124 : vector<8x256xi1>, vector<8x256xf32>
    %cst_42 = arith.constant 0.000000e+00 : f32
    %131 = vector.broadcast %cst_42 : f32 to vector<8x256xf32>
    %132 = vector.extract_strided_slice %127 {offsets = [0, 255], sizes = [8, 1], strides = [1, 1]} : vector<8x256xf32> to vector<8x1xf32>
    %133 = vector.extract_strided_slice %127 {offsets = [0, 0], sizes = [8, 255], strides = [1, 1]} : vector<8x256xf32> to vector<8x255xf32>
    %134 = tpu.concatenate %132, %133 in 1 : vector<8x1xf32>, vector<8x255xf32> -> vector<8x256xf32>
    %135 = vector.extract_strided_slice %127 {offsets = [0, 1], sizes = [8, 255], strides = [1, 1]} : vector<8x256xf32> to vector<8x255xf32>
    %136 = vector.extract_strided_slice %127 {offsets = [0, 0], sizes = [8, 1], strides = [1, 1]} : vector<8x256xf32> to vector<8x1xf32>
    %137 = tpu.concatenate %135, %136 in 1 : vector<8x255xf32>, vector<8x1xf32> -> vector<8x256xf32>
    %138 = vector.shape_cast %9 : vector<1x256xi1> to vector<1x256xi1>
    %139 = vector.broadcast %138 : vector<1x256xi1> to vector<8x256xi1>
    %140 = arith.select %139, %137, %134 : vector<8x256xi1>, vector<8x256xf32>
    %141 = vector.shape_cast %12 : vector<1x256xi1> to vector<1x256xi1>
    %142 = vector.broadcast %141 : vector<1x256xi1> to vector<8x256xi1>
    %143 = arith.select %142, %134, %137 : vector<8x256xi1>, vector<8x256xf32>
    %c0_43 = arith.constant 0 : index
    %c0_44 = arith.constant 0 : index
    %c0_45 = arith.constant 0 : index
    %144 = vector.load %arg4[%c0_43, %c0_44, %c0_45] : memref<9x8x8xf32, #tpu.memory_space<vmem>>, vector<1x8x8xf32>
    %145 = vector.shape_cast %144 : vector<1x8x8xf32> to vector<8x8xf32>
    %cst_46 = arith.constant dense<0.000000e+00> : vector<8x256xf32>
    %146 = tpu.matmul %145, %140, %cst_46 {dimension_numbers = #tpu.dot_dimension_numbers<[1], [0], [0], [1], [0, 0, 1, 1], [], []>} : vector<8x8xf32>, vector<8x256xf32>, vector<8x256xf32> -> vector<8x256xf32>
    %147 = arith.addf %131, %146 : vector<8x256xf32>
    %c1_47 = arith.constant 1 : index
    %c0_48 = arith.constant 0 : index
    %c0_49 = arith.constant 0 : index
    %148 = vector.load %arg4[%c1_47, %c0_48, %c0_49] : memref<9x8x8xf32, #tpu.memory_space<vmem>>, vector<1x8x8xf32>
    %149 = vector.shape_cast %148 : vector<1x8x8xf32> to vector<8x8xf32>
    %cst_50 = arith.constant dense<0.000000e+00> : vector<8x256xf32>
    %150 = tpu.matmul %149, %127, %cst_50 {dimension_numbers = #tpu.dot_dimension_numbers<[1], [0], [0], [1], [0, 0, 1, 1], [], []>} : vector<8x8xf32>, vector<8x256xf32>, vector<8x256xf32> -> vector<8x256xf32>
    %151 = arith.addf %147, %150 : vector<8x256xf32>
    %c2_51 = arith.constant 2 : index
    %c0_52 = arith.constant 0 : index
    %c0_53 = arith.constant 0 : index
    %152 = vector.load %arg4[%c2_51, %c0_52, %c0_53] : memref<9x8x8xf32, #tpu.memory_space<vmem>>, vector<1x8x8xf32>
    %153 = vector.shape_cast %152 : vector<1x8x8xf32> to vector<8x8xf32>
    %cst_54 = arith.constant dense<0.000000e+00> : vector<8x256xf32>
    %154 = tpu.matmul %153, %143, %cst_54 {dimension_numbers = #tpu.dot_dimension_numbers<[1], [0], [0], [1], [0, 0, 1, 1], [], []>} : vector<8x8xf32>, vector<8x256xf32>, vector<8x256xf32> -> vector<8x256xf32>
    %155 = arith.addf %151, %154 : vector<8x256xf32>
    %156 = vector.extract_strided_slice %118 {offsets = [0, 255], sizes = [8, 1], strides = [1, 1]} : vector<8x256xf32> to vector<8x1xf32>
    %157 = vector.extract_strided_slice %118 {offsets = [0, 0], sizes = [8, 255], strides = [1, 1]} : vector<8x256xf32> to vector<8x255xf32>
    %158 = tpu.concatenate %156, %157 in 1 : vector<8x1xf32>, vector<8x255xf32> -> vector<8x256xf32>
    %159 = vector.extract_strided_slice %118 {offsets = [0, 1], sizes = [8, 255], strides = [1, 1]} : vector<8x256xf32> to vector<8x255xf32>
    %160 = vector.extract_strided_slice %118 {offsets = [0, 0], sizes = [8, 1], strides = [1, 1]} : vector<8x256xf32> to vector<8x1xf32>
    %161 = tpu.concatenate %159, %160 in 1 : vector<8x255xf32>, vector<8x1xf32> -> vector<8x256xf32>
    %162 = vector.shape_cast %9 : vector<1x256xi1> to vector<1x256xi1>
    %163 = vector.broadcast %162 : vector<1x256xi1> to vector<8x256xi1>
    %164 = arith.select %163, %161, %158 : vector<8x256xi1>, vector<8x256xf32>
    %165 = vector.shape_cast %12 : vector<1x256xi1> to vector<1x256xi1>
    %166 = vector.broadcast %165 : vector<1x256xi1> to vector<8x256xi1>
    %167 = arith.select %166, %158, %161 : vector<8x256xi1>, vector<8x256xf32>
    %c3_55 = arith.constant 3 : index
    %c0_56 = arith.constant 0 : index
    %c0_57 = arith.constant 0 : index
    %168 = vector.load %arg4[%c3_55, %c0_56, %c0_57] : memref<9x8x8xf32, #tpu.memory_space<vmem>>, vector<1x8x8xf32>
    %169 = vector.shape_cast %168 : vector<1x8x8xf32> to vector<8x8xf32>
    %cst_58 = arith.constant dense<0.000000e+00> : vector<8x256xf32>
    %170 = tpu.matmul %169, %164, %cst_58 {dimension_numbers = #tpu.dot_dimension_numbers<[1], [0], [0], [1], [0, 0, 1, 1], [], []>} : vector<8x8xf32>, vector<8x256xf32>, vector<8x256xf32> -> vector<8x256xf32>
    %171 = arith.addf %155, %170 : vector<8x256xf32>
    %c4_59 = arith.constant 4 : index
    %c0_60 = arith.constant 0 : index
    %c0_61 = arith.constant 0 : index
    %172 = vector.load %arg4[%c4_59, %c0_60, %c0_61] : memref<9x8x8xf32, #tpu.memory_space<vmem>>, vector<1x8x8xf32>
    %173 = vector.shape_cast %172 : vector<1x8x8xf32> to vector<8x8xf32>
    %cst_62 = arith.constant dense<0.000000e+00> : vector<8x256xf32>
    %174 = tpu.matmul %173, %118, %cst_62 {dimension_numbers = #tpu.dot_dimension_numbers<[1], [0], [0], [1], [0, 0, 1, 1], [], []>} : vector<8x8xf32>, vector<8x256xf32>, vector<8x256xf32> -> vector<8x256xf32>
    %175 = arith.addf %171, %174 : vector<8x256xf32>
    %c5_63 = arith.constant 5 : index
    %c0_64 = arith.constant 0 : index
    %c0_65 = arith.constant 0 : index
    %176 = vector.load %arg4[%c5_63, %c0_64, %c0_65] : memref<9x8x8xf32, #tpu.memory_space<vmem>>, vector<1x8x8xf32>
    %177 = vector.shape_cast %176 : vector<1x8x8xf32> to vector<8x8xf32>
    %cst_66 = arith.constant dense<0.000000e+00> : vector<8x256xf32>
    %178 = tpu.matmul %177, %167, %cst_66 {dimension_numbers = #tpu.dot_dimension_numbers<[1], [0], [0], [1], [0, 0, 1, 1], [], []>} : vector<8x8xf32>, vector<8x256xf32>, vector<8x256xf32> -> vector<8x256xf32>
    %179 = arith.addf %175, %178 : vector<8x256xf32>
    %180 = vector.extract_strided_slice %130 {offsets = [0, 255], sizes = [8, 1], strides = [1, 1]} : vector<8x256xf32> to vector<8x1xf32>
    %181 = vector.extract_strided_slice %130 {offsets = [0, 0], sizes = [8, 255], strides = [1, 1]} : vector<8x256xf32> to vector<8x255xf32>
    %182 = tpu.concatenate %180, %181 in 1 : vector<8x1xf32>, vector<8x255xf32> -> vector<8x256xf32>
    %183 = vector.extract_strided_slice %130 {offsets = [0, 1], sizes = [8, 255], strides = [1, 1]} : vector<8x256xf32> to vector<8x255xf32>
    %184 = vector.extract_strided_slice %130 {offsets = [0, 0], sizes = [8, 1], strides = [1, 1]} : vector<8x256xf32> to vector<8x1xf32>
    %185 = tpu.concatenate %183, %184 in 1 : vector<8x255xf32>, vector<8x1xf32> -> vector<8x256xf32>
    %186 = vector.shape_cast %9 : vector<1x256xi1> to vector<1x256xi1>
    %187 = vector.broadcast %186 : vector<1x256xi1> to vector<8x256xi1>
    %188 = arith.select %187, %185, %182 : vector<8x256xi1>, vector<8x256xf32>
    %189 = vector.shape_cast %12 : vector<1x256xi1> to vector<1x256xi1>
    %190 = vector.broadcast %189 : vector<1x256xi1> to vector<8x256xi1>
    %191 = arith.select %190, %182, %185 : vector<8x256xi1>, vector<8x256xf32>
    %c6_67 = arith.constant 6 : index
    %c0_68 = arith.constant 0 : index
    %c0_69 = arith.constant 0 : index
    %192 = vector.load %arg4[%c6_67, %c0_68, %c0_69] : memref<9x8x8xf32, #tpu.memory_space<vmem>>, vector<1x8x8xf32>
    %193 = vector.shape_cast %192 : vector<1x8x8xf32> to vector<8x8xf32>
    %cst_70 = arith.constant dense<0.000000e+00> : vector<8x256xf32>
    %194 = tpu.matmul %193, %188, %cst_70 {dimension_numbers = #tpu.dot_dimension_numbers<[1], [0], [0], [1], [0, 0, 1, 1], [], []>} : vector<8x8xf32>, vector<8x256xf32>, vector<8x256xf32> -> vector<8x256xf32>
    %195 = arith.addf %179, %194 : vector<8x256xf32>
    %c7_71 = arith.constant 7 : index
    %c0_72 = arith.constant 0 : index
    %c0_73 = arith.constant 0 : index
    %196 = vector.load %arg4[%c7_71, %c0_72, %c0_73] : memref<9x8x8xf32, #tpu.memory_space<vmem>>, vector<1x8x8xf32>
    %197 = vector.shape_cast %196 : vector<1x8x8xf32> to vector<8x8xf32>
    %cst_74 = arith.constant dense<0.000000e+00> : vector<8x256xf32>
    %198 = tpu.matmul %197, %130, %cst_74 {dimension_numbers = #tpu.dot_dimension_numbers<[1], [0], [0], [1], [0, 0, 1, 1], [], []>} : vector<8x8xf32>, vector<8x256xf32>, vector<8x256xf32> -> vector<8x256xf32>
    %199 = arith.addf %195, %198 : vector<8x256xf32>
    %c8_75 = arith.constant 8 : index
    %c0_76 = arith.constant 0 : index
    %c0_77 = arith.constant 0 : index
    %200 = vector.load %arg4[%c8_75, %c0_76, %c0_77] : memref<9x8x8xf32, #tpu.memory_space<vmem>>, vector<1x8x8xf32>
    %201 = vector.shape_cast %200 : vector<1x8x8xf32> to vector<8x8xf32>
    %cst_78 = arith.constant dense<0.000000e+00> : vector<8x256xf32>
    %202 = tpu.matmul %201, %191, %cst_78 {dimension_numbers = #tpu.dot_dimension_numbers<[1], [0], [0], [1], [0, 0, 1, 1], [], []>} : vector<8x8xf32>, vector<8x256xf32>, vector<8x256xf32> -> vector<8x256xf32>
    %203 = arith.addf %199, %202 : vector<8x256xf32>
    %cst_79 = arith.constant dense<0.000000e+00> : vector<8x1xf32>
    %204 = tpu.matmul %203, %13, %cst_79 {dimension_numbers = #tpu.dot_dimension_numbers<[1], [0], [0], [1], [0, 0, 1, 1], [], []>} : vector<8x256xf32>, vector<256x1xf32>, vector<8x1xf32> -> vector<8x1xf32>
    %205 = arith.mulf %203, %203 : vector<8x256xf32>
    %cst_80 = arith.constant dense<0.000000e+00> : vector<8x1xf32>
    %206 = tpu.matmul %205, %13, %cst_80 {dimension_numbers = #tpu.dot_dimension_numbers<[1], [0], [0], [1], [0, 0, 1, 1], [], []>} : vector<8x256xf32>, vector<256x1xf32>, vector<8x1xf32> -> vector<8x1xf32>
    %cst_81 = arith.constant 3.906250e-03 : f32
    %207 = vector.broadcast %cst_81 : f32 to vector<8x1xf32>
    %208 = arith.mulf %204, %207 : vector<8x1xf32>
    %cst_82 = arith.constant 3.906250e-03 : f32
    %209 = vector.broadcast %cst_82 : f32 to vector<8x1xf32>
    %210 = arith.mulf %206, %209 : vector<8x1xf32>
    %211 = arith.mulf %208, %208 : vector<8x1xf32>
    %212 = arith.subf %210, %211 : vector<8x1xf32>
    %213 = vector.broadcast %208 : vector<8x1xf32> to vector<8x256xf32>
    %214 = arith.subf %203, %213 : vector<8x256xf32>
    %cst_83 = arith.constant 9.99999974E-6 : f32
    %215 = vector.broadcast %cst_83 : f32 to vector<8x1xf32>
    %216 = arith.addf %212, %215 : vector<8x1xf32>
    %217 = math.rsqrt %216 : vector<8x1xf32>
    %218 = vector.broadcast %217 : vector<8x1xf32> to vector<8x256xf32>
    %219 = arith.mulf %214, %218 : vector<8x256xf32>
    %220 = arith.addf %15, %219 : vector<8x256xf32>
    %c0_84 = arith.constant 0 : index
    %c0_85 = arith.constant 0 : index
    %c0_86 = arith.constant 0 : index
    %221 = vector.load %arg5[%c0_84, %c0_85, %c0_86] : memref<2x8x256xf32, #tpu.memory_space<vmem>>, vector<1x8x256xf32>
    %222 = vector.shape_cast %221 : vector<1x8x256xf32> to vector<8x256xf32>
    %223 = vector.shape_cast %220 : vector<8x256xf32> to vector<1x8x256xf32>
    tpu.vector_store %arg5[%c0_84, %c0_85, %c0_86], %223 {strides = array<i32>} : memref<2x8x256xf32, #tpu.memory_space<vmem>>, vector<1x8x256xf32>,
    %c1_87 = arith.constant 1 : index
    %c0_88 = arith.constant 0 : index
    %c0_89 = arith.constant 0 : index
    %224 = vector.load %arg2[%c1_87, %c0_88, %c0_89] : memref<2x8x256xf32, #tpu.memory_space<vmem>>, vector<1x8x256xf32>
    %225 = vector.shape_cast %224 : vector<1x8x256xf32> to vector<8x256xf32>
    %226 = vector.extract_strided_slice %225 {offsets = [0, 240], sizes = [8, 16], strides = [1, 1]} : vector<8x256xf32> to vector<8x16xf32>
    %227 = vector.extract_strided_slice %225 {offsets = [0, 0], sizes = [8, 240], strides = [1, 1]} : vector<8x256xf32> to vector<8x240xf32>
    %228 = tpu.concatenate %226, %227 in 1 : vector<8x16xf32>, vector<8x240xf32> -> vector<8x256xf32>
    %229 = vector.extract_strided_slice %225 {offsets = [0, 16], sizes = [8, 240], strides = [1, 1]} : vector<8x256xf32> to vector<8x240xf32>
    %230 = vector.extract_strided_slice %225 {offsets = [0, 0], sizes = [8, 16], strides = [1, 1]} : vector<8x256xf32> to vector<8x16xf32>
    %231 = tpu.concatenate %229, %230 in 1 : vector<8x240xf32>, vector<8x16xf32> -> vector<8x256xf32>
    %232 = vector.shape_cast %3 : vector<1x256xi1> to vector<1x256xi1>
    %233 = vector.broadcast %232 : vector<1x256xi1> to vector<8x256xi1>
    %234 = arith.select %233, %231, %228 : vector<8x256xi1>, vector<8x256xf32>
    %235 = vector.shape_cast %6 : vector<1x256xi1> to vector<1x256xi1>
    %236 = vector.broadcast %235 : vector<1x256xi1> to vector<8x256xi1>
    %237 = arith.select %236, %228, %231 : vector<8x256xi1>, vector<8x256xf32>
    %cst_90 = arith.constant 0.000000e+00 : f32
    %238 = vector.broadcast %cst_90 : f32 to vector<8x256xf32>
    %239 = vector.extract_strided_slice %234 {offsets = [0, 255], sizes = [8, 1], strides = [1, 1]} : vector<8x256xf32> to vector<8x1xf32>
    %240 = vector.extract_strided_slice %234 {offsets = [0, 0], sizes = [8, 255], strides = [1, 1]} : vector<8x256xf32> to vector<8x255xf32>
    %241 = tpu.concatenate %239, %240 in 1 : vector<8x1xf32>, vector<8x255xf32> -> vector<8x256xf32>
    %242 = vector.extract_strided_slice %234 {offsets = [0, 1], sizes = [8, 255], strides = [1, 1]} : vector<8x256xf32> to vector<8x255xf32>
    %243 = vector.extract_strided_slice %234 {offsets = [0, 0], sizes = [8, 1], strides = [1, 1]} : vector<8x256xf32> to vector<8x1xf32>
    %244 = tpu.concatenate %242, %243 in 1 : vector<8x255xf32>, vector<8x1xf32> -> vector<8x256xf32>
    %245 = vector.shape_cast %9 : vector<1x256xi1> to vector<1x256xi1>
    %246 = vector.broadcast %245 : vector<1x256xi1> to vector<8x256xi1>
    %247 = arith.select %246, %244, %241 : vector<8x256xi1>, vector<8x256xf32>
    %248 = vector.shape_cast %12 : vector<1x256xi1> to vector<1x256xi1>
    %249 = vector.broadcast %248 : vector<1x256xi1> to vector<8x256xi1>
    %250 = arith.select %249, %241, %244 : vector<8x256xi1>, vector<8x256xf32>
    %c0_91 = arith.constant 0 : index
    %c0_92 = arith.constant 0 : index
    %c0_93 = arith.constant 0 : index
    %251 = vector.load %arg3[%c0_91, %c0_92, %c0_93] : memref<9x8x8xf32, #tpu.memory_space<vmem>>, vector<1x8x8xf32>
    %252 = vector.shape_cast %251 : vector<1x8x8xf32> to vector<8x8xf32>
    %cst_94 = arith.constant dense<0.000000e+00> : vector<8x256xf32>
    %253 = tpu.matmul %252, %247, %cst_94 {dimension_numbers = #tpu.dot_dimension_numbers<[1], [0], [0], [1], [0, 0, 1, 1], [], []>} : vector<8x8xf32>, vector<8x256xf32>, vector<8x256xf32> -> vector<8x256xf32>
    %254 = arith.addf %238, %253 : vector<8x256xf32>
    %c1_95 = arith.constant 1 : index
    %c0_96 = arith.constant 0 : index
    %c0_97 = arith.constant 0 : index
    %255 = vector.load %arg3[%c1_95, %c0_96, %c0_97] : memref<9x8x8xf32, #tpu.memory_space<vmem>>, vector<1x8x8xf32>
    %256 = vector.shape_cast %255 : vector<1x8x8xf32> to vector<8x8xf32>
    %cst_98 = arith.constant dense<0.000000e+00> : vector<8x256xf32>
    %257 = tpu.matmul %256, %234, %cst_98 {dimension_numbers = #tpu.dot_dimension_numbers<[1], [0], [0], [1], [0, 0, 1, 1], [], []>} : vector<8x8xf32>, vector<8x256xf32>, vector<8x256xf32> -> vector<8x256xf32>
    %258 = arith.addf %254, %257 : vector<8x256xf32>
    %c2_99 = arith.constant 2 : index
    %c0_100 = arith.constant 0 : index
    %c0_101 = arith.constant 0 : index
    %259 = vector.load %arg3[%c2_99, %c0_100, %c0_101] : memref<9x8x8xf32, #tpu.memory_space<vmem>>, vector<1x8x8xf32>
    %260 = vector.shape_cast %259 : vector<1x8x8xf32> to vector<8x8xf32>
    %cst_102 = arith.constant dense<0.000000e+00> : vector<8x256xf32>
    %261 = tpu.matmul %260, %250, %cst_102 {dimension_numbers = #tpu.dot_dimension_numbers<[1], [0], [0], [1], [0, 0, 1, 1], [], []>} : vector<8x8xf32>, vector<8x256xf32>, vector<8x256xf32> -> vector<8x256xf32>
    %262 = arith.addf %258, %261 : vector<8x256xf32>
    %263 = vector.extract_strided_slice %225 {offsets = [0, 255], sizes = [8, 1], strides = [1, 1]} : vector<8x256xf32> to vector<8x1xf32>
    %264 = vector.extract_strided_slice %225 {offsets = [0, 0], sizes = [8, 255], strides = [1, 1]} : vector<8x256xf32> to vector<8x255xf32>
    %265 = tpu.concatenate %263, %264 in 1 : vector<8x1xf32>, vector<8x255xf32> -> vector<8x256xf32>
    %266 = vector.extract_strided_slice %225 {offsets = [0, 1], sizes = [8, 255], strides = [1, 1]} : vector<8x256xf32> to vector<8x255xf32>
    %267 = vector.extract_strided_slice %225 {offsets = [0, 0], sizes = [8, 1], strides = [1, 1]} : vector<8x256xf32> to vector<8x1xf32>
    %268 = tpu.concatenate %266, %267 in 1 : vector<8x255xf32>, vector<8x1xf32> -> vector<8x256xf32>
    %269 = vector.shape_cast %9 : vector<1x256xi1> to vector<1x256xi1>
    %270 = vector.broadcast %269 : vector<1x256xi1> to vector<8x256xi1>
    %271 = arith.select %270, %268, %265 : vector<8x256xi1>, vector<8x256xf32>
    %272 = vector.shape_cast %12 : vector<1x256xi1> to vector<1x256xi1>
    %273 = vector.broadcast %272 : vector<1x256xi1> to vector<8x256xi1>
    %274 = arith.select %273, %265, %268 : vector<8x256xi1>, vector<8x256xf32>
    %c3_103 = arith.constant 3 : index
    %c0_104 = arith.constant 0 : index
    %c0_105 = arith.constant 0 : index
    %275 = vector.load %arg3[%c3_103, %c0_104, %c0_105] : memref<9x8x8xf32, #tpu.memory_space<vmem>>, vector<1x8x8xf32>
    %276 = vector.shape_cast %275 : vector<1x8x8xf32> to vector<8x8xf32>
    %cst_106 = arith.constant dense<0.000000e+00> : vector<8x256xf32>
    %277 = tpu.matmul %276, %271, %cst_106 {dimension_numbers = #tpu.dot_dimension_numbers<[1], [0], [0], [1], [0, 0, 1, 1], [], []>} : vector<8x8xf32>, vector<8x256xf32>, vector<8x256xf32> -> vector<8x256xf32>
    %278 = arith.addf %262, %277 : vector<8x256xf32>
    %c4_107 = arith.constant 4 : index
    %c0_108 = arith.constant 0 : index
    %c0_109 = arith.constant 0 : index
    %279 = vector.load %arg3[%c4_107, %c0_108, %c0_109] : memref<9x8x8xf32, #tpu.memory_space<vmem>>, vector<1x8x8xf32>
    %280 = vector.shape_cast %279 : vector<1x8x8xf32> to vector<8x8xf32>
    %cst_110 = arith.constant dense<0.000000e+00> : vector<8x256xf32>
    %281 = tpu.matmul %280, %225, %cst_110 {dimension_numbers = #tpu.dot_dimension_numbers<[1], [0], [0], [1], [0, 0, 1, 1], [], []>} : vector<8x8xf32>, vector<8x256xf32>, vector<8x256xf32> -> vector<8x256xf32>
    %282 = arith.addf %278, %281 : vector<8x256xf32>
    %c5_111 = arith.constant 5 : index
    %c0_112 = arith.constant 0 : index
    %c0_113 = arith.constant 0 : index
    %283 = vector.load %arg3[%c5_111, %c0_112, %c0_113] : memref<9x8x8xf32, #tpu.memory_space<vmem>>, vector<1x8x8xf32>
    %284 = vector.shape_cast %283 : vector<1x8x8xf32> to vector<8x8xf32>
    %cst_114 = arith.constant dense<0.000000e+00> : vector<8x256xf32>
    %285 = tpu.matmul %284, %274, %cst_114 {dimension_numbers = #tpu.dot_dimension_numbers<[1], [0], [0], [1], [0, 0, 1, 1], [], []>} : vector<8x8xf32>, vector<8x256xf32>, vector<8x256xf32> -> vector<8x256xf32>
    %286 = arith.addf %282, %285 : vector<8x256xf32>
    %287 = vector.extract_strided_slice %237 {offsets = [0, 255], sizes = [8, 1], strides = [1, 1]} : vector<8x256xf32> to vector<8x1xf32>
    %288 = vector.extract_strided_slice %237 {offsets = [0, 0], sizes = [8, 255], strides = [1, 1]} : vector<8x256xf32> to vector<8x255xf32>
    %289 = tpu.concatenate %287, %288 in 1 : vector<8x1xf32>, vector<8x255xf32> -> vector<8x256xf32>
    %290 = vector.extract_strided_slice %237 {offsets = [0, 1], sizes = [8, 255], strides = [1, 1]} : vector<8x256xf32> to vector<8x255xf32>
    %291 = vector.extract_strided_slice %237 {offsets = [0, 0], sizes = [8, 1], strides = [1, 1]} : vector<8x256xf32> to vector<8x1xf32>
    %292 = tpu.concatenate %290, %291 in 1 : vector<8x255xf32>, vector<8x1xf32> -> vector<8x256xf32>
    %293 = vector.shape_cast %9 : vector<1x256xi1> to vector<1x256xi1>
    %294 = vector.broadcast %293 : vector<1x256xi1> to vector<8x256xi1>
    %295 = arith.select %294, %292, %289 : vector<8x256xi1>, vector<8x256xf32>
    %296 = vector.shape_cast %12 : vector<1x256xi1> to vector<1x256xi1>
    %297 = vector.broadcast %296 : vector<1x256xi1> to vector<8x256xi1>
    %298 = arith.select %297, %289, %292 : vector<8x256xi1>, vector<8x256xf32>
    %c6_115 = arith.constant 6 : index
    %c0_116 = arith.constant 0 : index
    %c0_117 = arith.constant 0 : index
    %299 = vector.load %arg3[%c6_115, %c0_116, %c0_117] : memref<9x8x8xf32, #tpu.memory_space<vmem>>, vector<1x8x8xf32>
    %300 = vector.shape_cast %299 : vector<1x8x8xf32> to vector<8x8xf32>
    %cst_118 = arith.constant dense<0.000000e+00> : vector<8x256xf32>
    %301 = tpu.matmul %300, %295, %cst_118 {dimension_numbers = #tpu.dot_dimension_numbers<[1], [0], [0], [1], [0, 0, 1, 1], [], []>} : vector<8x8xf32>, vector<8x256xf32>, vector<8x256xf32> -> vector<8x256xf32>
    %302 = arith.addf %286, %301 : vector<8x256xf32>
    %c7_119 = arith.constant 7 : index
    %c0_120 = arith.constant 0 : index
    %c0_121 = arith.constant 0 : index
    %303 = vector.load %arg3[%c7_119, %c0_120, %c0_121] : memref<9x8x8xf32, #tpu.memory_space<vmem>>, vector<1x8x8xf32>
    %304 = vector.shape_cast %303 : vector<1x8x8xf32> to vector<8x8xf32>
    %cst_122 = arith.constant dense<0.000000e+00> : vector<8x256xf32>
    %305 = tpu.matmul %304, %237, %cst_122 {dimension_numbers = #tpu.dot_dimension_numbers<[1], [0], [0], [1], [0, 0, 1, 1], [], []>} : vector<8x8xf32>, vector<8x256xf32>, vector<8x256xf32> -> vector<8x256xf32>
    %306 = arith.addf %302, %305 : vector<8x256xf32>
    %c8_123 = arith.constant 8 : index
    %c0_124 = arith.constant 0 : index
    %c0_125 = arith.constant 0 : index
    %307 = vector.load %arg3[%c8_123, %c0_124, %c0_125] : memref<9x8x8xf32, #tpu.memory_space<vmem>>, vector<1x8x8xf32>
    %308 = vector.shape_cast %307 : vector<1x8x8xf32> to vector<8x8xf32>
    %cst_126 = arith.constant dense<0.000000e+00> : vector<8x256xf32>
    %309 = tpu.matmul %308, %298, %cst_126 {dimension_numbers = #tpu.dot_dimension_numbers<[1], [0], [0], [1], [0, 0, 1, 1], [], []>} : vector<8x8xf32>, vector<8x256xf32>, vector<8x256xf32> -> vector<8x256xf32>
    %310 = arith.addf %306, %309 : vector<8x256xf32>
    %cst_127 = arith.constant dense<0.000000e+00> : vector<8x1xf32>
    %311 = tpu.matmul %310, %13, %cst_127 {dimension_numbers = #tpu.dot_dimension_numbers<[1], [0], [0], [1], [0, 0, 1, 1], [], []>} : vector<8x256xf32>, vector<256x1xf32>, vector<8x1xf32> -> vector<8x1xf32>
    %312 = arith.mulf %310, %310 : vector<8x256xf32>
    %cst_128 = arith.constant dense<0.000000e+00> : vector<8x1xf32>
    %313 = tpu.matmul %312, %13, %cst_128 {dimension_numbers = #tpu.dot_dimension_numbers<[1], [0], [0], [1], [0, 0, 1, 1], [], []>} : vector<8x256xf32>, vector<256x1xf32>, vector<8x1xf32> -> vector<8x1xf32>
    %cst_129 = arith.constant 3.906250e-03 : f32
    %314 = vector.broadcast %cst_129 : f32 to vector<8x1xf32>
    %315 = arith.mulf %311, %314 : vector<8x1xf32>
    %cst_130 = arith.constant 3.906250e-03 : f32
    %316 = vector.broadcast %cst_130 : f32 to vector<8x1xf32>
    %317 = arith.mulf %313, %316 : vector<8x1xf32>
    %318 = arith.mulf %315, %315 : vector<8x1xf32>
    %319 = arith.subf %317, %318 : vector<8x1xf32>
    %320 = vector.broadcast %315 : vector<8x1xf32> to vector<8x256xf32>
    %321 = arith.subf %310, %320 : vector<8x256xf32>
    %cst_131 = arith.constant 9.99999974E-6 : f32
    %322 = vector.broadcast %cst_131 : f32 to vector<8x1xf32>
    %323 = arith.addf %319, %322 : vector<8x1xf32>
    %324 = math.rsqrt %323 : vector<8x1xf32>
    %325 = vector.broadcast %324 : vector<8x1xf32> to vector<8x256xf32>
    %326 = arith.mulf %321, %325 : vector<8x256xf32>
    %cst_132 = arith.constant 0.000000e+00 : f32
    %327 = vector.broadcast %cst_132 : f32 to vector<8x256xf32>
    %328 = arith.maximumf %326, %327 : vector<8x256xf32>
    %329 = vector.extract_strided_slice %328 {offsets = [0, 240], sizes = [8, 16], strides = [1, 1]} : vector<8x256xf32> to vector<8x16xf32>
    %330 = vector.extract_strided_slice %328 {offsets = [0, 0], sizes = [8, 240], strides = [1, 1]} : vector<8x256xf32> to vector<8x240xf32>
    %331 = tpu.concatenate %329, %330 in 1 : vector<8x16xf32>, vector<8x240xf32> -> vector<8x256xf32>
    %332 = vector.extract_strided_slice %328 {offsets = [0, 16], sizes = [8, 240], strides = [1, 1]} : vector<8x256xf32> to vector<8x240xf32>
    %333 = vector.extract_strided_slice %328 {offsets = [0, 0], sizes = [8, 16], strides = [1, 1]} : vector<8x256xf32> to vector<8x16xf32>
    %334 = tpu.concatenate %332, %333 in 1 : vector<8x240xf32>, vector<8x16xf32> -> vector<8x256xf32>
    %335 = vector.shape_cast %3 : vector<1x256xi1> to vector<1x256xi1>
    %336 = vector.broadcast %335 : vector<1x256xi1> to vector<8x256xi1>
    %337 = arith.select %336, %334, %331 : vector<8x256xi1>, vector<8x256xf32>
    %338 = vector.shape_cast %6 : vector<1x256xi1> to vector<1x256xi1>
    %339 = vector.broadcast %338 : vector<1x256xi1> to vector<8x256xi1>
    %340 = arith.select %339, %331, %334 : vector<8x256xi1>, vector<8x256xf32>
    %cst_133 = arith.constant 0.000000e+00 : f32
    %341 = vector.broadcast %cst_133 : f32 to vector<8x256xf32>
    %342 = vector.extract_strided_slice %337 {offsets = [0, 255], sizes = [8, 1], strides = [1, 1]} : vector<8x256xf32> to vector<8x1xf32>
    %343 = vector.extract_strided_slice %337 {offsets = [0, 0], sizes = [8, 255], strides = [1, 1]} : vector<8x256xf32> to vector<8x255xf32>
    %344 = tpu.concatenate %342, %343 in 1 : vector<8x1xf32>, vector<8x255xf32> -> vector<8x256xf32>
    %345 = vector.extract_strided_slice %337 {offsets = [0, 1], sizes = [8, 255], strides = [1, 1]} : vector<8x256xf32> to vector<8x255xf32>
    %346 = vector.extract_strided_slice %337 {offsets = [0, 0], sizes = [8, 1], strides = [1, 1]} : vector<8x256xf32> to vector<8x1xf32>
    %347 = tpu.concatenate %345, %346 in 1 : vector<8x255xf32>, vector<8x1xf32> -> vector<8x256xf32>
    %348 = vector.shape_cast %9 : vector<1x256xi1> to vector<1x256xi1>
    %349 = vector.broadcast %348 : vector<1x256xi1> to vector<8x256xi1>
    %350 = arith.select %349, %347, %344 : vector<8x256xi1>, vector<8x256xf32>
    %351 = vector.shape_cast %12 : vector<1x256xi1> to vector<1x256xi1>
    %352 = vector.broadcast %351 : vector<1x256xi1> to vector<8x256xi1>
    %353 = arith.select %352, %344, %347 : vector<8x256xi1>, vector<8x256xf32>
    %c0_134 = arith.constant 0 : index
    %c0_135 = arith.constant 0 : index
    %c0_136 = arith.constant 0 : index
    %354 = vector.load %arg4[%c0_134, %c0_135, %c0_136] : memref<9x8x8xf32, #tpu.memory_space<vmem>>, vector<1x8x8xf32>
    %355 = vector.shape_cast %354 : vector<1x8x8xf32> to vector<8x8xf32>
    %cst_137 = arith.constant dense<0.000000e+00> : vector<8x256xf32>
    %356 = tpu.matmul %355, %350, %cst_137 {dimension_numbers = #tpu.dot_dimension_numbers<[1], [0], [0], [1], [0, 0, 1, 1], [], []>} : vector<8x8xf32>, vector<8x256xf32>, vector<8x256xf32> -> vector<8x256xf32>
    %357 = arith.addf %341, %356 : vector<8x256xf32>
    %c1_138 = arith.constant 1 : index
    %c0_139 = arith.constant 0 : index
    %c0_140 = arith.constant 0 : index
    %358 = vector.load %arg4[%c1_138, %c0_139, %c0_140] : memref<9x8x8xf32, #tpu.memory_space<vmem>>, vector<1x8x8xf32>
    %359 = vector.shape_cast %358 : vector<1x8x8xf32> to vector<8x8xf32>
    %cst_141 = arith.constant dense<0.000000e+00> : vector<8x256xf32>
    %360 = tpu.matmul %359, %337, %cst_141 {dimension_numbers = #tpu.dot_dimension_numbers<[1], [0], [0], [1], [0, 0, 1, 1], [], []>} : vector<8x8xf32>, vector<8x256xf32>, vector<8x256xf32> -> vector<8x256xf32>
    %361 = arith.addf %357, %360 : vector<8x256xf32>
    %c2_142 = arith.constant 2 : index
    %c0_143 = arith.constant 0 : index
    %c0_144 = arith.constant 0 : index
    %362 = vector.load %arg4[%c2_142, %c0_143, %c0_144] : memref<9x8x8xf32, #tpu.memory_space<vmem>>, vector<1x8x8xf32>
    %363 = vector.shape_cast %362 : vector<1x8x8xf32> to vector<8x8xf32>
    %cst_145 = arith.constant dense<0.000000e+00> : vector<8x256xf32>
    %364 = tpu.matmul %363, %353, %cst_145 {dimension_numbers = #tpu.dot_dimension_numbers<[1], [0], [0], [1], [0, 0, 1, 1], [], []>} : vector<8x8xf32>, vector<8x256xf32>, vector<8x256xf32> -> vector<8x256xf32>
    %365 = arith.addf %361, %364 : vector<8x256xf32>
    %366 = vector.extract_strided_slice %328 {offsets = [0, 255], sizes = [8, 1], strides = [1, 1]} : vector<8x256xf32> to vector<8x1xf32>
    %367 = vector.extract_strided_slice %328 {offsets = [0, 0], sizes = [8, 255], strides = [1, 1]} : vector<8x256xf32> to vector<8x255xf32>
    %368 = tpu.concatenate %366, %367 in 1 : vector<8x1xf32>, vector<8x255xf32> -> vector<8x256xf32>
    %369 = vector.extract_strided_slice %328 {offsets = [0, 1], sizes = [8, 255], strides = [1, 1]} : vector<8x256xf32> to vector<8x255xf32>
    %370 = vector.extract_strided_slice %328 {offsets = [0, 0], sizes = [8, 1], strides = [1, 1]} : vector<8x256xf32> to vector<8x1xf32>
    %371 = tpu.concatenate %369, %370 in 1 : vector<8x255xf32>, vector<8x1xf32> -> vector<8x256xf32>
    %372 = vector.shape_cast %9 : vector<1x256xi1> to vector<1x256xi1>
    %373 = vector.broadcast %372 : vector<1x256xi1> to vector<8x256xi1>
    %374 = arith.select %373, %371, %368 : vector<8x256xi1>, vector<8x256xf32>
    %375 = vector.shape_cast %12 : vector<1x256xi1> to vector<1x256xi1>
    %376 = vector.broadcast %375 : vector<1x256xi1> to vector<8x256xi1>
    %377 = arith.select %376, %368, %371 : vector<8x256xi1>, vector<8x256xf32>
    %c3_146 = arith.constant 3 : index
    %c0_147 = arith.constant 0 : index
    %c0_148 = arith.constant 0 : index
    %378 = vector.load %arg4[%c3_146, %c0_147, %c0_148] : memref<9x8x8xf32, #tpu.memory_space<vmem>>, vector<1x8x8xf32>
    %379 = vector.shape_cast %378 : vector<1x8x8xf32> to vector<8x8xf32>
    %cst_149 = arith.constant dense<0.000000e+00> : vector<8x256xf32>
    %380 = tpu.matmul %379, %374, %cst_149 {dimension_numbers = #tpu.dot_dimension_numbers<[1], [0], [0], [1], [0, 0, 1, 1], [], []>} : vector<8x8xf32>, vector<8x256xf32>, vector<8x256xf32> -> vector<8x256xf32>
    %381 = arith.addf %365, %380 : vector<8x256xf32>
    %c4_150 = arith.constant 4 : index
    %c0_151 = arith.constant 0 : index
    %c0_152 = arith.constant 0 : index
    %382 = vector.load %arg4[%c4_150, %c0_151, %c0_152] : memref<9x8x8xf32, #tpu.memory_space<vmem>>, vector<1x8x8xf32>
    %383 = vector.shape_cast %382 : vector<1x8x8xf32> to vector<8x8xf32>
    %cst_153 = arith.constant dense<0.000000e+00> : vector<8x256xf32>
    %384 = tpu.matmul %383, %328, %cst_153 {dimension_numbers = #tpu.dot_dimension_numbers<[1], [0], [0], [1], [0, 0, 1, 1], [], []>} : vector<8x8xf32>, vector<8x256xf32>, vector<8x256xf32> -> vector<8x256xf32>
    %385 = arith.addf %381, %384 : vector<8x256xf32>
    %c5_154 = arith.constant 5 : index
    %c0_155 = arith.constant 0 : index
    %c0_156 = arith.constant 0 : index
    %386 = vector.load %arg4[%c5_154, %c0_155, %c0_156] : memref<9x8x8xf32, #tpu.memory_space<vmem>>, vector<1x8x8xf32>
    %387 = vector.shape_cast %386 : vector<1x8x8xf32> to vector<8x8xf32>
    %cst_157 = arith.constant dense<0.000000e+00> : vector<8x256xf32>
    %388 = tpu.matmul %387, %377, %cst_157 {dimension_numbers = #tpu.dot_dimension_numbers<[1], [0], [0], [1], [0, 0, 1, 1], [], []>} : vector<8x8xf32>, vector<8x256xf32>, vector<8x256xf32> -> vector<8x256xf32>
    %389 = arith.addf %385, %388 : vector<8x256xf32>
    %390 = vector.extract_strided_slice %340 {offsets = [0, 255], sizes = [8, 1], strides = [1, 1]} : vector<8x256xf32> to vector<8x1xf32>
    %391 = vector.extract_strided_slice %340 {offsets = [0, 0], sizes = [8, 255], strides = [1, 1]} : vector<8x256xf32> to vector<8x255xf32>
    %392 = tpu.concatenate %390, %391 in 1 : vector<8x1xf32>, vector<8x255xf32> -> vector<8x256xf32>
    %393 = vector.extract_strided_slice %340 {offsets = [0, 1], sizes = [8, 255], strides = [1, 1]} : vector<8x256xf32> to vector<8x255xf32>
    %394 = vector.extract_strided_slice %340 {offsets = [0, 0], sizes = [8, 1], strides = [1, 1]} : vector<8x256xf32> to vector<8x1xf32>
    %395 = tpu.concatenate %393, %394 in 1 : vector<8x255xf32>, vector<8x1xf32> -> vector<8x256xf32>
    %396 = vector.shape_cast %9 : vector<1x256xi1> to vector<1x256xi1>
    %397 = vector.broadcast %396 : vector<1x256xi1> to vector<8x256xi1>
    %398 = arith.select %397, %395, %392 : vector<8x256xi1>, vector<8x256xf32>
    %399 = vector.shape_cast %12 : vector<1x256xi1> to vector<1x256xi1>
    %400 = vector.broadcast %399 : vector<1x256xi1> to vector<8x256xi1>
    %401 = arith.select %400, %392, %395 : vector<8x256xi1>, vector<8x256xf32>
    %c6_158 = arith.constant 6 : index
    %c0_159 = arith.constant 0 : index
    %c0_160 = arith.constant 0 : index
    %402 = vector.load %arg4[%c6_158, %c0_159, %c0_160] : memref<9x8x8xf32, #tpu.memory_space<vmem>>, vector<1x8x8xf32>
    %403 = vector.shape_cast %402 : vector<1x8x8xf32> to vector<8x8xf32>
    %cst_161 = arith.constant dense<0.000000e+00> : vector<8x256xf32>
    %404 = tpu.matmul %403, %398, %cst_161 {dimension_numbers = #tpu.dot_dimension_numbers<[1], [0], [0], [1], [0, 0, 1, 1], [], []>} : vector<8x8xf32>, vector<8x256xf32>, vector<8x256xf32> -> vector<8x256xf32>
    %405 = arith.addf %389, %404 : vector<8x256xf32>
    %c7_162 = arith.constant 7 : index
    %c0_163 = arith.constant 0 : index
    %c0_164 = arith.constant 0 : index
    %406 = vector.load %arg4[%c7_162, %c0_163, %c0_164] : memref<9x8x8xf32, #tpu.memory_space<vmem>>, vector<1x8x8xf32>
    %407 = vector.shape_cast %406 : vector<1x8x8xf32> to vector<8x8xf32>
    %cst_165 = arith.constant dense<0.000000e+00> : vector<8x256xf32>
    %408 = tpu.matmul %407, %340, %cst_165 {dimension_numbers = #tpu.dot_dimension_numbers<[1], [0], [0], [1], [0, 0, 1, 1], [], []>} : vector<8x8xf32>, vector<8x256xf32>, vector<8x256xf32> -> vector<8x256xf32>
    %409 = arith.addf %405, %408 : vector<8x256xf32>
    %c8_166 = arith.constant 8 : index
    %c0_167 = arith.constant 0 : index
    %c0_168 = arith.constant 0 : index
    %410 = vector.load %arg4[%c8_166, %c0_167, %c0_168] : memref<9x8x8xf32, #tpu.memory_space<vmem>>, vector<1x8x8xf32>
    %411 = vector.shape_cast %410 : vector<1x8x8xf32> to vector<8x8xf32>
    %cst_169 = arith.constant dense<0.000000e+00> : vector<8x256xf32>
    %412 = tpu.matmul %411, %401, %cst_169 {dimension_numbers = #tpu.dot_dimension_numbers<[1], [0], [0], [1], [0, 0, 1, 1], [], []>} : vector<8x8xf32>, vector<8x256xf32>, vector<8x256xf32> -> vector<8x256xf32>
    %413 = arith.addf %409, %412 : vector<8x256xf32>
    %cst_170 = arith.constant dense<0.000000e+00> : vector<8x1xf32>
    %414 = tpu.matmul %413, %13, %cst_170 {dimension_numbers = #tpu.dot_dimension_numbers<[1], [0], [0], [1], [0, 0, 1, 1], [], []>} : vector<8x256xf32>, vector<256x1xf32>, vector<8x1xf32> -> vector<8x1xf32>
    %415 = arith.mulf %413, %413 : vector<8x256xf32>
    %cst_171 = arith.constant dense<0.000000e+00> : vector<8x1xf32>
    %416 = tpu.matmul %415, %13, %cst_171 {dimension_numbers = #tpu.dot_dimension_numbers<[1], [0], [0], [1], [0, 0, 1, 1], [], []>} : vector<8x256xf32>, vector<256x1xf32>, vector<8x1xf32> -> vector<8x1xf32>
    %cst_172 = arith.constant 3.906250e-03 : f32
    %417 = vector.broadcast %cst_172 : f32 to vector<8x1xf32>
    %418 = arith.mulf %414, %417 : vector<8x1xf32>
    %cst_173 = arith.constant 3.906250e-03 : f32
    %419 = vector.broadcast %cst_173 : f32 to vector<8x1xf32>
    %420 = arith.mulf %416, %419 : vector<8x1xf32>
    %421 = arith.mulf %418, %418 : vector<8x1xf32>
    %422 = arith.subf %420, %421 : vector<8x1xf32>
    %423 = vector.broadcast %418 : vector<8x1xf32> to vector<8x256xf32>
    %424 = arith.subf %413, %423 : vector<8x256xf32>
    %cst_174 = arith.constant 9.99999974E-6 : f32
    %425 = vector.broadcast %cst_174 : f32 to vector<8x1xf32>
    %426 = arith.addf %422, %425 : vector<8x1xf32>
    %427 = math.rsqrt %426 : vector<8x1xf32>
    %428 = vector.broadcast %427 : vector<8x1xf32> to vector<8x256xf32>
    %429 = arith.mulf %424, %428 : vector<8x256xf32>
    %430 = arith.addf %225, %429 : vector<8x256xf32>
    %c1_175 = arith.constant 1 : index
    %c0_176 = arith.constant 0 : index
    %c0_177 = arith.constant 0 : index
    %431 = vector.load %arg5[%c1_175, %c0_176, %c0_177] : memref<2x8x256xf32, #tpu.memory_space<vmem>>, vector<1x8x256xf32>
    %432 = vector.shape_cast %431 : vector<1x8x256xf32> to vector<8x256xf32>
    %433 = vector.shape_cast %430 : vector<8x256xf32> to vector<1x8x256xf32>
    tpu.vector_store %arg5[%c1_175, %c0_176, %c0_177], %433 {strides = array<i32>} : memref<2x8x256xf32, #tpu.memory_space<vmem>>, vector<1x8x256xf32>,
    return
  }
  func.func @transform_0(%arg0: i32) -> (i32, i32) {
    %c0_i32 = arith.constant 0 : i32
    %c0_i32_0 = arith.constant 0 : i32
    %c0_i32_1 = arith.constant 0 : i32
    return %c0_i32, %c0_i32_0 : i32, i32
  }
  func.func @transform_1(%arg0: i32) -> (i32, i32, i32) {
    %c0_i32 = arith.constant 0 : i32
    %c0_i32_0 = arith.constant 0 : i32
    %c0_i32_1 = arith.constant 0 : i32
    return %arg0, %c0_i32, %c0_i32_0 : i32, i32, i32
  }
  func.func @transform_2(%arg0: i32) -> (i32, i32, i32) {
    %c0_i32 = arith.constant 0 : i32
    %c0_i32_0 = arith.constant 0 : i32
    %c0_i32_1 = arith.constant 0 : i32
    %c0_i32_2 = arith.constant 0 : i32
    return %c0_i32, %c0_i32_0, %c0_i32_1 : i32, i32, i32
  }
  func.func @transform_3(%arg0: i32) -> (i32, i32, i32) {
    %c0_i32 = arith.constant 0 : i32
    %c0_i32_0 = arith.constant 0 : i32
    %c0_i32_1 = arith.constant 0 : i32
    %c0_i32_2 = arith.constant 0 : i32
    return %c0_i32, %c0_i32_0, %c0_i32_1 : i32, i32, i32
  }
  func.func @transform_4(%arg0: i32) -> (i32, i32, i32) {
    %c0_i32 = arith.constant 0 : i32
    %c0_i32_0 = arith.constant 0 : i32
    %c0_i32_1 = arith.constant 0 : i32
    return %arg0, %c0_i32, %c0_i32_0 : i32, i32, i32
  }
}

</mosaic_0001>

<llo_original>
// kernel: tpu_custom_call.1
$region0: #{tpu_custom_call.1}
  #allocation0 [shape = 'u32[]', space=smem, size = 0x4, offset = 0x4, fixed_abs, tag = 'smem constant byte address 0x4 - core index']
  #allocation1 [shape = 'u32[144,128]{1,0:T(1,128)}', space=vmem, size = 0x12000, scoped, tag = 'internal scratch']
  %s0 = inlined_call_operand.vmem [shape: s32[4,256], index: 0, kind: input, shape index: {}]
  %s1 = inlined_call_operand.vmem [shape: f32[2,8,256], index: 1, kind: input, shape index: {}]
  %s2 = inlined_call_operand.vmem [shape: f32[9,8,8], index: 2, kind: input, shape index: {}]
  %s3 = inlined_call_operand.vmem [shape: f32[9,8,8], index: 3, kind: input, shape index: {}]
  %s4 = inlined_call_operand.hbm [shape: f32[2,8,256], index: 4, kind: output, shape index: {}]
  %s5 = sld [smem:[#allocation0]]
  $region26: #{tpu_custom_call.1} parent=0
    _
  %s7 = ssub.s32 1, %s5
  %s8 = scalar_select 0, %s7, %s5
  $region1: #{tpu_custom_call.1} parent=0
    #allocation2 [shape = 'u8[16384]{0}', space=vmem, size = 0x4000, scoped, tag = 'output window, operand 0, single buffered']
    #allocation3 [shape = 's32[1]{0}', space=sflag, size = 0x4, scoped, tag = 'scoped memory for tpu_custom_call.1']
    %9 = vsyncpa [#allocation3], 0
    // Predicated region
    $region2: #{tpu_custom_call.1} parent=1 // pred_check
      _
    $region3: #{tpu_custom_call.1} parent=1 // pred_check_branch
      %11 = sbr.rel (0) target = $region5
    $region4: #{tpu_custom_call.1} parent=1 // pred_region
      _
    $region5: #{tpu_custom_call.1} parent=1 // pred_fallthru
      _
    // Predicated region
    $region6: #{tpu_custom_call.1} parent=1 // pred_check
      _
    $region7: #{tpu_custom_call.1} parent=1 // pred_check_branch
      %13 = sbr.rel (0) target = $region9
    $region8: #{tpu_custom_call.1} parent=1 // pred_region
      _
    $region9: #{tpu_custom_call.1} parent=1 // pred_fallthru
      _
    // Predicated region
    $region10: #{tpu_custom_call.1} parent=1 // pred_check
      _
    $region11: #{tpu_custom_call.1} parent=1 // pred_check_branch
      %15 = sbr.rel (0) target = $region13
    $region12: #{tpu_custom_call.1} parent=1 // pred_region
      _
    $region13: #{tpu_custom_call.1} parent=1 // pred_fallthru
      _
    // Predicated region
    $region14: #{tpu_custom_call.1} parent=1 // pred_check
      _
    $region15: #{tpu_custom_call.1} parent=1 // pred_check_branch
      %17 = sbr.rel (0) target = $region17
    $region16: #{tpu_custom_call.1} parent=1 // pred_region
      _
    $region17: #{tpu_custom_call.1} parent=1 // pred_fallthru
      _
    %v18 = vld [vmem:[%s0] sm:$0xff]
    %vm19 = vcmp.ne.s32.totalorder %v18, 0
    %v20 = vld [vmem:[%s1] sm:$0xff]
    %v21 = vld [vmem:[%s1 + $0x8] sm:$0xff]
    %23 = vrot.lane.b32.xlu0 %v21, 16
    %v24 = vpop.permute.xlu0 %23
    %27 = vrot.lane.b32.xlu0 %v20, 16
    %v28 = vpop.permute.xlu0 %27
    %vm29 = vcmask 130048
    %v30 = vsel %vm29, %v28, %v24
    %v33 = vsel %vm29, %v24, %v28
    %34 = vrot.lane.b32.xlu0 %v20, 112
    %v35 = vpop.permute.xlu0 %34
    %36 = vrot.lane.b32.xlu0 %v21, 112
    %v37 = vpop.permute.xlu0 %36
    %vm38 = vcmask 916480
    %v39 = vsel %vm38, %v35, %v37
    %v43 = vsel %vm38, %v37, %v35
    %v44 = vsel %vm19, 1, 0
    %v45 = vlaneseq
    %v46 = vshrl.u32 %v45, 7
    %v47 = vsub.s32 0, %v46
    %v48 = vrot.slane %v44, %v47
    %v49 = vlaneseq
    %v50 = vshrl.u32 %v49, 7
    %v51 = vsub.s32 4, %v50
    %v52 = vrot.slane %v44, %v51
    %v53 = vlaneseq
    %v54 = vshrl.u32 %v53, 7
    %v55 = vsub.s32 0, %v54
    %v56 = vrot.slane %v48, %v55
    %v57 = vlaneseq
    %v58 = vshrl.u32 %v57, 7
    %v59 = vsub.s32 0, %v58
    %v60 = vrot.slane %v52, %v59
    %vm61 = vcmp.eq.s32.totalorder %v56, 1
    %vm62 = vcmp.eq.s32.totalorder %v60, 1
    %v63 = vsel %vm61, %v39, %v33
    %v64 = vsel %vm62, %v43, %v30
    %v65 = vlaneseq
    %v66 = vshrl.u32 %v65, 7
    %v67 = vsub.s32 1, %v66
    %v68 = vrot.slane %v44, %v67
    %v69 = vlaneseq
    %v70 = vshrl.u32 %v69, 7
    %v71 = vsub.s32 5, %v70
    %v72 = vrot.slane %v44, %v71
    %v73 = vlaneseq
    %v74 = vshrl.u32 %v73, 7
    %v75 = vsub.s32 1, %v74
    %v76 = vrot.slane %v68, %v75
    %v77 = vlaneseq
    %v78 = vshrl.u32 %v77, 7
    %v79 = vsub.s32 1, %v78
    %v80 = vrot.slane %v72, %v79
    %vm81 = vcmp.eq.s32.totalorder %v76, 1
    %vm82 = vcmp.eq.s32.totalorder %v80, 1
    %v83 = vsel %vm81, %v33, %v39
    %v84 = vsel %vm82, %v30, %v43
    %86 = vrot.lane.b32.xlu0 %v64, 1
    %v87 = vpop.permute.xlu0 %86
    %90 = vrot.lane.b32.xlu0 %v63, 1
    %v91 = vpop.permute.xlu0 %90
    %vm92 = vcmask 7168
    %v93 = vsel %vm92, %v91, %v87
    %v96 = vsel %vm92, %v87, %v91
    %97 = vrot.lane.b32.xlu0 %v63, 127
    %v98 = vpop.permute.xlu0 %97
    %99 = vrot.lane.b32.xlu0 %v64, 127
    %v100 = vpop.permute.xlu0 %99
    %vm101 = vcmask 1039360
    %v102 = vsel %vm101, %v98, %v100
    %v106 = vsel %vm101, %v100, %v98
    %v107 = vlaneseq
    %v108 = vshrl.u32 %v107, 7
    %v109 = vsub.s32 2, %v108
    %v110 = vrot.slane %v44, %v109
    %v111 = vlaneseq
    %v112 = vshrl.u32 %v111, 7
    %v113 = vsub.s32 6, %v112
    %v114 = vrot.slane %v44, %v113
    %v115 = vlaneseq
    %v116 = vshrl.u32 %v115, 7
    %v117 = vsub.s32 2, %v116
    %v118 = vrot.slane %v110, %v117
    %v119 = vlaneseq
    %v120 = vshrl.u32 %v119, 7
    %v121 = vsub.s32 2, %v120
    %v122 = vrot.slane %v114, %v121
    %vm123 = vcmp.eq.s32.totalorder %v118, 1
    %vm124 = vcmp.eq.s32.totalorder %v122, 1
    %v125 = vsel %vm123, %v102, %v96
    %v126 = vsel %vm124, %v106, %v93
    %v127 = vlaneseq
    %v128 = vshrl.u32 %v127, 7
    %v129 = vsub.s32 3, %v128
    %v130 = vrot.slane %v44, %v129
    %v131 = vlaneseq
    %v132 = vshrl.u32 %v131, 7
    %v133 = vsub.s32 7, %v132
    %v134 = vrot.slane %v44, %v133
    %v135 = vlaneseq
    %v136 = vshrl.u32 %v135, 7
    %v137 = vsub.s32 3, %v136
    %v138 = vrot.slane %v130, %v137
    %v139 = vlaneseq
    %v140 = vshrl.u32 %v139, 7
    %v141 = vsub.s32 3, %v140
    %v142 = vrot.slane %v134, %v141
    %vm143 = vcmp.eq.s32.totalorder %v138, 1
    %vm144 = vcmp.eq.s32.totalorder %v142, 1
    %v145 = vsel %vm143, %v96, %v102
    %v146 = vsel %vm144, %v93, %v106
    %v147 = vld [vmem:[%s2] sm:$0xff]
    %s148 = scalar_lea.vmem %s2, 8
    %v149 = vld [vmem:[%s148] sm:$0xff]
    %vm150 = vcmask 64512
    %v152 = vsel %vm150, %v149, 0
    %154 = vmatprep.subr.mxu0 %v64
    %155 = vmatpush1.msra.mxu0 %v63
    %156 = vmatprep.subr.mxu0 0.0
    %157 = vmatpush1.msra.mxu0 0.0
    %158 = vmatprep.subr.mxu0 0.0
    %159 = vmatpush1.msra.mxu0 0.0
    %160 = vmatprep.subr.mxu0 0.0
    %161 = vmatpush1.msra.mxu0 0.0
    %162 = vmatprep.subr.mxu0 0.0
    %163 = vmatpush1.msra.mxu0 0.0
    %164 = vmatprep.subr.mxu0 0.0
    %165 = vmatpush1.msra.mxu0 0.0
    %166 = vmatprep.subr.mxu0 0.0
    %167 = vmatpush1.msra.mxu0 0.0
    %168 = vmatprep.subr.mxu0 0.0
    %169 = vmatpush1.msra.mxu0 0.0
    %170 = vmatprep.subr.mxu0 0.0
    %171 = vmatpush1.msra.mxu0 0.0
    %172 = vmatprep.subr.mxu0 0.0
    %173 = vmatpush1.msra.mxu0 0.0
    %174 = vmatprep.subr.mxu0 0.0
    %175 = vmatpush1.msra.mxu0 0.0
    %176 = vmatprep.subr.mxu0 0.0
    %177 = vmatpush1.msra.mxu0 0.0
    %178 = vmatprep.subr.mxu0 0.0
    %179 = vmatpush1.msra.mxu0 0.0
    %180 = vmatprep.subr.mxu0 0.0
    %181 = vmatpush1.msra.mxu0 0.0
    %182 = vmatprep.subr.mxu0 0.0
    %183 = vmatpush1.msra.mxu0 0.0
    %184 = vmatprep.subr.mxu0 0.0
    %185 = vmatpush1.msra.mxu0 0.0
    %186 = vmatprep.subr.mxu0 0.0
    %187 = vmatpush1.msra.mxu0 0.0
    %188 = vmatprep.subr.mxu0 0.0
    %189 = vmatpush1.msra.mxu0 0.0
    %190 = vmatprep.subr.mxu0 0.0
    %191 = vmatpush1.msra.mxu0 0.0
    %192 = vmatprep.subr.mxu0 0.0
    %193 = vmatpush1.msra.mxu0 0.0
    %194 = vmatprep.subr.mxu0 0.0
    %195 = vmatpush1.msra.mxu0 0.0
    %196 = vmatprep.subr.mxu0 0.0
    %197 = vmatpush1.msra.mxu0 0.0
    %198 = vmatprep.subr.mxu0 0.0
    %199 = vmatpush1.msra.mxu0 0.0
    %200 = vmatprep.subr.mxu0 0.0
    %201 = vmatpush1.msra.mxu0 0.0
    %202 = vmatprep.subr.mxu0 0.0
    %203 = vmatpush1.msra.mxu0 0.0
    %204 = vmatprep.subr.mxu0 0.0
    %205 = vmatpush1.msra.mxu0 0.0
    %206 = vmatprep.subr.mxu0 0.0
    %207 = vmatpush1.msra.mxu0 0.0
    %208 = vmatprep.subr.mxu0 0.0
    %209 = vmatpush1.msra.mxu0 0.0
    %210 = vmatprep.subr.mxu0 0.0
    %211 = vmatpush1.msra.mxu0 0.0
    %212 = vmatprep.subr.mxu0 0.0
    %213 = vmatpush1.msra.mxu0 0.0
    %214 = vmatprep.subr.mxu0 0.0
    %215 = vmatpush1.msra.mxu0 0.0
    %216 = vmatprep.subr.mxu0 0.0
    %217 = vmatpush1.msra.mxu0 0.0
    %218 = vmatprep.mubr.f32.mxu0 0.0
    %219 = vmatmul.mubr.f32.gmra.mrb[0].mxu0 %v152
    %v220 = vpop.f32.mrb[0].mxu0
    %v221 = vadd.f32 0.0, %v220
    %v222 = vpop.f32.mrb[0].mxu0
    %v223 = vadd.f32 0.0, %v222
    %224 = vdwg.mxu0
    %v226 = vsel %vm150, %v147, 0
    %228 = vmatprep.subr.mxu0 %v126
    %229 = vmatpush1.msra.mxu0 %v125
    %230 = vmatprep.subr.mxu0 0.0
    %231 = vmatpush1.msra.mxu0 0.0
    %232 = vmatprep.subr.mxu0 0.0
    %233 = vmatpush1.msra.mxu0 0.0
    %234 = vmatprep.subr.mxu0 0.0
    %235 = vmatpush1.msra.mxu0 0.0
    %236 = vmatprep.subr.mxu0 0.0
    %237 = vmatpush1.msra.mxu0 0.0
    %238 = vmatprep.subr.mxu0 0.0
    %239 = vmatpush1.msra.mxu0 0.0
    %240 = vmatprep.subr.mxu0 0.0
    %241 = vmatpush1.msra.mxu0 0.0
    %242 = vmatprep.subr.mxu0 0.0
    %243 = vmatpush1.msra.mxu0 0.0
    %244 = vmatprep.subr.mxu0 0.0
    %245 = vmatpush1.msra.mxu0 0.0
    %246 = vmatprep.subr.mxu0 0.0
    %247 = vmatpush1.msra.mxu0 0.0
    %248 = vmatprep.subr.mxu0 0.0
    %249 = vmatpush1.msra.mxu0 0.0
    %250 = vmatprep.subr.mxu0 0.0
    %251 = vmatpush1.msra.mxu0 0.0
    %252 = vmatprep.subr.mxu0 0.0
    %253 = vmatpush1.msra.mxu0 0.0
    %254 = vmatprep.subr.mxu0 0.0
    %255 = vmatpush1.msra.mxu0 0.0
    %256 = vmatprep.subr.mxu0 0.0
    %257 = vmatpush1.msra.mxu0 0.0
    %258 = vmatprep.subr.mxu0 0.0
    %259 = vmatpush1.msra.mxu0 0.0
    %260 = vmatprep.subr.mxu0 0.0
    %261 = vmatpush1.msra.mxu0 0.0
    %262 = vmatprep.subr.mxu0 0.0
    %263 = vmatpush1.msra.mxu0 0.0
    %264 = vmatprep.subr.mxu0 0.0
    %265 = vmatpush1.msra.mxu0 0.0
    %266 = vmatprep.subr.mxu0 0.0
    %267 = vmatpush1.msra.mxu0 0.0
    %268 = vmatprep.subr.mxu0 0.0
    %269 = vmatpush1.msra.mxu0 0.0
    %270 = vmatprep.subr.mxu0 0.0
    %271 = vmatpush1.msra.mxu0 0.0
    %272 = vmatprep.subr.mxu0 0.0
    %273 = vmatpush1.msra.mxu0 0.0
    %274 = vmatprep.subr.mxu0 0.0
    %275 = vmatpush1.msra.mxu0 0.0
    %276 = vmatprep.subr.mxu0 0.0
    %277 = vmatpush1.msra.mxu0 0.0
    %278 = vmatprep.subr.mxu0 0.0
    %279 = vmatpush1.msra.mxu0 0.0
    %280 = vmatprep.subr.mxu0 0.0
    %281 = vmatpush1.msra.mxu0 0.0
    %282 = vmatprep.subr.mxu0 0.0
    %283 = vmatpush1.msra.mxu0 0.0
    %284 = vmatprep.subr.mxu0 0.0
    %285 = vmatpush1.msra.mxu0 0.0
    %286 = vmatprep.subr.mxu0 0.0
    %287 = vmatpush1.msra.mxu0 0.0
    %288 = vmatprep.subr.mxu0 0.0
    %289 = vmatpush1.msra.mxu0 0.0
    %290 = vmatprep.subr.mxu0 0.0
    %291 = vmatpush1.msra.mxu0 0.0
    %292 = vmatprep.mubr.f32.mxu0 0.0
    %293 = vmatmul.mubr.f32.gmra.mrb[0].mxu0 %v226
    %v294 = vpop.f32.mrb[0].mxu0
    %v295 = vadd.f32 %v221, %v294
    %v296 = vpop.f32.mrb[0].mxu0
    %v297 = vadd.f32 %v223, %v296
    %298 = vdwg.mxu0
    %s299 = scalar_lea.vmem %s2, 16
    %v300 = vld [vmem:[%s299] sm:$0xff]
    %v302 = vsel %vm150, %v300, 0
    %304 = vmatprep.subr.mxu0 %v146
    %305 = vmatpush1.msra.mxu0 %v145
    %306 = vmatprep.subr.mxu0 0.0
    %307 = vmatpush1.msra.mxu0 0.0
    %308 = vmatprep.subr.mxu0 0.0
    %309 = vmatpush1.msra.mxu0 0.0
    %310 = vmatprep.subr.mxu0 0.0
    %311 = vmatpush1.msra.mxu0 0.0
    %312 = vmatprep.subr.mxu0 0.0
    %313 = vmatpush1.msra.mxu0 0.0
    %314 = vmatprep.subr.mxu0 0.0
    %315 = vmatpush1.msra.mxu0 0.0
    %316 = vmatprep.subr.mxu0 0.0
    %317 = vmatpush1.msra.mxu0 0.0
    %318 = vmatprep.subr.mxu0 0.0
    %319 = vmatpush1.msra.mxu0 0.0
    %320 = vmatprep.subr.mxu0 0.0
    %321 = vmatpush1.msra.mxu0 0.0
    %322 = vmatprep.subr.mxu0 0.0
    %323 = vmatpush1.msra.mxu0 0.0
    %324 = vmatprep.subr.mxu0 0.0
    %325 = vmatpush1.msra.mxu0 0.0
    %326 = vmatprep.subr.mxu0 0.0
    %327 = vmatpush1.msra.mxu0 0.0
    %328 = vmatprep.subr.mxu0 0.0
    %329 = vmatpush1.msra.mxu0 0.0
    %330 = vmatprep.subr.mxu0 0.0
    %331 = vmatpush1.msra.mxu0 0.0
    %332 = vmatprep.subr.mxu0 0.0
    %333 = vmatpush1.msra.mxu0 0.0
    %334 = vmatprep.subr.mxu0 0.0
    %335 = vmatpush1.msra.mxu0 0.0
    %336 = vmatprep.subr.mxu0 0.0
    %337 = vmatpush1.msra.mxu0 0.0
    %338 = vmatprep.subr.mxu0 0.0
    %339 = vmatpush1.msra.mxu0 0.0
    %340 = vmatprep.subr.mxu0 0.0
    %341 = vmatpush1.msra.mxu0 0.0
    %342 = vmatprep.subr.mxu0 0.0
    %343 = vmatpush1.msra.mxu0 0.0
    %344 = vmatprep.subr.mxu0 0.0
    %345 = vmatpush1.msra.mxu0 0.0
    %346 = vmatprep.subr.mxu0 0.0
    %347 = vmatpush1.msra.mxu0 0.0
    %348 = vmatprep.subr.mxu0 0.0
    %349 = vmatpush1.msra.mxu0 0.0
    %350 = vmatprep.subr.mxu0 0.0
    %351 = vmatpush1.msra.mxu0 0.0
    %352 = vmatprep.subr.mxu0 0.0
    %353 = vmatpush1.msra.mxu0 0.0
    %354 = vmatprep.subr.mxu0 0.0
    %355 = vmatpush1.msra.mxu0 0.0
    %356 = vmatprep.subr.mxu0 0.0
    %357 = vmatpush1.msra.mxu0 0.0
    %358 = vmatprep.subr.mxu0 0.0
    %359 = vmatpush1.msra.mxu0 0.0
    %360 = vmatprep.subr.mxu0 0.0
    %361 = vmatpush1.msra.mxu0 0.0
    %362 = vmatprep.subr.mxu0 0.0
    %363 = vmatpush1.msra.mxu0 0.0
    %364 = vmatprep.subr.mxu0 0.0
    %365 = vmatpush1.msra.mxu0 0.0
    %366 = vmatprep.subr.mxu0 0.0
    %367 = vmatpush1.msra.mxu0 0.0
    %368 = vmatprep.mubr.f32.mxu0 0.0
    %369 = vmatmul.mubr.f32.gmra.mrb[0].mxu0 %v302
    %v370 = vpop.f32.mrb[0].mxu0
    %v371 = vadd.f32 0.0, %v370
    %v372 = vpop.f32.mrb[0].mxu0
    %v373 = vadd.f32 0.0, %v372
    %374 = vdwg.mxu0
    %v375 = vadd.f32 %v295, %v371
    %v376 = vadd.f32 %v297, %v373
    %377 = vrot.lane.b32.xlu0 %v21, 1
    %v378 = vpop.permute.xlu0 %377
    %380 = vrot.lane.b32.xlu0 %v20, 1
    %v381 = vpop.permute.xlu0 %380
    %v382 = vsel %vm92, %v381, %v378
    %v385 = vsel %vm92, %v378, %v381
    %386 = vrot.lane.b32.xlu0 %v20, 127
    %v387 = vpop.permute.xlu0 %386
    %388 = vrot.lane.b32.xlu0 %v21, 127
    %v389 = vpop.permute.xlu0 %388
    %v390 = vsel %vm101, %v387, %v389
    %v394 = vsel %vm101, %v389, %v387
    %v395 = vsel %vm123, %v390, %v385
    %v396 = vsel %vm124, %v394, %v382
    %v397 = vsel %vm143, %v385, %v390
    %v398 = vsel %vm144, %v382, %v394
    %s399 = scalar_lea.vmem %s2, 24
    %v400 = vld [vmem:[%s399] sm:$0xff]
    %v402 = vsel %vm150, %v400, 0
    %404 = vmatprep.subr.mxu0 %v396
    %405 = vmatpush1.msra.mxu0 %v395
    %406 = vmatprep.subr.mxu0 0.0
    %407 = vmatpush1.msra.mxu0 0.0
    %408 = vmatprep.subr.mxu0 0.0
    %409 = vmatpush1.msra.mxu0 0.0
    %410 = vmatprep.subr.mxu0 0.0
    %411 = vmatpush1.msra.mxu0 0.0
    %412 = vmatprep.subr.mxu0 0.0
    %413 = vmatpush1.msra.mxu0 0.0
    %414 = vmatprep.subr.mxu0 0.0
    %415 = vmatpush1.msra.mxu0 0.0
    %416 = vmatprep.subr.mxu0 0.0
    %417 = vmatpush1.msra.mxu0 0.0
    %418 = vmatprep.subr.mxu0 0.0
    %419 = vmatpush1.msra.mxu0 0.0
    %420 = vmatprep.subr.mxu0 0.0
    %421 = vmatpush1.msra.mxu0 0.0
    %422 = vmatprep.subr.mxu0 0.0
    %423 = vmatpush1.msra.mxu0 0.0
    %424 = vmatprep.subr.mxu0 0.0
    %425 = vmatpush1.msra.mxu0 0.0
    %426 = vmatprep.subr.mxu0 0.0
    %427 = vmatpush1.msra.mxu0 0.0
    %428 = vmatprep.subr.mxu0 0.0
    %429 = vmatpush1.msra.mxu0 0.0
    %430 = vmatprep.subr.mxu0 0.0
    %431 = vmatpush1.msra.mxu0 0.0
    %432 = vmatprep.subr.mxu0 0.0
    %433 = vmatpush1.msra.mxu0 0.0
    %434 = vmatprep.subr.mxu0 0.0
    %435 = vmatpush1.msra.mxu0 0.0
    %436 = vmatprep.subr.mxu0 0.0
    %437 = vmatpush1.msra.mxu0 0.0
    %438 = vmatprep.subr.mxu0 0.0
    %439 = vmatpush1.msra.mxu0 0.0
    %440 = vmatprep.subr.mxu0 0.0
    %441 = vmatpush1.msra.mxu0 0.0
    %442 = vmatprep.subr.mxu0 0.0
    %443 = vmatpush1.msra.mxu0 0.0
    %444 = vmatprep.subr.mxu0 0.0
    %445 = vmatpush1.msra.mxu0 0.0
    %446 = vmatprep.subr.mxu0 0.0
    %447 = vmatpush1.msra.mxu0 0.0
    %448 = vmatprep.subr.mxu0 0.0
    %449 = vmatpush1.msra.mxu0 0.0
    %450 = vmatprep.subr.mxu0 0.0
    %451 = vmatpush1.msra.mxu0 0.0
    %452 = vmatprep.subr.mxu0 0.0
    %453 = vmatpush1.msra.mxu0 0.0
    %454 = vmatprep.subr.mxu0 0.0
    %455 = vmatpush1.msra.mxu0 0.0
    %456 = vmatprep.subr.mxu0 0.0
    %457 = vmatpush1.msra.mxu0 0.0
    %458 = vmatprep.subr.mxu0 0.0
    %459 = vmatpush1.msra.mxu0 0.0
    %460 = vmatprep.subr.mxu0 0.0
    %461 = vmatpush1.msra.mxu0 0.0
    %462 = vmatprep.subr.mxu0 0.0
    %463 = vmatpush1.msra.mxu0 0.0
    %464 = vmatprep.subr.mxu0 0.0
    %465 = vmatpush1.msra.mxu0 0.0
    %466 = vmatprep.subr.mxu0 0.0
    %467 = vmatpush1.msra.mxu0 0.0
    %468 = vmatprep.mubr.f32.mxu0 0.0
    %469 = vmatmul.mubr.f32.gmra.mrb[0].mxu0 %v402
    %v470 = vpop.f32.mrb[0].mxu0
    %v471 = vadd.f32 0.0, %v470
    %v472 = vpop.f32.mrb[0].mxu0
    %v473 = vadd.f32 0.0, %v472
    %474 = vdwg.mxu0
    %v475 = vadd.f32 %v375, %v471
    %v476 = vadd.f32 %v376, %v473
    %s477 = scalar_lea.vmem %s2, 32
    %v478 = vld [vmem:[%s477] sm:$0xff]
    %v480 = vsel %vm150, %v478, 0
    %482 = vmatprep.subr.mxu0 %v21
    %483 = vmatpush1.msra.mxu0 %v20
    %484 = vmatprep.subr.mxu0 0.0
    %485 = vmatpush1.msra.mxu0 0.0
    %486 = vmatprep.subr.mxu0 0.0
    %487 = vmatpush1.msra.mxu0 0.0
    %488 = vmatprep.subr.mxu0 0.0
    %489 = vmatpush1.msra.mxu0 0.0
    %490 = vmatprep.subr.mxu0 0.0
    %491 = vmatpush1.msra.mxu0 0.0
    %492 = vmatprep.subr.mxu0 0.0
    %493 = vmatpush1.msra.mxu0 0.0
    %494 = vmatprep.subr.mxu0 0.0
    %495 = vmatpush1.msra.mxu0 0.0
    %496 = vmatprep.subr.mxu0 0.0
    %497 = vmatpush1.msra.mxu0 0.0
    %498 = vmatprep.subr.mxu0 0.0
    %499 = vmatpush1.msra.mxu0 0.0
    %500 = vmatprep.subr.mxu0 0.0
    %501 = vmatpush1.msra.mxu0 0.0
    %502 = vmatprep.subr.mxu0 0.0
    %503 = vmatpush1.msra.mxu0 0.0
    %504 = vmatprep.subr.mxu0 0.0
    %505 = vmatpush1.msra.mxu0 0.0
    %506 = vmatprep.subr.mxu0 0.0
    %507 = vmatpush1.msra.mxu0 0.0
    %508 = vmatprep.subr.mxu0 0.0
    %509 = vmatpush1.msra.mxu0 0.0
    %510 = vmatprep.subr.mxu0 0.0
    %511 = vmatpush1.msra.mxu0 0.0
    %512 = vmatprep.subr.mxu0 0.0
    %513 = vmatpush1.msra.mxu0 0.0
    %514 = vmatprep.subr.mxu0 0.0
    %515 = vmatpush1.msra.mxu0 0.0
    %516 = vmatprep.subr.mxu0 0.0
    %517 = vmatpush1.msra.mxu0 0.0
    %518 = vmatprep.subr.mxu0 0.0
    %519 = vmatpush1.msra.mxu0 0.0
    %520 = vmatprep.subr.mxu0 0.0
    %521 = vmatpush1.msra.mxu0 0.0
    %522 = vmatprep.subr.mxu0 0.0
    %523 = vmatpush1.msra.mxu0 0.0
    %524 = vmatprep.subr.mxu0 0.0
    %525 = vmatpush1.msra.mxu0 0.0
    %526 = vmatprep.subr.mxu0 0.0
    %527 = vmatpush1.msra.mxu0 0.0
    %528 = vmatprep.subr.mxu0 0.0
    %529 = vmatpush1.msra.mxu0 0.0
    %530 = vmatprep.subr.mxu0 0.0
    %531 = vmatpush1.msra.mxu0 0.0
    %532 = vmatprep.subr.mxu0 0.0
    %533 = vmatpush1.msra.mxu0 0.0
    %534 = vmatprep.subr.mxu0 0.0
    %535 = vmatpush1.msra.mxu0 0.0
    %536 = vmatprep.subr.mxu0 0.0
    %537 = vmatpush1.msra.mxu0 0.0
    %538 = vmatprep.subr.mxu0 0.0
    %539 = vmatpush1.msra.mxu0 0.0
    %540 = vmatprep.subr.mxu0 0.0
    %541 = vmatpush1.msra.mxu0 0.0
    %542 = vmatprep.subr.mxu0 0.0
    %543 = vmatpush1.msra.mxu0 0.0
    %544 = vmatprep.subr.mxu0 0.0
    %545 = vmatpush1.msra.mxu0 0.0
    %546 = vmatprep.mubr.f32.mxu0 0.0
    %547 = vmatmul.mubr.f32.gmra.mrb[0].mxu0 %v480
    %v548 = vpop.f32.mrb[0].mxu0
    %v549 = vadd.f32 0.0, %v548
    %v550 = vpop.f32.mrb[0].mxu0
    %v551 = vadd.f32 0.0, %v550
    %552 = vdwg.mxu0
    %v553 = vadd.f32 %v475, %v549
    %v554 = vadd.f32 %v476, %v551
    %s555 = scalar_lea.vmem %s2, 40
    %v556 = vld [vmem:[%s555] sm:$0xff]
    %v558 = vsel %vm150, %v556, 0
    %560 = vmatprep.subr.mxu0 %v398
    %561 = vmatpush1.msra.mxu0 %v397
    %562 = vmatprep.subr.mxu0 0.0
    %563 = vmatpush1.msra.mxu0 0.0
    %564 = vmatprep.subr.mxu0 0.0
    %565 = vmatpush1.msra.mxu0 0.0
    %566 = vmatprep.subr.mxu0 0.0
    %567 = vmatpush1.msra.mxu0 0.0
    %568 = vmatprep.subr.mxu0 0.0
    %569 = vmatpush1.msra.mxu0 0.0
    %570 = vmatprep.subr.mxu0 0.0
    %571 = vmatpush1.msra.mxu0 0.0
    %572 = vmatprep.subr.mxu0 0.0
    %573 = vmatpush1.msra.mxu0 0.0
    %574 = vmatprep.subr.mxu0 0.0
    %575 = vmatpush1.msra.mxu0 0.0
    %576 = vmatprep.subr.mxu0 0.0
    %577 = vmatpush1.msra.mxu0 0.0
    %578 = vmatprep.subr.mxu0 0.0
    %579 = vmatpush1.msra.mxu0 0.0
    %580 = vmatprep.subr.mxu0 0.0
    %581 = vmatpush1.msra.mxu0 0.0
    %582 = vmatprep.subr.mxu0 0.0
    %583 = vmatpush1.msra.mxu0 0.0
    %584 = vmatprep.subr.mxu0 0.0
    %585 = vmatpush1.msra.mxu0 0.0
    %586 = vmatprep.subr.mxu0 0.0
    %587 = vmatpush1.msra.mxu0 0.0
    %588 = vmatprep.subr.mxu0 0.0
    %589 = vmatpush1.msra.mxu0 0.0
    %590 = vmatprep.subr.mxu0 0.0
    %591 = vmatpush1.msra.mxu0 0.0
    %592 = vmatprep.subr.mxu0 0.0
    %593 = vmatpush1.msra.mxu0 0.0
    %594 = vmatprep.subr.mxu0 0.0
    %595 = vmatpush1.msra.mxu0 0.0
    %596 = vmatprep.subr.mxu0 0.0
    %597 = vmatpush1.msra.mxu0 0.0
    %598 = vmatprep.subr.mxu0 0.0
    %599 = vmatpush1.msra.mxu0 0.0
    %600 = vmatprep.subr.mxu0 0.0
    %601 = vmatpush1.msra.mxu0 0.0
    %602 = vmatprep.subr.mxu0 0.0
    %603 = vmatpush1.msra.mxu0 0.0
    %604 = vmatprep.subr.mxu0 0.0
    %605 = vmatpush1.msra.mxu0 0.0
    %606 = vmatprep.subr.mxu0 0.0
    %607 = vmatpush1.msra.mxu0 0.0
    %608 = vmatprep.subr.mxu0 0.0
    %609 = vmatpush1.msra.mxu0 0.0
    %610 = vmatprep.subr.mxu0 0.0
    %611 = vmatpush1.msra.mxu0 0.0
    %612 = vmatprep.subr.mxu0 0.0
    %613 = vmatpush1.msra.mxu0 0.0
    %614 = vmatprep.subr.mxu0 0.0
    %615 = vmatpush1.msra.mxu0 0.0
    %616 = vmatprep.subr.mxu0 0.0
    %617 = vmatpush1.msra.mxu0 0.0
    %618 = vmatprep.subr.mxu0 0.0
    %619 = vmatpush1.msra.mxu0 0.0
    %620 = vmatprep.subr.mxu0 0.0
    %621 = vmatpush1.msra.mxu0 0.0
    %622 = vmatprep.subr.mxu0 0.0
    %623 = vmatpush1.msra.mxu0 0.0
    %624 = vmatprep.mubr.f32.mxu0 0.0
    %625 = vmatmul.mubr.f32.gmra.mrb[0].mxu0 %v558
    %v626 = vpop.f32.mrb[0].mxu0
    %v627 = vadd.f32 0.0, %v626
    %v628 = vpop.f32.mrb[0].mxu0
    %v629 = vadd.f32 0.0, %v628
    %630 = vdwg.mxu0
    %v631 = vadd.f32 %v553, %v627
    %v632 = vadd.f32 %v554, %v629
    %634 = vrot.lane.b32.xlu0 %v84, 1
    %v635 = vpop.permute.xlu0 %634
    %638 = vrot.lane.b32.xlu0 %v83, 1
    %v639 = vpop.permute.xlu0 %638
    %v640 = vsel %vm92, %v639, %v635
    %v643 = vsel %vm92, %v635, %v639
    %644 = vrot.lane.b32.xlu0 %v83, 127
    %v645 = vpop.permute.xlu0 %644
    %646 = vrot.lane.b32.xlu0 %v84, 127
    %v647 = vpop.permute.xlu0 %646
    %v648 = vsel %vm101, %v645, %v647
    %v652 = vsel %vm101, %v647, %v645
    %v653 = vsel %vm123, %v648, %v643
    %v654 = vsel %vm124, %v652, %v640
    %v655 = vsel %vm143, %v643, %v648
    %v656 = vsel %vm144, %v640, %v652
    %s657 = scalar_lea.vmem %s2, 48
    %v658 = vld [vmem:[%s657] sm:$0xff]
    %v660 = vsel %vm150, %v658, 0
    %662 = vmatprep.subr.mxu0 %v654
    %663 = vmatpush1.msra.mxu0 %v653
    %664 = vmatprep.subr.mxu0 0.0
    %665 = vmatpush1.msra.mxu0 0.0
    %666 = vmatprep.subr.mxu0 0.0
    %667 = vmatpush1.msra.mxu0 0.0
    %668 = vmatprep.subr.mxu0 0.0
    %669 = vmatpush1.msra.mxu0 0.0
    %670 = vmatprep.subr.mxu0 0.0
    %671 = vmatpush1.msra.mxu0 0.0
    %672 = vmatprep.subr.mxu0 0.0
    %673 = vmatpush1.msra.mxu0 0.0
    %674 = vmatprep.subr.mxu0 0.0
    %675 = vmatpush1.msra.mxu0 0.0
    %676 = vmatprep.subr.mxu0 0.0
    %677 = vmatpush1.msra.mxu0 0.0
    %678 = vmatprep.subr.mxu0 0.0
    %679 = vmatpush1.msra.mxu0 0.0
    %680 = vmatprep.subr.mxu0 0.0
    %681 = vmatpush1.msra.mxu0 0.0
    %682 = vmatprep.subr.mxu0 0.0
    %683 = vmatpush1.msra.mxu0 0.0
    %684 = vmatprep.subr.mxu0 0.0
    %685 = vmatpush1.msra.mxu0 0.0
    %686 = vmatprep.subr.mxu0 0.0
    %687 = vmatpush1.msra.mxu0 0.0
    %688 = vmatprep.subr.mxu0 0.0
    %689 = vmatpush1.msra.mxu0 0.0
    %690 = vmatprep.subr.mxu0 0.0
    %691 = vmatpush1.msra.mxu0 0.0
    %692 = vmatprep.subr.mxu0 0.0
    %693 = vmatpush1.msra.mxu0 0.0
    %694 = vmatprep.subr.mxu0 0.0
    %695 = vmatpush1.msra.mxu0 0.0
    %696 = vmatprep.subr.mxu0 0.0
    %697 = vmatpush1.msra.mxu0 0.0
    %698 = vmatprep.subr.mxu0 0.0
    %699 = vmatpush1.msra.mxu0 0.0
    %700 = vmatprep.subr.mxu0 0.0
    %701 = vmatpush1.msra.mxu0 0.0
    %702 = vmatprep.subr.mxu0 0.0
    %703 = vmatpush1.msra.mxu0 0.0
    %704 = vmatprep.subr.mxu0 0.0
    %705 = vmatpush1.msra.mxu0 0.0
    %706 = vmatprep.subr.mxu0 0.0
    %707 = vmatpush1.msra.mxu0 0.0
    %708 = vmatprep.subr.mxu0 0.0
    %709 = vmatpush1.msra.mxu0 0.0
    %710 = vmatprep.subr.mxu0 0.0
    %711 = vmatpush1.msra.mxu0 0.0
    %712 = vmatprep.subr.mxu0 0.0
    %713 = vmatpush1.msra.mxu0 0.0
    %714 = vmatprep.subr.mxu0 0.0
    %715 = vmatpush1.msra.mxu0 0.0
    %716 = vmatprep.subr.mxu0 0.0
    %717 = vmatpush1.msra.mxu0 0.0
    %718 = vmatprep.subr.mxu0 0.0
    %719 = vmatpush1.msra.mxu0 0.0
    %720 = vmatprep.subr.mxu0 0.0
    %721 = vmatpush1.msra.mxu0 0.0
    %722 = vmatprep.subr.mxu0 0.0
    %723 = vmatpush1.msra.mxu0 0.0
    %724 = vmatprep.subr.mxu0 0.0
    %725 = vmatpush1.msra.mxu0 0.0
    %726 = vmatprep.mubr.f32.mxu0 0.0
    %727 = vmatmul.mubr.f32.gmra.mrb[0].mxu0 %v660
    %v728 = vpop.f32.mrb[0].mxu0
    %v729 = vadd.f32 0.0, %v728
    %v730 = vpop.f32.mrb[0].mxu0
    %v731 = vadd.f32 0.0, %v730
    %732 = vdwg.mxu0
    %v733 = vadd.f32 %v631, %v729
    %v734 = vadd.f32 %v632, %v731
    %s735 = scalar_lea.vmem %s2, 56
    %v736 = vld [vmem:[%s735] sm:$0xff]
    %v738 = vsel %vm150, %v736, 0
    %740 = vmatprep.subr.mxu0 %v84
    %741 = vmatpush1.msra.mxu0 %v83
    %742 = vmatprep.subr.mxu0 0.0
    %743 = vmatpush1.msra.mxu0 0.0
    %744 = vmatprep.subr.mxu0 0.0
    %745 = vmatpush1.msra.mxu0 0.0
    %746 = vmatprep.subr.mxu0 0.0
    %747 = vmatpush1.msra.mxu0 0.0
    %748 = vmatprep.subr.mxu0 0.0
    %749 = vmatpush1.msra.mxu0 0.0
    %750 = vmatprep.subr.mxu0 0.0
    %751 = vmatpush1.msra.mxu0 0.0
    %752 = vmatprep.subr.mxu0 0.0
    %753 = vmatpush1.msra.mxu0 0.0
    %754 = vmatprep.subr.mxu0 0.0
    %755 = vmatpush1.msra.mxu0 0.0
    %756 = vmatprep.subr.mxu0 0.0
    %757 = vmatpush1.msra.mxu0 0.0
    %758 = vmatprep.subr.mxu0 0.0
    %759 = vmatpush1.msra.mxu0 0.0
    %760 = vmatprep.subr.mxu0 0.0
    %761 = vmatpush1.msra.mxu0 0.0
    %762 = vmatprep.subr.mxu0 0.0
    %763 = vmatpush1.msra.mxu0 0.0
    %764 = vmatprep.subr.mxu0 0.0
    %765 = vmatpush1.msra.mxu0 0.0
    %766 = vmatprep.subr.mxu0 0.0
    %767 = vmatpush1.msra.mxu0 0.0
    %768 = vmatprep.subr.mxu0 0.0
    %769 = vmatpush1.msra.mxu0 0.0
    %770 = vmatprep.subr.mxu0 0.0
    %771 = vmatpush1.msra.mxu0 0.0
    %772 = vmatprep.subr.mxu0 0.0
    %773 = vmatpush1.msra.mxu0 0.0
    %774 = vmatprep.subr.mxu0 0.0
    %775 = vmatpush1.msra.mxu0 0.0
    %776 = vmatprep.subr.mxu0 0.0
    %777 = vmatpush1.msra.mxu0 0.0
    %778 = vmatprep.subr.mxu0 0.0
    %779 = vmatpush1.msra.mxu0 0.0
    %780 = vmatprep.subr.mxu0 0.0
    %781 = vmatpush1.msra.mxu0 0.0
    %782 = vmatprep.subr.mxu0 0.0
    %783 = vmatpush1.msra.mxu0 0.0
    %784 = vmatprep.subr.mxu0 0.0
    %785 = vmatpush1.msra.mxu0 0.0
    %786 = vmatprep.subr.mxu0 0.0
    %787 = vmatpush1.msra.mxu0 0.0
    %788 = vmatprep.subr.mxu0 0.0
    %789 = vmatpush1.msra.mxu0 0.0
    %790 = vmatprep.subr.mxu0 0.0
    %791 = vmatpush1.msra.mxu0 0.0
    %792 = vmatprep.subr.mxu0 0.0
    %793 = vmatpush1.msra.mxu0 0.0
    %794 = vmatprep.subr.mxu0 0.0
    %795 = vmatpush1.msra.mxu0 0.0
    %796 = vmatprep.subr.mxu0 0.0
    %797 = vmatpush1.msra.mxu0 0.0
    %798 = vmatprep.subr.mxu0 0.0
    %799 = vmatpush1.msra.mxu0 0.0
    %800 = vmatprep.subr.mxu0 0.0
    %801 = vmatpush1.msra.mxu0 0.0
    %802 = vmatprep.subr.mxu0 0.0
    %803 = vmatpush1.msra.mxu0 0.0
    %804 = vmatprep.mubr.f32.mxu0 0.0
    %805 = vmatmul.mubr.f32.gmra.mrb[0].mxu0 %v738
    %v806 = vpop.f32.mrb[0].mxu0
    %v807 = vadd.f32 0.0, %v806
    %v808 = vpop.f32.mrb[0].mxu0
    %v809 = vadd.f32 0.0, %v808
    %810 = vdwg.mxu0
    %v811 = vadd.f32 %v733, %v807
    %v812 = vadd.f32 %v734, %v809
    %s813 = scalar_lea.vmem %s2, 64
    %v814 = vld [vmem:[%s813] sm:$0xff]
    %v816 = vsel %vm150, %v814, 0
    %818 = vmatprep.subr.mxu0 %v656
    %819 = vmatpush1.msra.mxu0 %v655
    %820 = vmatprep.subr.mxu0 0.0
    %821 = vmatpush1.msra.mxu0 0.0
    %822 = vmatprep.subr.mxu0 0.0
    %823 = vmatpush1.msra.mxu0 0.0
    %824 = vmatprep.subr.mxu0 0.0
    %825 = vmatpush1.msra.mxu0 0.0
    %826 = vmatprep.subr.mxu0 0.0
    %827 = vmatpush1.msra.mxu0 0.0
    %828 = vmatprep.subr.mxu0 0.0
    %829 = vmatpush1.msra.mxu0 0.0
    %830 = vmatprep.subr.mxu0 0.0
    %831 = vmatpush1.msra.mxu0 0.0
    %832 = vmatprep.subr.mxu0 0.0
    %833 = vmatpush1.msra.mxu0 0.0
    %834 = vmatprep.subr.mxu0 0.0
    %835 = vmatpush1.msra.mxu0 0.0
    %836 = vmatprep.subr.mxu0 0.0
    %837 = vmatpush1.msra.mxu0 0.0
    %838 = vmatprep.subr.mxu0 0.0
    %839 = vmatpush1.msra.mxu0 0.0
    %840 = vmatprep.subr.mxu0 0.0
    %841 = vmatpush1.msra.mxu0 0.0
    %842 = vmatprep.subr.mxu0 0.0
    %843 = vmatpush1.msra.mxu0 0.0
    %844 = vmatprep.subr.mxu0 0.0
    %845 = vmatpush1.msra.mxu0 0.0
    %846 = vmatprep.subr.mxu0 0.0
    %847 = vmatpush1.msra.mxu0 0.0
    %848 = vmatprep.subr.mxu0 0.0
    %849 = vmatpush1.msra.mxu0 0.0
    %850 = vmatprep.subr.mxu0 0.0
    %851 = vmatpush1.msra.mxu0 0.0
    %852 = vmatprep.subr.mxu0 0.0
    %853 = vmatpush1.msra.mxu0 0.0
    %854 = vmatprep.subr.mxu0 0.0
    %855 = vmatpush1.msra.mxu0 0.0
    %856 = vmatprep.subr.mxu0 0.0
    %857 = vmatpush1.msra.mxu0 0.0
    %858 = vmatprep.subr.mxu0 0.0
    %859 = vmatpush1.msra.mxu0 0.0
    %860 = vmatprep.subr.mxu0 0.0
    %861 = vmatpush1.msra.mxu0 0.0
    %862 = vmatprep.subr.mxu0 0.0
    %863 = vmatpush1.msra.mxu0 0.0
    %864 = vmatprep.subr.mxu0 0.0
    %865 = vmatpush1.msra.mxu0 0.0
    %866 = vmatprep.subr.mxu0 0.0
    %867 = vmatpush1.msra.mxu0 0.0
    %868 = vmatprep.subr.mxu0 0.0
    %869 = vmatpush1.msra.mxu0 0.0
    %870 = vmatprep.subr.mxu0 0.0
    %871 = vmatpush1.msra.mxu0 0.0
    %872 = vmatprep.subr.mxu0 0.0
    %873 = vmatpush1.msra.mxu0 0.0
    %874 = vmatprep.subr.mxu0 0.0
    %875 = vmatpush1.msra.mxu0 0.0
    %876 = vmatprep.subr.mxu0 0.0
    %877 = vmatpush1.msra.mxu0 0.0
    %878 = vmatprep.subr.mxu0 0.0
    %879 = vmatpush1.msra.mxu0 0.0
    %880 = vmatprep.subr.mxu0 0.0
    %881 = vmatpush1.msra.mxu0 0.0
    %882 = vmatprep.mubr.f32.mxu0 0.0
    %883 = vmatmul.mubr.f32.gmra.mrb[0].mxu0 %v816
    %v884 = vpop.f32.mrb[0].mxu0
    %v885 = vadd.f32 0.0, %v884
    %v886 = vpop.f32.mrb[0].mxu0
    %v887 = vadd.f32 0.0, %v886
    %888 = vdwg.mxu0
    %v889 = vadd.f32 %v811, %v885
    %v890 = vadd.f32 %v812, %v887
    %891 = vmatprep.subr.mxu0 0.0
    %892 = vmatpush1.msra.mxu0 1.0
    %893 = vmatprep.subr.mxu0 0.0
    %894 = vmatpush1.msra.mxu0 1.0
    %895 = vmatprep.subr.mxu0 0.0
    %896 = vmatpush1.msra.mxu0 1.0
    %897 = vmatprep.subr.mxu0 0.0
    %898 = vmatpush1.msra.mxu0 1.0
    %899 = vmatprep.subr.mxu0 0.0
    %900 = vmatpush1.msra.mxu0 1.0
    %901 = vmatprep.subr.mxu0 0.0
    %902 = vmatpush1.msra.mxu0 1.0
    %903 = vmatprep.subr.mxu0 0.0
    %904 = vmatpush1.msra.mxu0 1.0
    %905 = vmatprep.subr.mxu0 0.0
    %906 = vmatpush1.msra.mxu0 1.0
    %907 = vmatprep.subr.mxu0 0.0
    %908 = vmatpush1.msra.mxu0 1.0
    %909 = vmatprep.subr.mxu0 0.0
    %910 = vmatpush1.msra.mxu0 1.0
    %911 = vmatprep.subr.mxu0 0.0
    %912 = vmatpush1.msra.mxu0 1.0
    %913 = vmatprep.subr.mxu0 0.0
    %914 = vmatpush1.msra.mxu0 1.0
    %915 = vmatprep.subr.mxu0 0.0
    %916 = vmatpush1.msra.mxu0 1.0
    %917 = vmatprep.subr.mxu0 0.0
    %918 = vmatpush1.msra.mxu0 1.0
    %919 = vmatprep.subr.mxu0 0.0
    %920 = vmatpush1.msra.mxu0 1.0
    %921 = vmatprep.subr.mxu0 0.0
    %922 = vmatpush1.msra.mxu0 1.0
    %923 = vmatprep.subr.mxu0 0.0
    %924 = vmatpush1.msra.mxu0 1.0
    %925 = vmatprep.subr.mxu0 0.0
    %926 = vmatpush1.msra.mxu0 1.0
    %927 = vmatprep.subr.mxu0 0.0
    %928 = vmatpush1.msra.mxu0 1.0
    %929 = vmatprep.subr.mxu0 0.0
    %930 = vmatpush1.msra.mxu0 1.0
    %931 = vmatprep.subr.mxu0 0.0
    %932 = vmatpush1.msra.mxu0 1.0
    %933 = vmatprep.subr.mxu0 0.0
    %934 = vmatpush1.msra.mxu0 1.0
    %935 = vmatprep.subr.mxu0 0.0
    %936 = vmatpush1.msra.mxu0 1.0
    %937 = vmatprep.subr.mxu0 0.0
    %938 = vmatpush1.msra.mxu0 1.0
    %939 = vmatprep.subr.mxu0 0.0
    %940 = vmatpush1.msra.mxu0 1.0
    %941 = vmatprep.subr.mxu0 0.0
    %942 = vmatpush1.msra.mxu0 1.0
    %943 = vmatprep.subr.mxu0 0.0
    %944 = vmatpush1.msra.mxu0 1.0
    %945 = vmatprep.subr.mxu0 0.0
    %946 = vmatpush1.msra.mxu0 1.0
    %947 = vmatprep.subr.mxu0 0.0
    %948 = vmatpush1.msra.mxu0 1.0
    %949 = vmatprep.subr.mxu0 0.0
    %950 = vmatpush1.msra.mxu0 1.0
    %951 = vmatprep.subr.mxu0 0.0
    %952 = vmatpush1.msra.mxu0 1.0
    %953 = vmatprep.subr.mxu0 0.0
    %954 = vmatpush1.msra.mxu0 1.0
    %955 = vmatprep.mubr.f32.mxu0 %v890
    %956 = vmatmul.mubr.f32.gmra.mrb[0].mxu0 %v889
    %v957 = vpop.f32.mrb[0].mxu0
    %v958 = vadd.f32 0.0, %v957
    %v959 = vpop.f32.mrb[0].mxu0
    %960 = vdwg.mxu0
    %v961 = vmul.f32 %v889, %v889
    %v962 = vmul.f32 %v890, %v890
    %963 = vmatprep.subr.mxu0 0.0
    %964 = vmatpush1.msra.mxu0 1.0
    %965 = vmatprep.subr.mxu0 0.0
    %966 = vmatpush1.msra.mxu0 1.0
    %967 = vmatprep.subr.mxu0 0.0
    %968 = vmatpush1.msra.mxu0 1.0
    %969 = vmatprep.subr.mxu0 0.0
    %970 = vmatpush1.msra.mxu0 1.0
    %971 = vmatprep.subr.mxu0 0.0
    %972 = vmatpush1.msra.mxu0 1.0
    %973 = vmatprep.subr.mxu0 0.0
    %974 = vmatpush1.msra.mxu0 1.0
    %975 = vmatprep.subr.mxu0 0.0
    %976 = vmatpush1.msra.mxu0 1.0
    %977 = vmatprep.subr.mxu0 0.0
    %978 = vmatpush1.msra.mxu0 1.0
    %979 = vmatprep.subr.mxu0 0.0
    %980 = vmatpush1.msra.mxu0 1.0
    %981 = vmatprep.subr.mxu0 0.0
    %982 = vmatpush1.msra.mxu0 1.0
    %983 = vmatprep.subr.mxu0 0.0
    %984 = vmatpush1.msra.mxu0 1.0
    %985 = vmatprep.subr.mxu0 0.0
    %986 = vmatpush1.msra.mxu0 1.0
    %987 = vmatprep.subr.mxu0 0.0
    %988 = vmatpush1.msra.mxu0 1.0
    %989 = vmatprep.subr.mxu0 0.0
    %990 = vmatpush1.msra.mxu0 1.0
    %991 = vmatprep.subr.mxu0 0.0
    %992 = vmatpush1.msra.mxu0 1.0
    %993 = vmatprep.subr.mxu0 0.0
    %994 = vmatpush1.msra.mxu0 1.0
    %995 = vmatprep.subr.mxu0 0.0
    %996 = vmatpush1.msra.mxu0 1.0
    %997 = vmatprep.subr.mxu0 0.0
    %998 = vmatpush1.msra.mxu0 1.0
    %999 = vmatprep.subr.mxu0 0.0
    %1000 = vmatpush1.msra.mxu0 1.0
    %1001 = vmatprep.subr.mxu0 0.0
    %1002 = vmatpush1.msra.mxu0 1.0
    %1003 = vmatprep.subr.mxu0 0.0
    %1004 = vmatpush1.msra.mxu0 1.0
    %1005 = vmatprep.subr.mxu0 0.0
    %1006 = vmatpush1.msra.mxu0 1.0
    %1007 = vmatprep.subr.mxu0 0.0
    %1008 = vmatpush1.msra.mxu0 1.0
    %1009 = vmatprep.subr.mxu0 0.0
    %1010 = vmatpush1.msra.mxu0 1.0
    %1011 = vmatprep.subr.mxu0 0.0
    %1012 = vmatpush1.msra.mxu0 1.0
    %1013 = vmatprep.subr.mxu0 0.0
    %1014 = vmatpush1.msra.mxu0 1.0
    %1015 = vmatprep.subr.mxu0 0.0
    %1016 = vmatpush1.msra.mxu0 1.0
    %1017 = vmatprep.subr.mxu0 0.0
    %1018 = vmatpush1.msra.mxu0 1.0
    %1019 = vmatprep.subr.mxu0 0.0
    %1020 = vmatpush1.msra.mxu0 1.0
    %1021 = vmatprep.subr.mxu0 0.0
    %1022 = vmatpush1.msra.mxu0 1.0
    %1023 = vmatprep.subr.mxu0 0.0
    %1024 = vmatpush1.msra.mxu0 1.0
    %1025 = vmatprep.subr.mxu0 0.0
    %1026 = vmatpush1.msra.mxu0 1.0
    %1027 = vmatprep.mubr.f32.mxu0 %v962
    %1028 = vmatmul.mubr.f32.gmra.mrb[0].mxu0 %v961
    %v1029 = vpop.f32.mrb[0].mxu0
    %v1030 = vadd.f32 0.0, %v1029
    %v1031 = vpop.f32.mrb[0].mxu0
    %1032 = vdwg.mxu0
    %v1033 = vmul.f32 %v958, 0.00390625
    %v1034 = vmul.f32 %v1030, 0.00390625
    %v1035 = vmul.f32 %v1033, %v1033
    %v1036 = vsub.f32 %v1034, %v1035
    %1038 = vset.pattern.permute.xlu0 0
    %1039 = vperm.xlu0 %1038, %v1033
    %v1040 = vpop.permute.xlu0 %1039
    %v1042 = vsub.f32 %v889, %v1040
    %v1043 = vsub.f32 %v890, %v1040
    %v1044 = vadd.f32 %v1036, 1e-05
    %v1045 = vrsqrt.pop %v1044
    %1047 = vset.pattern.permute.xlu0 0
    %1048 = vperm.xlu0 %1047, %v1045
    %v1049 = vpop.permute.xlu0 %1048
    %v1051 = vmul.f32 %v1042, %v1049
    %v1052 = vmul.f32 %v1043, %v1049
    %v1053 = vmax.f32 %v1051, 0.0
    %v1054 = vmax.f32 %v1052, 0.0
    %1056 = vrot.lane.b32.xlu0 %v1054, 16
    %v1057 = vpop.permute.xlu0 %1056
    %1060 = vrot.lane.b32.xlu0 %v1053, 16
    %v1061 = vpop.permute.xlu0 %1060
    %v1062 = vsel %vm29, %v1061, %v1057
    %v1065 = vsel %vm29, %v1057, %v1061
    %1066 = vrot.lane.b32.xlu0 %v1053, 112
    %v1067 = vpop.permute.xlu0 %1066
    %1068 = vrot.lane.b32.xlu0 %v1054, 112
    %v1069 = vpop.permute.xlu0 %1068
    %v1070 = vsel %vm38, %v1067, %v1069
    %v1074 = vsel %vm38, %v1069, %v1067
    %v1075 = vsel %vm61, %v1070, %v1065
    %v1076 = vsel %vm62, %v1074, %v1062
    %v1077 = vsel %vm81, %v1065, %v1070
    %v1078 = vsel %vm82, %v1062, %v1074
    %1080 = vrot.lane.b32.xlu0 %v1076, 1
    %v1081 = vpop.permute.xlu0 %1080
    %1084 = vrot.lane.b32.xlu0 %v1075, 1
    %v1085 = vpop.permute.xlu0 %1084
    %v1086 = vsel %vm92, %v1085, %v1081
    %v1089 = vsel %vm92, %v1081, %v1085
    %1090 = vrot.lane.b32.xlu0 %v1075, 127
    %v1091 = vpop.permute.xlu0 %1090
    %1092 = vrot.lane.b32.xlu0 %v1076, 127
    %v1093 = vpop.permute.xlu0 %1092
    %v1094 = vsel %vm101, %v1091, %v1093
    %v1098 = vsel %vm101, %v1093, %v1091
    %v1099 = vsel %vm123, %v1094, %v1089
    %v1100 = vsel %vm124, %v1098, %v1086
    %v1101 = vsel %vm143, %v1089, %v1094
    %v1102 = vsel %vm144, %v1086, %v1098
    %v1103 = vld [vmem:[%s3] sm:$0xff]
    %s1104 = scalar_lea.vmem %s3, 8
    %v1105 = vld [vmem:[%s1104] sm:$0xff]
    %v1107 = vsel %vm150, %v1105, 0
    %1109 = vmatprep.subr.mxu0 %v1076
    %1110 = vmatpush1.msra.mxu0 %v1075
    %1111 = vmatprep.subr.mxu0 0.0
    %1112 = vmatpush1.msra.mxu0 0.0
    %1113 = vmatprep.subr.mxu0 0.0
    %1114 = vmatpush1.msra.mxu0 0.0
    %1115 = vmatprep.subr.mxu0 0.0
    %1116 = vmatpush1.msra.mxu0 0.0
    %1117 = vmatprep.subr.mxu0 0.0
    %1118 = vmatpush1.msra.mxu0 0.0
    %1119 = vmatprep.subr.mxu0 0.0
    %1120 = vmatpush1.msra.mxu0 0.0
    %1121 = vmatprep.subr.mxu0 0.0
    %1122 = vmatpush1.msra.mxu0 0.0
    %1123 = vmatprep.subr.mxu0 0.0
    %1124 = vmatpush1.msra.mxu0 0.0
    %1125 = vmatprep.subr.mxu0 0.0
    %1126 = vmatpush1.msra.mxu0 0.0
    %1127 = vmatprep.subr.mxu0 0.0
    %1128 = vmatpush1.msra.mxu0 0.0
    %1129 = vmatprep.subr.mxu0 0.0
    %1130 = vmatpush1.msra.mxu0 0.0
    %1131 = vmatprep.subr.mxu0 0.0
    %1132 = vmatpush1.msra.mxu0 0.0
    %1133 = vmatprep.subr.mxu0 0.0
    %1134 = vmatpush1.msra.mxu0 0.0
    %1135 = vmatprep.subr.mxu0 0.0
    %1136 = vmatpush1.msra.mxu0 0.0
    %1137 = vmatprep.subr.mxu0 0.0
    %1138 = vmatpush1.msra.mxu0 0.0
    %1139 = vmatprep.subr.mxu0 0.0
    %1140 = vmatpush1.msra.mxu0 0.0
    %1141 = vmatprep.subr.mxu0 0.0
    %1142 = vmatpush1.msra.mxu0 0.0
    %1143 = vmatprep.subr.mxu0 0.0
    %1144 = vmatpush1.msra.mxu0 0.0
    %1145 = vmatprep.subr.mxu0 0.0
    %1146 = vmatpush1.msra.mxu0 0.0
    %1147 = vmatprep.subr.mxu0 0.0
    %1148 = vmatpush1.msra.mxu0 0.0
    %1149 = vmatprep.subr.mxu0 0.0
    %1150 = vmatpush1.msra.mxu0 0.0
    %1151 = vmatprep.subr.mxu0 0.0
    %1152 = vmatpush1.msra.mxu0 0.0
    %1153 = vmatprep.subr.mxu0 0.0
    %1154 = vmatpush1.msra.mxu0 0.0
    %1155 = vmatprep.subr.mxu0 0.0
    %1156 = vmatpush1.msra.mxu0 0.0
    %1157 = vmatprep.subr.mxu0 0.0
    %1158 = vmatpush1.msra.mxu0 0.0
    %1159 = vmatprep.subr.mxu0 0.0
    %1160 = vmatpush1.msra.mxu0 0.0
    %1161 = vmatprep.subr.mxu0 0.0
    %1162 = vmatpush1.msra.mxu0 0.0
    %1163 = vmatprep.subr.mxu0 0.0
    %1164 = vmatpush1.msra.mxu0 0.0
    %1165 = vmatprep.subr.mxu0 0.0
    %1166 = vmatpush1.msra.mxu0 0.0
    %1167 = vmatprep.subr.mxu0 0.0
    %1168 = vmatpush1.msra.mxu0 0.0
    %1169 = vmatprep.subr.mxu0 0.0
    %1170 = vmatpush1.msra.mxu0 0.0
    %1171 = vmatprep.subr.mxu0 0.0
    %1172 = vmatpush1.msra.mxu0 0.0
    %1173 = vmatprep.mubr.f32.mxu0 0.0
    %1174 = vmatmul.mubr.f32.gmra.mrb[0].mxu0 %v1107
    %v1175 = vpop.f32.mrb[0].mxu0
    %v1176 = vadd.f32 0.0, %v1175
    %v1177 = vpop.f32.mrb[0].mxu0
    %v1178 = vadd.f32 0.0, %v1177
    %1179 = vdwg.mxu0
    %v1181 = vsel %vm150, %v1103, 0
    %1183 = vmatprep.subr.mxu0 %v1100
    %1184 = vmatpush1.msra.mxu0 %v1099
    %1185 = vmatprep.subr.mxu0 0.0
    %1186 = vmatpush1.msra.mxu0 0.0
    %1187 = vmatprep.subr.mxu0 0.0
    %1188 = vmatpush1.msra.mxu0 0.0
    %1189 = vmatprep.subr.mxu0 0.0
    %1190 = vmatpush1.msra.mxu0 0.0
    %1191 = vmatprep.subr.mxu0 0.0
    %1192 = vmatpush1.msra.mxu0 0.0
    %1193 = vmatprep.subr.mxu0 0.0
    %1194 = vmatpush1.msra.mxu0 0.0
    %1195 = vmatprep.subr.mxu0 0.0
    %1196 = vmatpush1.msra.mxu0 0.0
    %1197 = vmatprep.subr.mxu0 0.0
    %1198 = vmatpush1.msra.mxu0 0.0
    %1199 = vmatprep.subr.mxu0 0.0
    %1200 = vmatpush1.msra.mxu0 0.0
    %1201 = vmatprep.subr.mxu0 0.0
    %1202 = vmatpush1.msra.mxu0 0.0
    %1203 = vmatprep.subr.mxu0 0.0
    %1204 = vmatpush1.msra.mxu0 0.0
    %1205 = vmatprep.subr.mxu0 0.0
    %1206 = vmatpush1.msra.mxu0 0.0
    %1207 = vmatprep.subr.mxu0 0.0
    %1208 = vmatpush1.msra.mxu0 0.0
    %1209 = vmatprep.subr.mxu0 0.0
    %1210 = vmatpush1.msra.mxu0 0.0
    %1211 = vmatprep.subr.mxu0 0.0
    %1212 = vmatpush1.msra.mxu0 0.0
    %1213 = vmatprep.subr.mxu0 0.0
    %1214 = vmatpush1.msra.mxu0 0.0
    %1215 = vmatprep.subr.mxu0 0.0
    %1216 = vmatpush1.msra.mxu0 0.0
    %1217 = vmatprep.subr.mxu0 0.0
    %1218 = vmatpush1.msra.mxu0 0.0
    %1219 = vmatprep.subr.mxu0 0.0
    %1220 = vmatpush1.msra.mxu0 0.0
    %1221 = vmatprep.subr.mxu0 0.0
    %1222 = vmatpush1.msra.mxu0 0.0
    %1223 = vmatprep.subr.mxu0 0.0
    %1224 = vmatpush1.msra.mxu0 0.0
    %1225 = vmatprep.subr.mxu0 0.0
    %1226 = vmatpush1.msra.mxu0 0.0
    %1227 = vmatprep.subr.mxu0 0.0
    %1228 = vmatpush1.msra.mxu0 0.0
    %1229 = vmatprep.subr.mxu0 0.0
    %1230 = vmatpush1.msra.mxu0 0.0
    %1231 = vmatprep.subr.mxu0 0.0
    %1232 = vmatpush1.msra.mxu0 0.0
    %1233 = vmatprep.subr.mxu0 0.0
    %1234 = vmatpush1.msra.mxu0 0.0
    %1235 = vmatprep.subr.mxu0 0.0
    %1236 = vmatpush1.msra.mxu0 0.0
    %1237 = vmatprep.subr.mxu0 0.0
    %1238 = vmatpush1.msra.mxu0 0.0
    %1239 = vmatprep.subr.mxu0 0.0
    %1240 = vmatpush1.msra.mxu0 0.0
    %1241 = vmatprep.subr.mxu0 0.0
    %1242 = vmatpush1.msra.mxu0 0.0
    %1243 = vmatprep.subr.mxu0 0.0
    %1244 = vmatpush1.msra.mxu0 0.0
    %1245 = vmatprep.subr.mxu0 0.0
    %1246 = vmatpush1.msra.mxu0 0.0
    %1247 = vmatprep.mubr.f32.mxu0 0.0
    %1248 = vmatmul.mubr.f32.gmra.mrb[0].mxu0 %v1181
    %v1249 = vpop.f32.mrb[0].mxu0
    %v1250 = vadd.f32 %v1176, %v1249
    %v1251 = vpop.f32.mrb[0].mxu0
    %v1252 = vadd.f32 %v1178, %v1251
    %1253 = vdwg.mxu0
    %s1254 = scalar_lea.vmem %s3, 16
    %v1255 = vld [vmem:[%s1254] sm:$0xff]
    %v1257 = vsel %vm150, %v1255, 0
    %1259 = vmatprep.subr.mxu0 %v1102
    %1260 = vmatpush1.msra.mxu0 %v1101
    %1261 = vmatprep.subr.mxu0 0.0
    %1262 = vmatpush1.msra.mxu0 0.0
    %1263 = vmatprep.subr.mxu0 0.0
    %1264 = vmatpush1.msra.mxu0 0.0
    %1265 = vmatprep.subr.mxu0 0.0
    %1266 = vmatpush1.msra.mxu0 0.0
    %1267 = vmatprep.subr.mxu0 0.0
    %1268 = vmatpush1.msra.mxu0 0.0
    %1269 = vmatprep.subr.mxu0 0.0
    %1270 = vmatpush1.msra.mxu0 0.0
    %1271 = vmatprep.subr.mxu0 0.0
    %1272 = vmatpush1.msra.mxu0 0.0
    %1273 = vmatprep.subr.mxu0 0.0
    %1274 = vmatpush1.msra.mxu0 0.0
    %1275 = vmatprep.subr.mxu0 0.0
    %1276 = vmatpush1.msra.mxu0 0.0
    %1277 = vmatprep.subr.mxu0 0.0
    %1278 = vmatpush1.msra.mxu0 0.0
    %1279 = vmatprep.subr.mxu0 0.0
    %1280 = vmatpush1.msra.mxu0 0.0
    %1281 = vmatprep.subr.mxu0 0.0
    %1282 = vmatpush1.msra.mxu0 0.0
    %1283 = vmatprep.subr.mxu0 0.0
    %1284 = vmatpush1.msra.mxu0 0.0
    %1285 = vmatprep.subr.mxu0 0.0
    %1286 = vmatpush1.msra.mxu0 0.0
    %1287 = vmatprep.subr.mxu0 0.0
    %1288 = vmatpush1.msra.mxu0 0.0
    %1289 = vmatprep.subr.mxu0 0.0
    %1290 = vmatpush1.msra.mxu0 0.0
    %1291 = vmatprep.subr.mxu0 0.0
    %1292 = vmatpush1.msra.mxu0 0.0
    %1293 = vmatprep.subr.mxu0 0.0
    %1294 = vmatpush1.msra.mxu0 0.0
    %1295 = vmatprep.subr.mxu0 0.0
    %1296 = vmatpush1.msra.mxu0 0.0
    %1297 = vmatprep.subr.mxu0 0.0
    %1298 = vmatpush1.msra.mxu0 0.0
    %1299 = vmatprep.subr.mxu0 0.0
    %1300 = vmatpush1.msra.mxu0 0.0
    %1301 = vmatprep.subr.mxu0 0.0
    %1302 = vmatpush1.msra.mxu0 0.0
    %1303 = vmatprep.subr.mxu0 0.0
    %1304 = vmatpush1.msra.mxu0 0.0
    %1305 = vmatprep.subr.mxu0 0.0
    %1306 = vmatpush1.msra.mxu0 0.0
    %1307 = vmatprep.subr.mxu0 0.0
    %1308 = vmatpush1.msra.mxu0 0.0
    %1309 = vmatprep.subr.mxu0 0.0
    %1310 = vmatpush1.msra.mxu0 0.0
    %1311 = vmatprep.subr.mxu0 0.0
    %1312 = vmatpush1.msra.mxu0 0.0
    %1313 = vmatprep.subr.mxu0 0.0
    %1314 = vmatpush1.msra.mxu0 0.0
    %1315 = vmatprep.subr.mxu0 0.0
    %1316 = vmatpush1.msra.mxu0 0.0
    %1317 = vmatprep.subr.mxu0 0.0
    %1318 = vmatpush1.msra.mxu0 0.0
    %1319 = vmatprep.subr.mxu0 0.0
    %1320 = vmatpush1.msra.mxu0 0.0
    %1321 = vmatprep.subr.mxu0 0.0
    %1322 = vmatpush1.msra.mxu0 0.0
    %1323 = vmatprep.mubr.f32.mxu0 0.0
    %1324 = vmatmul.mubr.f32.gmra.mrb[0].mxu0 %v1257
    %v1325 = vpop.f32.mrb[0].mxu0
    %v1326 = vadd.f32 0.0, %v1325
    %v1327 = vpop.f32.mrb[0].mxu0
    %v1328 = vadd.f32 0.0, %v1327
    %1329 = vdwg.mxu0
    %v1330 = vadd.f32 %v1250, %v1326
    %v1331 = vadd.f32 %v1252, %v1328
    %1332 = vrot.lane.b32.xlu0 %v1054, 1
    %v1333 = vpop.permute.xlu0 %1332
    %1335 = vrot.lane.b32.xlu0 %v1053, 1
    %v1336 = vpop.permute.xlu0 %1335
    %v1337 = vsel %vm92, %v1336, %v1333
    %v1340 = vsel %vm92, %v1333, %v1336
    %1341 = vrot.lane.b32.xlu0 %v1053, 127
    %v1342 = vpop.permute.xlu0 %1341
    %1343 = vrot.lane.b32.xlu0 %v1054, 127
    %v1344 = vpop.permute.xlu0 %1343
    %v1345 = vsel %vm101, %v1342, %v1344
    %v1349 = vsel %vm101, %v1344, %v1342
    %v1350 = vsel %vm123, %v1345, %v1340
    %v1351 = vsel %vm124, %v1349, %v1337
    %v1352 = vsel %vm143, %v1340, %v1345
    %v1353 = vsel %vm144, %v1337, %v1349
    %s1354 = scalar_lea.vmem %s3, 24
    %v1355 = vld [vmem:[%s1354] sm:$0xff]
    %v1357 = vsel %vm150, %v1355, 0
    %1359 = vmatprep.subr.mxu0 %v1351
    %1360 = vmatpush1.msra.mxu0 %v1350
    %1361 = vmatprep.subr.mxu0 0.0
    %1362 = vmatpush1.msra.mxu0 0.0
    %1363 = vmatprep.subr.mxu0 0.0
    %1364 = vmatpush1.msra.mxu0 0.0
    %1365 = vmatprep.subr.mxu0 0.0
    %1366 = vmatpush1.msra.mxu0 0.0
    %1367 = vmatprep.subr.mxu0 0.0
    %1368 = vmatpush1.msra.mxu0 0.0
    %1369 = vmatprep.subr.mxu0 0.0
    %1370 = vmatpush1.msra.mxu0 0.0
    %1371 = vmatprep.subr.mxu0 0.0
    %1372 = vmatpush1.msra.mxu0 0.0
    %1373 = vmatprep.subr.mxu0 0.0
    %1374 = vmatpush1.msra.mxu0 0.0
    %1375 = vmatprep.subr.mxu0 0.0
    %1376 = vmatpush1.msra.mxu0 0.0
    %1377 = vmatprep.subr.mxu0 0.0
    %1378 = vmatpush1.msra.mxu0 0.0
    %1379 = vmatprep.subr.mxu0 0.0
    %1380 = vmatpush1.msra.mxu0 0.0
    %1381 = vmatprep.subr.mxu0 0.0
    %1382 = vmatpush1.msra.mxu0 0.0
    %1383 = vmatprep.subr.mxu0 0.0
    %1384 = vmatpush1.msra.mxu0 0.0
    %1385 = vmatprep.subr.mxu0 0.0
    %1386 = vmatpush1.msra.mxu0 0.0
    %1387 = vmatprep.subr.mxu0 0.0
    %1388 = vmatpush1.msra.mxu0 0.0
    %1389 = vmatprep.subr.mxu0 0.0
    %1390 = vmatpush1.msra.mxu0 0.0
    %1391 = vmatprep.subr.mxu0 0.0
    %1392 = vmatpush1.msra.mxu0 0.0
    %1393 = vmatprep.subr.mxu0 0.0
    %1394 = vmatpush1.msra.mxu0 0.0
    %1395 = vmatprep.subr.mxu0 0.0
    %1396 = vmatpush1.msra.mxu0 0.0
    %1397 = vmatprep.subr.mxu0 0.0
    %1398 = vmatpush1.msra.mxu0 0.0
    %1399 = vmatprep.subr.mxu0 0.0
    %1400 = vmatpush1.msra.mxu0 0.0
    %1401 = vmatprep.subr.mxu0 0.0
    %1402 = vmatpush1.msra.mxu0 0.0
    %1403 = vmatprep.subr.mxu0 0.0
    %1404 = vmatpush1.msra.mxu0 0.0
    %1405 = vmatprep.subr.mxu0 0.0
    %1406 = vmatpush1.msra.mxu0 0.0
    %1407 = vmatprep.subr.mxu0 0.0
    %1408 = vmatpush1.msra.mxu0 0.0
    %1409 = vmatprep.subr.mxu0 0.0
    %1410 = vmatpush1.msra.mxu0 0.0
    %1411 = vmatprep.subr.mxu0 0.0
    %1412 = vmatpush1.msra.mxu0 0.0
    %1413 = vmatprep.subr.mxu0 0.0
    %1414 = vmatpush1.msra.mxu0 0.0
    %1415 = vmatprep.subr.mxu0 0.0
    %1416 = vmatpush1.msra.mxu0 0.0
    %1417 = vmatprep.subr.mxu0 0.0
    %1418 = vmatpush1.msra.mxu0 0.0
    %1419 = vmatprep.subr.mxu0 0.0
    %1420 = vmatpush1.msra.mxu0 0.0
    %1421 = vmatprep.subr.mxu0 0.0
    %1422 = vmatpush1.msra.mxu0 0.0
    %1423 = vmatprep.mubr.f32.mxu0 0.0
    %1424 = vmatmul.mubr.f32.gmra.mrb[0].mxu0 %v1357
    %v1425 = vpop.f32.mrb[0].mxu0
    %v1426 = vadd.f32 0.0, %v1425
    %v1427 = vpop.f32.mrb[0].mxu0
    %v1428 = vadd.f32 0.0, %v1427
    %1429 = vdwg.mxu0
    %v1430 = vadd.f32 %v1330, %v1426
    %v1431 = vadd.f32 %v1331, %v1428
    %s1432 = scalar_lea.vmem %s3, 32
    %v1433 = vld [vmem:[%s1432] sm:$0xff]
    %v1435 = vsel %vm150, %v1433, 0
    %1437 = vmatprep.subr.mxu0 %v1054
    %1438 = vmatpush1.msra.mxu0 %v1053
    %1439 = vmatprep.subr.mxu0 0.0
    %1440 = vmatpush1.msra.mxu0 0.0
    %1441 = vmatprep.subr.mxu0 0.0
    %1442 = vmatpush1.msra.mxu0 0.0
    %1443 = vmatprep.subr.mxu0 0.0
    %1444 = vmatpush1.msra.mxu0 0.0
    %1445 = vmatprep.subr.mxu0 0.0
    %1446 = vmatpush1.msra.mxu0 0.0
    %1447 = vmatprep.subr.mxu0 0.0
    %1448 = vmatpush1.msra.mxu0 0.0
    %1449 = vmatprep.subr.mxu0 0.0
    %1450 = vmatpush1.msra.mxu0 0.0
    %1451 = vmatprep.subr.mxu0 0.0
    %1452 = vmatpush1.msra.mxu0 0.0
    %1453 = vmatprep.subr.mxu0 0.0
    %1454 = vmatpush1.msra.mxu0 0.0
    %1455 = vmatprep.subr.mxu0 0.0
    %1456 = vmatpush1.msra.mxu0 0.0
    %1457 = vmatprep.subr.mxu0 0.0
    %1458 = vmatpush1.msra.mxu0 0.0
    %1459 = vmatprep.subr.mxu0 0.0
    %1460 = vmatpush1.msra.mxu0 0.0
    %1461 = vmatprep.subr.mxu0 0.0
    %1462 = vmatpush1.msra.mxu0 0.0
    %1463 = vmatprep.subr.mxu0 0.0
    %1464 = vmatpush1.msra.mxu0 0.0
    %1465 = vmatprep.subr.mxu0 0.0
    %1466 = vmatpush1.msra.mxu0 0.0
    %1467 = vmatprep.subr.mxu0 0.0
    %1468 = vmatpush1.msra.mxu0 0.0
    %1469 = vmatprep.subr.mxu0 0.0
    %1470 = vmatpush1.msra.mxu0 0.0
    %1471 = vmatprep.subr.mxu0 0.0
    %1472 = vmatpush1.msra.mxu0 0.0
    %1473 = vmatprep.subr.mxu0 0.0
    %1474 = vmatpush1.msra.mxu0 0.0
    %1475 = vmatprep.subr.mxu0 0.0
    %1476 = vmatpush1.msra.mxu0 0.0
    %1477 = vmatprep.subr.mxu0 0.0
    %1478 = vmatpush1.msra.mxu0 0.0
    %1479 = vmatprep.subr.mxu0 0.0
    %1480 = vmatpush1.msra.mxu0 0.0
    %1481 = vmatprep.subr.mxu0 0.0
    %1482 = vmatpush1.msra.mxu0 0.0
    %1483 = vmatprep.subr.mxu0 0.0
    %1484 = vmatpush1.msra.mxu0 0.0
    %1485 = vmatprep.subr.mxu0 0.0
    %1486 = vmatpush1.msra.mxu0 0.0
    %1487 = vmatprep.subr.mxu0 0.0
    %1488 = vmatpush1.msra.mxu0 0.0
    %1489 = vmatprep.subr.mxu0 0.0
    %1490 = vmatpush1.msra.mxu0 0.0
    %1491 = vmatprep.subr.mxu0 0.0
    %1492 = vmatpush1.msra.mxu0 0.0
    %1493 = vmatprep.subr.mxu0 0.0
    %1494 = vmatpush1.msra.mxu0 0.0
    %1495 = vmatprep.subr.mxu0 0.0
    %1496 = vmatpush1.msra.mxu0 0.0
    %1497 = vmatprep.subr.mxu0 0.0
    %1498 = vmatpush1.msra.mxu0 0.0
    %1499 = vmatprep.subr.mxu0 0.0
    %1500 = vmatpush1.msra.mxu0 0.0
    %1501 = vmatprep.mubr.f32.mxu0 0.0
    %1502 = vmatmul.mubr.f32.gmra.mrb[0].mxu0 %v1435
    %v1503 = vpop.f32.mrb[0].mxu0
    %v1504 = vadd.f32 0.0, %v1503
    %v1505 = vpop.f32.mrb[0].mxu0
    %v1506 = vadd.f32 0.0, %v1505
    %1507 = vdwg.mxu0
    %v1508 = vadd.f32 %v1430, %v1504
    %v1509 = vadd.f32 %v1431, %v1506
    %s1510 = scalar_lea.vmem %s3, 40
    %v1511 = vld [vmem:[%s1510] sm:$0xff]
    %v1513 = vsel %vm150, %v1511, 0
    %1515 = vmatprep.subr.mxu0 %v1353
    %1516 = vmatpush1.msra.mxu0 %v1352
    %1517 = vmatprep.subr.mxu0 0.0
    %1518 = vmatpush1.msra.mxu0 0.0
    %1519 = vmatprep.subr.mxu0 0.0
    %1520 = vmatpush1.msra.mxu0 0.0
    %1521 = vmatprep.subr.mxu0 0.0
    %1522 = vmatpush1.msra.mxu0 0.0
    %1523 = vmatprep.subr.mxu0 0.0
    %1524 = vmatpush1.msra.mxu0 0.0
    %1525 = vmatprep.subr.mxu0 0.0
    %1526 = vmatpush1.msra.mxu0 0.0
    %1527 = vmatprep.subr.mxu0 0.0
    %1528 = vmatpush1.msra.mxu0 0.0
    %1529 = vmatprep.subr.mxu0 0.0
    %1530 = vmatpush1.msra.mxu0 0.0
    %1531 = vmatprep.subr.mxu0 0.0
    %1532 = vmatpush1.msra.mxu0 0.0
    %1533 = vmatprep.subr.mxu0 0.0
    %1534 = vmatpush1.msra.mxu0 0.0
    %1535 = vmatprep.subr.mxu0 0.0
    %1536 = vmatpush1.msra.mxu0 0.0
    %1537 = vmatprep.subr.mxu0 0.0
    %1538 = vmatpush1.msra.mxu0 0.0
    %1539 = vmatprep.subr.mxu0 0.0
    %1540 = vmatpush1.msra.mxu0 0.0
    %1541 = vmatprep.subr.mxu0 0.0
    %1542 = vmatpush1.msra.mxu0 0.0
    %1543 = vmatprep.subr.mxu0 0.0
    %1544 = vmatpush1.msra.mxu0 0.0
    %1545 = vmatprep.subr.mxu0 0.0
    %1546 = vmatpush1.msra.mxu0 0.0
    %1547 = vmatprep.subr.mxu0 0.0
    %1548 = vmatpush1.msra.mxu0 0.0
    %1549 = vmatprep.subr.mxu0 0.0
    %1550 = vmatpush1.msra.mxu0 0.0
    %1551 = vmatprep.subr.mxu0 0.0
    %1552 = vmatpush1.msra.mxu0 0.0
    %1553 = vmatprep.subr.mxu0 0.0
    %1554 = vmatpush1.msra.mxu0 0.0
    %1555 = vmatprep.subr.mxu0 0.0
    %1556 = vmatpush1.msra.mxu0 0.0
    %1557 = vmatprep.subr.mxu0 0.0
    %1558 = vmatpush1.msra.mxu0 0.0
    %1559 = vmatprep.subr.mxu0 0.0
    %1560 = vmatpush1.msra.mxu0 0.0
    %1561 = vmatprep.subr.mxu0 0.0
    %1562 = vmatpush1.msra.mxu0 0.0
    %1563 = vmatprep.subr.mxu0 0.0
    %1564 = vmatpush1.msra.mxu0 0.0
    %1565 = vmatprep.subr.mxu0 0.0
    %1566 = vmatpush1.msra.mxu0 0.0
    %1567 = vmatprep.subr.mxu0 0.0
    %1568 = vmatpush1.msra.mxu0 0.0
    %1569 = vmatprep.subr.mxu0 0.0
    %1570 = vmatpush1.msra.mxu0 0.0
    %1571 = vmatprep.subr.mxu0 0.0
    %1572 = vmatpush1.msra.mxu0 0.0
    %1573 = vmatprep.subr.mxu0 0.0
    %1574 = vmatpush1.msra.mxu0 0.0
    %1575 = vmatprep.subr.mxu0 0.0
    %1576 = vmatpush1.msra.mxu0 0.0
    %1577 = vmatprep.subr.mxu0 0.0
    %1578 = vmatpush1.msra.mxu0 0.0
    %1579 = vmatprep.mubr.f32.mxu0 0.0
    %1580 = vmatmul.mubr.f32.gmra.mrb[0].mxu0 %v1513
    %v1581 = vpop.f32.mrb[0].mxu0
    %v1582 = vadd.f32 0.0, %v1581
    %v1583 = vpop.f32.mrb[0].mxu0
    %v1584 = vadd.f32 0.0, %v1583
    %1585 = vdwg.mxu0
    %v1586 = vadd.f32 %v1508, %v1582
    %v1587 = vadd.f32 %v1509, %v1584
    %1589 = vrot.lane.b32.xlu0 %v1078, 1
    %v1590 = vpop.permute.xlu0 %1589
    %1593 = vrot.lane.b32.xlu0 %v1077, 1
    %v1594 = vpop.permute.xlu0 %1593
    %v1595 = vsel %vm92, %v1594, %v1590
    %v1598 = vsel %vm92, %v1590, %v1594
    %1599 = vrot.lane.b32.xlu0 %v1077, 127
    %v1600 = vpop.permute.xlu0 %1599
    %1601 = vrot.lane.b32.xlu0 %v1078, 127
    %v1602 = vpop.permute.xlu0 %1601
    %v1603 = vsel %vm101, %v1600, %v1602
    %v1607 = vsel %vm101, %v1602, %v1600
    %v1608 = vsel %vm123, %v1603, %v1598
    %v1609 = vsel %vm124, %v1607, %v1595
    %v1610 = vsel %vm143, %v1598, %v1603
    %v1611 = vsel %vm144, %v1595, %v1607
    %s1612 = scalar_lea.vmem %s3, 48
    %v1613 = vld [vmem:[%s1612] sm:$0xff]
    %v1615 = vsel %vm150, %v1613, 0
    %1617 = vmatprep.subr.mxu0 %v1609
    %1618 = vmatpush1.msra.mxu0 %v1608
    %1619 = vmatprep.subr.mxu0 0.0
    %1620 = vmatpush1.msra.mxu0 0.0
    %1621 = vmatprep.subr.mxu0 0.0
    %1622 = vmatpush1.msra.mxu0 0.0
    %1623 = vmatprep.subr.mxu0 0.0
    %1624 = vmatpush1.msra.mxu0 0.0
    %1625 = vmatprep.subr.mxu0 0.0
    %1626 = vmatpush1.msra.mxu0 0.0
    %1627 = vmatprep.subr.mxu0 0.0
    %1628 = vmatpush1.msra.mxu0 0.0
    %1629 = vmatprep.subr.mxu0 0.0
    %1630 = vmatpush1.msra.mxu0 0.0
    %1631 = vmatprep.subr.mxu0 0.0
    %1632 = vmatpush1.msra.mxu0 0.0
    %1633 = vmatprep.subr.mxu0 0.0
    %1634 = vmatpush1.msra.mxu0 0.0
    %1635 = vmatprep.subr.mxu0 0.0
    %1636 = vmatpush1.msra.mxu0 0.0
    %1637 = vmatprep.subr.mxu0 0.0
    %1638 = vmatpush1.msra.mxu0 0.0
    %1639 = vmatprep.subr.mxu0 0.0
    %1640 = vmatpush1.msra.mxu0 0.0
    %1641 = vmatprep.subr.mxu0 0.0
    %1642 = vmatpush1.msra.mxu0 0.0
    %1643 = vmatprep.subr.mxu0 0.0
    %1644 = vmatpush1.msra.mxu0 0.0
    %1645 = vmatprep.subr.mxu0 0.0
    %1646 = vmatpush1.msra.mxu0 0.0
    %1647 = vmatprep.subr.mxu0 0.0
    %1648 = vmatpush1.msra.mxu0 0.0
    %1649 = vmatprep.subr.mxu0 0.0
    %1650 = vmatpush1.msra.mxu0 0.0
    %1651 = vmatprep.subr.mxu0 0.0
    %1652 = vmatpush1.msra.mxu0 0.0
    %1653 = vmatprep.subr.mxu0 0.0
    %1654 = vmatpush1.msra.mxu0 0.0
    %1655 = vmatprep.subr.mxu0 0.0
    %1656 = vmatpush1.msra.mxu0 0.0
    %1657 = vmatprep.subr.mxu0 0.0
    %1658 = vmatpush1.msra.mxu0 0.0
    %1659 = vmatprep.subr.mxu0 0.0
    %1660 = vmatpush1.msra.mxu0 0.0
    %1661 = vmatprep.subr.mxu0 0.0
    %1662 = vmatpush1.msra.mxu0 0.0
    %1663 = vmatprep.subr.mxu0 0.0
    %1664 = vmatpush1.msra.mxu0 0.0
    %1665 = vmatprep.subr.mxu0 0.0
    %1666 = vmatpush1.msra.mxu0 0.0
    %1667 = vmatprep.subr.mxu0 0.0
    %1668 = vmatpush1.msra.mxu0 0.0
    %1669 = vmatprep.subr.mxu0 0.0
    %1670 = vmatpush1.msra.mxu0 0.0
    %1671 = vmatprep.subr.mxu0 0.0
    %1672 = vmatpush1.msra.mxu0 0.0
    %1673 = vmatprep.subr.mxu0 0.0
    %1674 = vmatpush1.msra.mxu0 0.0
    %1675 = vmatprep.subr.mxu0 0.0
    %1676 = vmatpush1.msra.mxu0 0.0
    %1677 = vmatprep.subr.mxu0 0.0
    %1678 = vmatpush1.msra.mxu0 0.0
    %1679 = vmatprep.subr.mxu0 0.0
    %1680 = vmatpush1.msra.mxu0 0.0
    %1681 = vmatprep.mubr.f32.mxu0 0.0
    %1682 = vmatmul.mubr.f32.gmra.mrb[0].mxu0 %v1615
    %v1683 = vpop.f32.mrb[0].mxu0
    %v1684 = vadd.f32 0.0, %v1683
    %v1685 = vpop.f32.mrb[0].mxu0
    %v1686 = vadd.f32 0.0, %v1685
    %1687 = vdwg.mxu0
    %v1688 = vadd.f32 %v1586, %v1684
    %v1689 = vadd.f32 %v1587, %v1686
    %s1690 = scalar_lea.vmem %s3, 56
    %v1691 = vld [vmem:[%s1690] sm:$0xff]
    %v1693 = vsel %vm150, %v1691, 0
    %1695 = vmatprep.subr.mxu0 %v1078
    %1696 = vmatpush1.msra.mxu0 %v1077
    %1697 = vmatprep.subr.mxu0 0.0
    %1698 = vmatpush1.msra.mxu0 0.0
    %1699 = vmatprep.subr.mxu0 0.0
    %1700 = vmatpush1.msra.mxu0 0.0
    %1701 = vmatprep.subr.mxu0 0.0
    %1702 = vmatpush1.msra.mxu0 0.0
    %1703 = vmatprep.subr.mxu0 0.0
    %1704 = vmatpush1.msra.mxu0 0.0
    %1705 = vmatprep.subr.mxu0 0.0
    %1706 = vmatpush1.msra.mxu0 0.0
    %1707 = vmatprep.subr.mxu0 0.0
    %1708 = vmatpush1.msra.mxu0 0.0
    %1709 = vmatprep.subr.mxu0 0.0
    %1710 = vmatpush1.msra.mxu0 0.0
    %1711 = vmatprep.subr.mxu0 0.0
    %1712 = vmatpush1.msra.mxu0 0.0
    %1713 = vmatprep.subr.mxu0 0.0
    %1714 = vmatpush1.msra.mxu0 0.0
    %1715 = vmatprep.subr.mxu0 0.0
    %1716 = vmatpush1.msra.mxu0 0.0
    %1717 = vmatprep.subr.mxu0 0.0
    %1718 = vmatpush1.msra.mxu0 0.0
    %1719 = vmatprep.subr.mxu0 0.0
    %1720 = vmatpush1.msra.mxu0 0.0
    %1721 = vmatprep.subr.mxu0 0.0
    %1722 = vmatpush1.msra.mxu0 0.0
    %1723 = vmatprep.subr.mxu0 0.0
    %1724 = vmatpush1.msra.mxu0 0.0
    %1725 = vmatprep.subr.mxu0 0.0
    %1726 = vmatpush1.msra.mxu0 0.0
    %1727 = vmatprep.subr.mxu0 0.0
    %1728 = vmatpush1.msra.mxu0 0.0
    %1729 = vmatprep.subr.mxu0 0.0
    %1730 = vmatpush1.msra.mxu0 0.0
    %1731 = vmatprep.subr.mxu0 0.0
    %1732 = vmatpush1.msra.mxu0 0.0
    %1733 = vmatprep.subr.mxu0 0.0
    %1734 = vmatpush1.msra.mxu0 0.0
    %1735 = vmatprep.subr.mxu0 0.0
    %1736 = vmatpush1.msra.mxu0 0.0
    %1737 = vmatprep.subr.mxu0 0.0
    %1738 = vmatpush1.msra.mxu0 0.0
    %1739 = vmatprep.subr.mxu0 0.0
    %1740 = vmatpush1.msra.mxu0 0.0
    %1741 = vmatprep.subr.mxu0 0.0
    %1742 = vmatpush1.msra.mxu0 0.0
    %1743 = vmatprep.subr.mxu0 0.0
    %1744 = vmatpush1.msra.mxu0 0.0
    %1745 = vmatprep.subr.mxu0 0.0
    %1746 = vmatpush1.msra.mxu0 0.0
    %1747 = vmatprep.subr.mxu0 0.0
    %1748 = vmatpush1.msra.mxu0 0.0
    %1749 = vmatprep.subr.mxu0 0.0
    %1750 = vmatpush1.msra.mxu0 0.0
    %1751 = vmatprep.subr.mxu0 0.0
    %1752 = vmatpush1.msra.mxu0 0.0
    %1753 = vmatprep.subr.mxu0 0.0
    %1754 = vmatpush1.msra.mxu0 0.0
    %1755 = vmatprep.subr.mxu0 0.0
    %1756 = vmatpush1.msra.mxu0 0.0
    %1757 = vmatprep.subr.mxu0 0.0
    %1758 = vmatpush1.msra.mxu0 0.0
    %1759 = vmatprep.mubr.f32.mxu0 0.0
    %1760 = vmatmul.mubr.f32.gmra.mrb[0].mxu0 %v1693
    %v1761 = vpop.f32.mrb[0].mxu0
    %v1762 = vadd.f32 0.0, %v1761
    %v1763 = vpop.f32.mrb[0].mxu0
    %v1764 = vadd.f32 0.0, %v1763
    %1765 = vdwg.mxu0
    %v1766 = vadd.f32 %v1688, %v1762
    %v1767 = vadd.f32 %v1689, %v1764
    %s1768 = scalar_lea.vmem %s3, 64
    %v1769 = vld [vmem:[%s1768] sm:$0xff]
    %v1771 = vsel %vm150, %v1769, 0
    %1773 = vmatprep.subr.mxu0 %v1611
    %1774 = vmatpush1.msra.mxu0 %v1610
    %1775 = vmatprep.subr.mxu0 0.0
    %1776 = vmatpush1.msra.mxu0 0.0
    %1777 = vmatprep.subr.mxu0 0.0
    %1778 = vmatpush1.msra.mxu0 0.0
    %1779 = vmatprep.subr.mxu0 0.0
    %1780 = vmatpush1.msra.mxu0 0.0
    %1781 = vmatprep.subr.mxu0 0.0
    %1782 = vmatpush1.msra.mxu0 0.0
    %1783 = vmatprep.subr.mxu0 0.0
    %1784 = vmatpush1.msra.mxu0 0.0
    %1785 = vmatprep.subr.mxu0 0.0
    %1786 = vmatpush1.msra.mxu0 0.0
    %1787 = vmatprep.subr.mxu0 0.0
    %1788 = vmatpush1.msra.mxu0 0.0
    %1789 = vmatprep.subr.mxu0 0.0
    %1790 = vmatpush1.msra.mxu0 0.0
    %1791 = vmatprep.subr.mxu0 0.0
    %1792 = vmatpush1.msra.mxu0 0.0
    %1793 = vmatprep.subr.mxu0 0.0
    %1794 = vmatpush1.msra.mxu0 0.0
    %1795 = vmatprep.subr.mxu0 0.0
    %1796 = vmatpush1.msra.mxu0 0.0
    %1797 = vmatprep.subr.mxu0 0.0
    %1798 = vmatpush1.msra.mxu0 0.0
    %1799 = vmatprep.subr.mxu0 0.0
    %1800 = vmatpush1.msra.mxu0 0.0
    %1801 = vmatprep.subr.mxu0 0.0
    %1802 = vmatpush1.msra.mxu0 0.0
    %1803 = vmatprep.subr.mxu0 0.0
    %1804 = vmatpush1.msra.mxu0 0.0
    %1805 = vmatprep.subr.mxu0 0.0
    %1806 = vmatpush1.msra.mxu0 0.0
    %1807 = vmatprep.subr.mxu0 0.0
    %1808 = vmatpush1.msra.mxu0 0.0
    %1809 = vmatprep.subr.mxu0 0.0
    %1810 = vmatpush1.msra.mxu0 0.0
    %1811 = vmatprep.subr.mxu0 0.0
    %1812 = vmatpush1.msra.mxu0 0.0
    %1813 = vmatprep.subr.mxu0 0.0
    %1814 = vmatpush1.msra.mxu0 0.0
    %1815 = vmatprep.subr.mxu0 0.0
    %1816 = vmatpush1.msra.mxu0 0.0
    %1817 = vmatprep.subr.mxu0 0.0
    %1818 = vmatpush1.msra.mxu0 0.0
    %1819 = vmatprep.subr.mxu0 0.0
    %1820 = vmatpush1.msra.mxu0 0.0
    %1821 = vmatprep.subr.mxu0 0.0
    %1822 = vmatpush1.msra.mxu0 0.0
    %1823 = vmatprep.subr.mxu0 0.0
    %1824 = vmatpush1.msra.mxu0 0.0
    %1825 = vmatprep.subr.mxu0 0.0
    %1826 = vmatpush1.msra.mxu0 0.0
    %1827 = vmatprep.subr.mxu0 0.0
    %1828 = vmatpush1.msra.mxu0 0.0
    %1829 = vmatprep.subr.mxu0 0.0
    %1830 = vmatpush1.msra.mxu0 0.0
    %1831 = vmatprep.subr.mxu0 0.0
    %1832 = vmatpush1.msra.mxu0 0.0
    %1833 = vmatprep.subr.mxu0 0.0
    %1834 = vmatpush1.msra.mxu0 0.0
    %1835 = vmatprep.subr.mxu0 0.0
    %1836 = vmatpush1.msra.mxu0 0.0
    %1837 = vmatprep.mubr.f32.mxu0 0.0
    %1838 = vmatmul.mubr.f32.gmra.mrb[0].mxu0 %v1771
    %v1839 = vpop.f32.mrb[0].mxu0
    %v1840 = vadd.f32 0.0, %v1839
    %v1841 = vpop.f32.mrb[0].mxu0
    %v1842 = vadd.f32 0.0, %v1841
    %1843 = vdwg.mxu0
    %v1844 = vadd.f32 %v1766, %v1840
    %v1845 = vadd.f32 %v1767, %v1842
    %1846 = vmatprep.subr.mxu0 0.0
    %1847 = vmatpush1.msra.mxu0 1.0
    %1848 = vmatprep.subr.mxu0 0.0
    %1849 = vmatpush1.msra.mxu0 1.0
    %1850 = vmatprep.subr.mxu0 0.0
    %1851 = vmatpush1.msra.mxu0 1.0
    %1852 = vmatprep.subr.mxu0 0.0
    %1853 = vmatpush1.msra.mxu0 1.0
    %1854 = vmatprep.subr.mxu0 0.0
    %1855 = vmatpush1.msra.mxu0 1.0
    %1856 = vmatprep.subr.mxu0 0.0
    %1857 = vmatpush1.msra.mxu0 1.0
    %1858 = vmatprep.subr.mxu0 0.0
    %1859 = vmatpush1.msra.mxu0 1.0
    %1860 = vmatprep.subr.mxu0 0.0
    %1861 = vmatpush1.msra.mxu0 1.0
    %1862 = vmatprep.subr.mxu0 0.0
    %1863 = vmatpush1.msra.mxu0 1.0
    %1864 = vmatprep.subr.mxu0 0.0
    %1865 = vmatpush1.msra.mxu0 1.0
    %1866 = vmatprep.subr.mxu0 0.0
    %1867 = vmatpush1.msra.mxu0 1.0
    %1868 = vmatprep.subr.mxu0 0.0
    %1869 = vmatpush1.msra.mxu0 1.0
    %1870 = vmatprep.subr.mxu0 0.0
    %1871 = vmatpush1.msra.mxu0 1.0
    %1872 = vmatprep.subr.mxu0 0.0
    %1873 = vmatpush1.msra.mxu0 1.0
    %1874 = vmatprep.subr.mxu0 0.0
    %1875 = vmatpush1.msra.mxu0 1.0
    %1876 = vmatprep.subr.mxu0 0.0
    %1877 = vmatpush1.msra.mxu0 1.0
    %1878 = vmatprep.subr.mxu0 0.0
    %1879 = vmatpush1.msra.mxu0 1.0
    %1880 = vmatprep.subr.mxu0 0.0
    %1881 = vmatpush1.msra.mxu0 1.0
    %1882 = vmatprep.subr.mxu0 0.0
    %1883 = vmatpush1.msra.mxu0 1.0
    %1884 = vmatprep.subr.mxu0 0.0
    %1885 = vmatpush1.msra.mxu0 1.0
    %1886 = vmatprep.subr.mxu0 0.0
    %1887 = vmatpush1.msra.mxu0 1.0
    %1888 = vmatprep.subr.mxu0 0.0
    %1889 = vmatpush1.msra.mxu0 1.0
    %1890 = vmatprep.subr.mxu0 0.0
    %1891 = vmatpush1.msra.mxu0 1.0
    %1892 = vmatprep.subr.mxu0 0.0
    %1893 = vmatpush1.msra.mxu0 1.0
    %1894 = vmatprep.subr.mxu0 0.0
    %1895 = vmatpush1.msra.mxu0 1.0
    %1896 = vmatprep.subr.mxu0 0.0
    %1897 = vmatpush1.msra.mxu0 1.0
    %1898 = vmatprep.subr.mxu0 0.0
    %1899 = vmatpush1.msra.mxu0 1.0
    %1900 = vmatprep.subr.mxu0 0.0
    %1901 = vmatpush1.msra.mxu0 1.0
    %1902 = vmatprep.subr.mxu0 0.0
    %1903 = vmatpush1.msra.mxu0 1.0
    %1904 = vmatprep.subr.mxu0 0.0
    %1905 = vmatpush1.msra.mxu0 1.0
    %1906 = vmatprep.subr.mxu0 0.0
    %1907 = vmatpush1.msra.mxu0 1.0
    %1908 = vmatprep.subr.mxu0 0.0
    %1909 = vmatpush1.msra.mxu0 1.0
    %1910 = vmatprep.mubr.f32.mxu0 %v1845
    %1911 = vmatmul.mubr.f32.gmra.mrb[0].mxu0 %v1844
    %v1912 = vpop.f32.mrb[0].mxu0
    %v1913 = vadd.f32 0.0, %v1912
    %v1914 = vpop.f32.mrb[0].mxu0
    %1915 = vdwg.mxu0
    %v1916 = vmul.f32 %v1844, %v1844
    %v1917 = vmul.f32 %v1845, %v1845
    %1918 = vmatprep.subr.mxu0 0.0
    %1919 = vmatpush1.msra.mxu0 1.0
    %1920 = vmatprep.subr.mxu0 0.0
    %1921 = vmatpush1.msra.mxu0 1.0
    %1922 = vmatprep.subr.mxu0 0.0
    %1923 = vmatpush1.msra.mxu0 1.0
    %1924 = vmatprep.subr.mxu0 0.0
    %1925 = vmatpush1.msra.mxu0 1.0
    %1926 = vmatprep.subr.mxu0 0.0
    %1927 = vmatpush1.msra.mxu0 1.0
    %1928 = vmatprep.subr.mxu0 0.0
    %1929 = vmatpush1.msra.mxu0 1.0
    %1930 = vmatprep.subr.mxu0 0.0
    %1931 = vmatpush1.msra.mxu0 1.0
    %1932 = vmatprep.subr.mxu0 0.0
    %1933 = vmatpush1.msra.mxu0 1.0
    %1934 = vmatprep.subr.mxu0 0.0
    %1935 = vmatpush1.msra.mxu0 1.0
    %1936 = vmatprep.subr.mxu0 0.0
    %1937 = vmatpush1.msra.mxu0 1.0
    %1938 = vmatprep.subr.mxu0 0.0
    %1939 = vmatpush1.msra.mxu0 1.0
    %1940 = vmatprep.subr.mxu0 0.0
    %1941 = vmatpush1.msra.mxu0 1.0
    %1942 = vmatprep.subr.mxu0 0.0
    %1943 = vmatpush1.msra.mxu0 1.0
    %1944 = vmatprep.subr.mxu0 0.0
    %1945 = vmatpush1.msra.mxu0 1.0
    %1946 = vmatprep.subr.mxu0 0.0
    %1947 = vmatpush1.msra.mxu0 1.0
    %1948 = vmatprep.subr.mxu0 0.0
    %1949 = vmatpush1.msra.mxu0 1.0
    %1950 = vmatprep.subr.mxu0 0.0
    %1951 = vmatpush1.msra.mxu0 1.0
    %1952 = vmatprep.subr.mxu0 0.0
    %1953 = vmatpush1.msra.mxu0 1.0
    %1954 = vmatprep.subr.mxu0 0.0
    %1955 = vmatpush1.msra.mxu0 1.0
    %1956 = vmatprep.subr.mxu0 0.0
    %1957 = vmatpush1.msra.mxu0 1.0
    %1958 = vmatprep.subr.mxu0 0.0
    %1959 = vmatpush1.msra.mxu0 1.0
    %1960 = vmatprep.subr.mxu0 0.0
    %1961 = vmatpush1.msra.mxu0 1.0
    %1962 = vmatprep.subr.mxu0 0.0
    %1963 = vmatpush1.msra.mxu0 1.0
    %1964 = vmatprep.subr.mxu0 0.0
    %1965 = vmatpush1.msra.mxu0 1.0
    %1966 = vmatprep.subr.mxu0 0.0
    %1967 = vmatpush1.msra.mxu0 1.0
    %1968 = vmatprep.subr.mxu0 0.0
    %1969 = vmatpush1.msra.mxu0 1.0
    %1970 = vmatprep.subr.mxu0 0.0
    %1971 = vmatpush1.msra.mxu0 1.0
    %1972 = vmatprep.subr.mxu0 0.0
    %1973 = vmatpush1.msra.mxu0 1.0
    %1974 = vmatprep.subr.mxu0 0.0
    %1975 = vmatpush1.msra.mxu0 1.0
    %1976 = vmatprep.subr.mxu0 0.0
    %1977 = vmatpush1.msra.mxu0 1.0
    %1978 = vmatprep.subr.mxu0 0.0
    %1979 = vmatpush1.msra.mxu0 1.0
    %1980 = vmatprep.subr.mxu0 0.0
    %1981 = vmatpush1.msra.mxu0 1.0
    %1982 = vmatprep.mubr.f32.mxu0 %v1917
    %1983 = vmatmul.mubr.f32.gmra.mrb[0].mxu0 %v1916
    %v1984 = vpop.f32.mrb[0].mxu0
    %v1985 = vadd.f32 0.0, %v1984
    %v1986 = vpop.f32.mrb[0].mxu0
    %1987 = vdwg.mxu0
    %v1988 = vmul.f32 %v1913, 0.00390625
    %v1989 = vmul.f32 %v1985, 0.00390625
    %v1990 = vmul.f32 %v1988, %v1988
    %v1991 = vsub.f32 %v1989, %v1990
    %1993 = vset.pattern.permute.xlu0 0
    %1994 = vperm.xlu0 %1993, %v1988
    %v1995 = vpop.permute.xlu0 %1994
    %v1997 = vsub.f32 %v1844, %v1995
    %v1998 = vsub.f32 %v1845, %v1995
    %v1999 = vadd.f32 %v1991, 1e-05
    %v2000 = vrsqrt.pop %v1999
    %2002 = vset.pattern.permute.xlu0 0
    %2003 = vperm.xlu0 %2002, %v2000
    %v2004 = vpop.permute.xlu0 %2003
    %v2006 = vmul.f32 %v1997, %v2004
    %v2007 = vmul.f32 %v1998, %v2004
    %v2008 = vadd.f32 %v20, %v2006
    %v2009 = vadd.f32 %v21, %v2007
    %2010 = vst [vmem:[#allocation2] sm:$0xff] %v2008
    %2011 = vst [vmem:[#allocation2 + $0x8] sm:$0xff] %v2009
    %s2012 = scalar_lea.vmem %s1, 16
    %v2013 = vld [vmem:[%s2012] sm:$0xff]
    %v2014 = vld [vmem:[%s2012 + $0x8] sm:$0xff]
    %2016 = vrot.lane.b32.xlu0 %v2014, 16
    %v2017 = vpop.permute.xlu0 %2016
    %2020 = vrot.lane.b32.xlu0 %v2013, 16
    %v2021 = vpop.permute.xlu0 %2020
    %v2022 = vsel %vm29, %v2021, %v2017
    %v2025 = vsel %vm29, %v2017, %v2021
    %2026 = vrot.lane.b32.xlu0 %v2013, 112
    %v2027 = vpop.permute.xlu0 %2026
    %2028 = vrot.lane.b32.xlu0 %v2014, 112
    %v2029 = vpop.permute.xlu0 %2028
    %v2030 = vsel %vm38, %v2027, %v2029
    %v2034 = vsel %vm38, %v2029, %v2027
    %v2035 = vsel %vm61, %v2030, %v2025
    %v2036 = vsel %vm62, %v2034, %v2022
    %v2037 = vsel %vm81, %v2025, %v2030
    %v2038 = vsel %vm82, %v2022, %v2034
    %2040 = vrot.lane.b32.xlu0 %v2036, 1
    %v2041 = vpop.permute.xlu0 %2040
    %2044 = vrot.lane.b32.xlu0 %v2035, 1
    %v2045 = vpop.permute.xlu0 %2044
    %v2046 = vsel %vm92, %v2045, %v2041
    %v2049 = vsel %vm92, %v2041, %v2045
    %2050 = vrot.lane.b32.xlu0 %v2035, 127
    %v2051 = vpop.permute.xlu0 %2050
    %2052 = vrot.lane.b32.xlu0 %v2036, 127
    %v2053 = vpop.permute.xlu0 %2052
    %v2054 = vsel %vm101, %v2051, %v2053
    %v2058 = vsel %vm101, %v2053, %v2051
    %v2059 = vsel %vm123, %v2054, %v2049
    %v2060 = vsel %vm124, %v2058, %v2046
    %v2061 = vsel %vm143, %v2049, %v2054
    %v2062 = vsel %vm144, %v2046, %v2058
    %v2063 = vld [vmem:[%s2] sm:$0xff]
    %v2064 = vld [vmem:[%s148] sm:$0xff]
    %v2066 = vsel %vm150, %v2064, 0
    %2068 = vmatprep.subr.mxu0 %v2036
    %2069 = vmatpush1.msra.mxu0 %v2035
    %2070 = vmatprep.subr.mxu0 0.0
    %2071 = vmatpush1.msra.mxu0 0.0
    %2072 = vmatprep.subr.mxu0 0.0
    %2073 = vmatpush1.msra.mxu0 0.0
    %2074 = vmatprep.subr.mxu0 0.0
    %2075 = vmatpush1.msra.mxu0 0.0
    %2076 = vmatprep.subr.mxu0 0.0
    %2077 = vmatpush1.msra.mxu0 0.0
    %2078 = vmatprep.subr.mxu0 0.0
    %2079 = vmatpush1.msra.mxu0 0.0
    %2080 = vmatprep.subr.mxu0 0.0
    %2081 = vmatpush1.msra.mxu0 0.0
    %2082 = vmatprep.subr.mxu0 0.0
    %2083 = vmatpush1.msra.mxu0 0.0
    %2084 = vmatprep.subr.mxu0 0.0
    %2085 = vmatpush1.msra.mxu0 0.0
    %2086 = vmatprep.subr.mxu0 0.0
    %2087 = vmatpush1.msra.mxu0 0.0
    %2088 = vmatprep.subr.mxu0 0.0
    %2089 = vmatpush1.msra.mxu0 0.0
    %2090 = vmatprep.subr.mxu0 0.0
    %2091 = vmatpush1.msra.mxu0 0.0
    %2092 = vmatprep.subr.mxu0 0.0
    %2093 = vmatpush1.msra.mxu0 0.0
    %2094 = vmatprep.subr.mxu0 0.0
    %2095 = vmatpush1.msra.mxu0 0.0
    %2096 = vmatprep.subr.mxu0 0.0
    %2097 = vmatpush1.msra.mxu0 0.0
    %2098 = vmatprep.subr.mxu0 0.0
    %2099 = vmatpush1.msra.mxu0 0.0
    %2100 = vmatprep.subr.mxu0 0.0
    %2101 = vmatpush1.msra.mxu0 0.0
    %2102 = vmatprep.subr.mxu0 0.0
    %2103 = vmatpush1.msra.mxu0 0.0
    %2104 = vmatprep.subr.mxu0 0.0
    %2105 = vmatpush1.msra.mxu0 0.0
    %2106 = vmatprep.subr.mxu0 0.0
    %2107 = vmatpush1.msra.mxu0 0.0
    %2108 = vmatprep.subr.mxu0 0.0
    %2109 = vmatpush1.msra.mxu0 0.0
    %2110 = vmatprep.subr.mxu0 0.0
    %2111 = vmatpush1.msra.mxu0 0.0
    %2112 = vmatprep.subr.mxu0 0.0
    %2113 = vmatpush1.msra.mxu0 0.0
    %2114 = vmatprep.subr.mxu0 0.0
    %2115 = vmatpush1.msra.mxu0 0.0
    %2116 = vmatprep.subr.mxu0 0.0
    %2117 = vmatpush1.msra.mxu0 0.0
    %2118 = vmatprep.subr.mxu0 0.0
    %2119 = vmatpush1.msra.mxu0 0.0
    %2120 = vmatprep.subr.mxu0 0.0
    %2121 = vmatpush1.msra.mxu0 0.0
    %2122 = vmatprep.subr.mxu0 0.0
    %2123 = vmatpush1.msra.mxu0 0.0
    %2124 = vmatprep.subr.mxu0 0.0
    %2125 = vmatpush1.msra.mxu0 0.0
    %2126 = vmatprep.subr.mxu0 0.0
    %2127 = vmatpush1.msra.mxu0 0.0
    %2128 = vmatprep.subr.mxu0 0.0
    %2129 = vmatpush1.msra.mxu0 0.0
    %2130 = vmatprep.subr.mxu0 0.0
    %2131 = vmatpush1.msra.mxu0 0.0
    %2132 = vmatprep.mubr.f32.mxu0 0.0
    %2133 = vmatmul.mubr.f32.gmra.mrb[0].mxu0 %v2066
    %v2134 = vpop.f32.mrb[0].mxu0
    %v2135 = vadd.f32 0.0, %v2134
    %v2136 = vpop.f32.mrb[0].mxu0
    %v2137 = vadd.f32 0.0, %v2136
    %2138 = vdwg.mxu0
    %v2140 = vsel %vm150, %v2063, 0
    %2142 = vmatprep.subr.mxu0 %v2060
    %2143 = vmatpush1.msra.mxu0 %v2059
    %2144 = vmatprep.subr.mxu0 0.0
    %2145 = vmatpush1.msra.mxu0 0.0
    %2146 = vmatprep.subr.mxu0 0.0
    %2147 = vmatpush1.msra.mxu0 0.0
    %2148 = vmatprep.subr.mxu0 0.0
    %2149 = vmatpush1.msra.mxu0 0.0
    %2150 = vmatprep.subr.mxu0 0.0
    %2151 = vmatpush1.msra.mxu0 0.0
    %2152 = vmatprep.subr.mxu0 0.0
    %2153 = vmatpush1.msra.mxu0 0.0
    %2154 = vmatprep.subr.mxu0 0.0
    %2155 = vmatpush1.msra.mxu0 0.0
    %2156 = vmatprep.subr.mxu0 0.0
    %2157 = vmatpush1.msra.mxu0 0.0
    %2158 = vmatprep.subr.mxu0 0.0
    %2159 = vmatpush1.msra.mxu0 0.0
    %2160 = vmatprep.subr.mxu0 0.0
    %2161 = vmatpush1.msra.mxu0 0.0
    %2162 = vmatprep.subr.mxu0 0.0
    %2163 = vmatpush1.msra.mxu0 0.0
    %2164 = vmatprep.subr.mxu0 0.0
    %2165 = vmatpush1.msra.mxu0 0.0
    %2166 = vmatprep.subr.mxu0 0.0
    %2167 = vmatpush1.msra.mxu0 0.0
    %2168 = vmatprep.subr.mxu0 0.0
    %2169 = vmatpush1.msra.mxu0 0.0
    %2170 = vmatprep.subr.mxu0 0.0
    %2171 = vmatpush1.msra.mxu0 0.0
    %2172 = vmatprep.subr.mxu0 0.0
    %2173 = vmatpush1.msra.mxu0 0.0
    %2174 = vmatprep.subr.mxu0 0.0
    %2175 = vmatpush1.msra.mxu0 0.0
    %2176 = vmatprep.subr.mxu0 0.0
    %2177 = vmatpush1.msra.mxu0 0.0
    %2178 = vmatprep.subr.mxu0 0.0
    %2179 = vmatpush1.msra.mxu0 0.0
    %2180 = vmatprep.subr.mxu0 0.0
    %2181 = vmatpush1.msra.mxu0 0.0
    %2182 = vmatprep.subr.mxu0 0.0
    %2183 = vmatpush1.msra.mxu0 0.0
    %2184 = vmatprep.subr.mxu0 0.0
    %2185 = vmatpush1.msra.mxu0 0.0
    %2186 = vmatprep.subr.mxu0 0.0
    %2187 = vmatpush1.msra.mxu0 0.0
    %2188 = vmatprep.subr.mxu0 0.0
    %2189 = vmatpush1.msra.mxu0 0.0
    %2190 = vmatprep.subr.mxu0 0.0
    %2191 = vmatpush1.msra.mxu0 0.0
    %2192 = vmatprep.subr.mxu0 0.0
    %2193 = vmatpush1.msra.mxu0 0.0
    %2194 = vmatprep.subr.mxu0 0.0
    %2195 = vmatpush1.msra.mxu0 0.0
    %2196 = vmatprep.subr.mxu0 0.0
    %2197 = vmatpush1.msra.mxu0 0.0
    %2198 = vmatprep.subr.mxu0 0.0
    %2199 = vmatpush1.msra.mxu0 0.0
    %2200 = vmatprep.subr.mxu0 0.0
    %2201 = vmatpush1.msra.mxu0 0.0
    %2202 = vmatprep.subr.mxu0 0.0
    %2203 = vmatpush1.msra.mxu0 0.0
    %2204 = vmatprep.subr.mxu0 0.0
    %2205 = vmatpush1.msra.mxu0 0.0
    %2206 = vmatprep.mubr.f32.mxu0 0.0
    %2207 = vmatmul.mubr.f32.gmra.mrb[0].mxu0 %v2140
    %v2208 = vpop.f32.mrb[0].mxu0
    %v2209 = vadd.f32 %v2135, %v2208
    %v2210 = vpop.f32.mrb[0].mxu0
    %v2211 = vadd.f32 %v2137, %v2210
    %2212 = vdwg.mxu0
    %v2213 = vld [vmem:[%s299] sm:$0xff]
    %v2215 = vsel %vm150, %v2213, 0
    %2217 = vmatprep.subr.mxu0 %v2062
    %2218 = vmatpush1.msra.mxu0 %v2061
    %2219 = vmatprep.subr.mxu0 0.0
    %2220 = vmatpush1.msra.mxu0 0.0
    %2221 = vmatprep.subr.mxu0 0.0
    %2222 = vmatpush1.msra.mxu0 0.0
    %2223 = vmatprep.subr.mxu0 0.0
    %2224 = vmatpush1.msra.mxu0 0.0
    %2225 = vmatprep.subr.mxu0 0.0
    %2226 = vmatpush1.msra.mxu0 0.0
    %2227 = vmatprep.subr.mxu0 0.0
    %2228 = vmatpush1.msra.mxu0 0.0
    %2229 = vmatprep.subr.mxu0 0.0
    %2230 = vmatpush1.msra.mxu0 0.0
    %2231 = vmatprep.subr.mxu0 0.0
    %2232 = vmatpush1.msra.mxu0 0.0
    %2233 = vmatprep.subr.mxu0 0.0
    %2234 = vmatpush1.msra.mxu0 0.0
    %2235 = vmatprep.subr.mxu0 0.0
    %2236 = vmatpush1.msra.mxu0 0.0
    %2237 = vmatprep.subr.mxu0 0.0
    %2238 = vmatpush1.msra.mxu0 0.0
    %2239 = vmatprep.subr.mxu0 0.0
    %2240 = vmatpush1.msra.mxu0 0.0
    %2241 = vmatprep.subr.mxu0 0.0
    %2242 = vmatpush1.msra.mxu0 0.0
    %2243 = vmatprep.subr.mxu0 0.0
    %2244 = vmatpush1.msra.mxu0 0.0
    %2245 = vmatprep.subr.mxu0 0.0
    %2246 = vmatpush1.msra.mxu0 0.0
    %2247 = vmatprep.subr.mxu0 0.0
    %2248 = vmatpush1.msra.mxu0 0.0
    %2249 = vmatprep.subr.mxu0 0.0
    %2250 = vmatpush1.msra.mxu0 0.0
    %2251 = vmatprep.subr.mxu0 0.0
    %2252 = vmatpush1.msra.mxu0 0.0
    %2253 = vmatprep.subr.mxu0 0.0
    %2254 = vmatpush1.msra.mxu0 0.0
    %2255 = vmatprep.subr.mxu0 0.0
    %2256 = vmatpush1.msra.mxu0 0.0
    %2257 = vmatprep.subr.mxu0 0.0
    %2258 = vmatpush1.msra.mxu0 0.0
    %2259 = vmatprep.subr.mxu0 0.0
    %2260 = vmatpush1.msra.mxu0 0.0
    %2261 = vmatprep.subr.mxu0 0.0
    %2262 = vmatpush1.msra.mxu0 0.0
    %2263 = vmatprep.subr.mxu0 0.0
    %2264 = vmatpush1.msra.mxu0 0.0
    %2265 = vmatprep.subr.mxu0 0.0
    %2266 = vmatpush1.msra.mxu0 0.0
    %2267 = vmatprep.subr.mxu0 0.0
    %2268 = vmatpush1.msra.mxu0 0.0
    %2269 = vmatprep.subr.mxu0 0.0
    %2270 = vmatpush1.msra.mxu0 0.0
    %2271 = vmatprep.subr.mxu0 0.0
    %2272 = vmatpush1.msra.mxu0 0.0
    %2273 = vmatprep.subr.mxu0 0.0
    %2274 = vmatpush1.msra.mxu0 0.0
    %2275 = vmatprep.subr.mxu0 0.0
    %2276 = vmatpush1.msra.mxu0 0.0
    %2277 = vmatprep.subr.mxu0 0.0
    %2278 = vmatpush1.msra.mxu0 0.0
    %2279 = vmatprep.subr.mxu0 0.0
    %2280 = vmatpush1.msra.mxu0 0.0
    %2281 = vmatprep.mubr.f32.mxu0 0.0
    %2282 = vmatmul.mubr.f32.gmra.mrb[0].mxu0 %v2215
    %v2283 = vpop.f32.mrb[0].mxu0
    %v2284 = vadd.f32 0.0, %v2283
    %v2285 = vpop.f32.mrb[0].mxu0
    %v2286 = vadd.f32 0.0, %v2285
    %2287 = vdwg.mxu0
    %v2288 = vadd.f32 %v2209, %v2284
    %v2289 = vadd.f32 %v2211, %v2286
    %2290 = vrot.lane.b32.xlu0 %v2014, 1
    %v2291 = vpop.permute.xlu0 %2290
    %2293 = vrot.lane.b32.xlu0 %v2013, 1
    %v2294 = vpop.permute.xlu0 %2293
    %v2295 = vsel %vm92, %v2294, %v2291
    %v2298 = vsel %vm92, %v2291, %v2294
    %2299 = vrot.lane.b32.xlu0 %v2013, 127
    %v2300 = vpop.permute.xlu0 %2299
    %2301 = vrot.lane.b32.xlu0 %v2014, 127
    %v2302 = vpop.permute.xlu0 %2301
    %v2303 = vsel %vm101, %v2300, %v2302
    %v2307 = vsel %vm101, %v2302, %v2300
    %v2308 = vsel %vm123, %v2303, %v2298
    %v2309 = vsel %vm124, %v2307, %v2295
    %v2310 = vsel %vm143, %v2298, %v2303
    %v2311 = vsel %vm144, %v2295, %v2307
    %v2312 = vld [vmem:[%s399] sm:$0xff]
    %v2314 = vsel %vm150, %v2312, 0
    %2316 = vmatprep.subr.mxu0 %v2309
    %2317 = vmatpush1.msra.mxu0 %v2308
    %2318 = vmatprep.subr.mxu0 0.0
    %2319 = vmatpush1.msra.mxu0 0.0
    %2320 = vmatprep.subr.mxu0 0.0
    %2321 = vmatpush1.msra.mxu0 0.0
    %2322 = vmatprep.subr.mxu0 0.0
    %2323 = vmatpush1.msra.mxu0 0.0
    %2324 = vmatprep.subr.mxu0 0.0
    %2325 = vmatpush1.msra.mxu0 0.0
    %2326 = vmatprep.subr.mxu0 0.0
    %2327 = vmatpush1.msra.mxu0 0.0
    %2328 = vmatprep.subr.mxu0 0.0
    %2329 = vmatpush1.msra.mxu0 0.0
    %2330 = vmatprep.subr.mxu0 0.0
    %2331 = vmatpush1.msra.mxu0 0.0
    %2332 = vmatprep.subr.mxu0 0.0
    %2333 = vmatpush1.msra.mxu0 0.0
    %2334 = vmatprep.subr.mxu0 0.0
    %2335 = vmatpush1.msra.mxu0 0.0
    %2336 = vmatprep.subr.mxu0 0.0
    %2337 = vmatpush1.msra.mxu0 0.0
    %2338 = vmatprep.subr.mxu0 0.0
    %2339 = vmatpush1.msra.mxu0 0.0
    %2340 = vmatprep.subr.mxu0 0.0
    %2341 = vmatpush1.msra.mxu0 0.0
    %2342 = vmatprep.subr.mxu0 0.0
    %2343 = vmatpush1.msra.mxu0 0.0
    %2344 = vmatprep.subr.mxu0 0.0
    %2345 = vmatpush1.msra.mxu0 0.0
    %2346 = vmatprep.subr.mxu0 0.0
    %2347 = vmatpush1.msra.mxu0 0.0
    %2348 = vmatprep.subr.mxu0 0.0
    %2349 = vmatpush1.msra.mxu0 0.0
    %2350 = vmatprep.subr.mxu0 0.0
    %2351 = vmatpush1.msra.mxu0 0.0
    %2352 = vmatprep.subr.mxu0 0.0
    %2353 = vmatpush1.msra.mxu0 0.0
    %2354 = vmatprep.subr.mxu0 0.0
    %2355 = vmatpush1.msra.mxu0 0.0
    %2356 = vmatprep.subr.mxu0 0.0
    %2357 = vmatpush1.msra.mxu0 0.0
    %2358 = vmatprep.subr.mxu0 0.0
    %2359 = vmatpush1.msra.mxu0 0.0
    %2360 = vmatprep.subr.mxu0 0.0
    %2361 = vmatpush1.msra.mxu0 0.0
    %2362 = vmatprep.subr.mxu0 0.0
    %2363 = vmatpush1.msra.mxu0 0.0
    %2364 = vmatprep.subr.mxu0 0.0
    %2365 = vmatpush1.msra.mxu0 0.0
    %2366 = vmatprep.subr.mxu0 0.0
    %2367 = vmatpush1.msra.mxu0 0.0
    %2368 = vmatprep.subr.mxu0 0.0
    %2369 = vmatpush1.msra.mxu0 0.0
    %2370 = vmatprep.subr.mxu0 0.0
    %2371 = vmatpush1.msra.mxu0 0.0
    %2372 = vmatprep.subr.mxu0 0.0
    %2373 = vmatpush1.msra.mxu0 0.0
    %2374 = vmatprep.subr.mxu0 0.0
    %2375 = vmatpush1.msra.mxu0 0.0
    %2376 = vmatprep.subr.mxu0 0.0
    %2377 = vmatpush1.msra.mxu0 0.0
    %2378 = vmatprep.subr.mxu0 0.0
    %2379 = vmatpush1.msra.mxu0 0.0
    %2380 = vmatprep.mubr.f32.mxu0 0.0
    %2381 = vmatmul.mubr.f32.gmra.mrb[0].mxu0 %v2314
    %v2382 = vpop.f32.mrb[0].mxu0
    %v2383 = vadd.f32 0.0, %v2382
    %v2384 = vpop.f32.mrb[0].mxu0
    %v2385 = vadd.f32 0.0, %v2384
    %2386 = vdwg.mxu0
    %v2387 = vadd.f32 %v2288, %v2383
    %v2388 = vadd.f32 %v2289, %v2385
    %v2389 = vld [vmem:[%s477] sm:$0xff]
    %v2391 = vsel %vm150, %v2389, 0
    %2393 = vmatprep.subr.mxu0 %v2014
    %2394 = vmatpush1.msra.mxu0 %v2013
    %2395 = vmatprep.subr.mxu0 0.0
    %2396 = vmatpush1.msra.mxu0 0.0
    %2397 = vmatprep.subr.mxu0 0.0
    %2398 = vmatpush1.msra.mxu0 0.0
    %2399 = vmatprep.subr.mxu0 0.0
    %2400 = vmatpush1.msra.mxu0 0.0
    %2401 = vmatprep.subr.mxu0 0.0
    %2402 = vmatpush1.msra.mxu0 0.0
    %2403 = vmatprep.subr.mxu0 0.0
    %2404 = vmatpush1.msra.mxu0 0.0
    %2405 = vmatprep.subr.mxu0 0.0
    %2406 = vmatpush1.msra.mxu0 0.0
    %2407 = vmatprep.subr.mxu0 0.0
    %2408 = vmatpush1.msra.mxu0 0.0
    %2409 = vmatprep.subr.mxu0 0.0
    %2410 = vmatpush1.msra.mxu0 0.0
    %2411 = vmatprep.subr.mxu0 0.0
    %2412 = vmatpush1.msra.mxu0 0.0
    %2413 = vmatprep.subr.mxu0 0.0
    %2414 = vmatpush1.msra.mxu0 0.0
    %2415 = vmatprep.subr.mxu0 0.0
    %2416 = vmatpush1.msra.mxu0 0.0
    %2417 = vmatprep.subr.mxu0 0.0
    %2418 = vmatpush1.msra.mxu0 0.0
    %2419 = vmatprep.subr.mxu0 0.0
    %2420 = vmatpush1.msra.mxu0 0.0
    %2421 = vmatprep.subr.mxu0 0.0
    %2422 = vmatpush1.msra.mxu0 0.0
    %2423 = vmatprep.subr.mxu0 0.0
    %2424 = vmatpush1.msra.mxu0 0.0
    %2425 = vmatprep.subr.mxu0 0.0
    %2426 = vmatpush1.msra.mxu0 0.0
    %2427 = vmatprep.subr.mxu0 0.0
    %2428 = vmatpush1.msra.mxu0 0.0
    %2429 = vmatprep.subr.mxu0 0.0
    %2430 = vmatpush1.msra.mxu0 0.0
    %2431 = vmatprep.subr.mxu0 0.0
    %2432 = vmatpush1.msra.mxu0 0.0
    %2433 = vmatprep.subr.mxu0 0.0
    %2434 = vmatpush1.msra.mxu0 0.0
    %2435 = vmatprep.subr.mxu0 0.0
    %2436 = vmatpush1.msra.mxu0 0.0
    %2437 = vmatprep.subr.mxu0 0.0
    %2438 = vmatpush1.msra.mxu0 0.0
    %2439 = vmatprep.subr.mxu0 0.0
    %2440 = vmatpush1.msra.mxu0 0.0
    %2441 = vmatprep.subr.mxu0 0.0
    %2442 = vmatpush1.msra.mxu0 0.0
    %2443 = vmatprep.subr.mxu0 0.0
    %2444 = vmatpush1.msra.mxu0 0.0
    %2445 = vmatprep.subr.mxu0 0.0
    %2446 = vmatpush1.msra.mxu0 0.0
    %2447 = vmatprep.subr.mxu0 0.0
    %2448 = vmatpush1.msra.mxu0 0.0
    %2449 = vmatprep.subr.mxu0 0.0
    %2450 = vmatpush1.msra.mxu0 0.0
    %2451 = vmatprep.subr.mxu0 0.0
    %2452 = vmatpush1.msra.mxu0 0.0
    %2453 = vmatprep.subr.mxu0 0.0
    %2454 = vmatpush1.msra.mxu0 0.0
    %2455 = vmatprep.subr.mxu0 0.0
    %2456 = vmatpush1.msra.mxu0 0.0
    %2457 = vmatprep.mubr.f32.mxu0 0.0
    %2458 = vmatmul.mubr.f32.gmra.mrb[0].mxu0 %v2391
    %v2459 = vpop.f32.mrb[0].mxu0
    %v2460 = vadd.f32 0.0, %v2459
    %v2461 = vpop.f32.mrb[0].mxu0
    %v2462 = vadd.f32 0.0, %v2461
    %2463 = vdwg.mxu0
    %v2464 = vadd.f32 %v2387, %v2460
    %v2465 = vadd.f32 %v2388, %v2462
    %v2466 = vld [vmem:[%s555] sm:$0xff]
    %v2468 = vsel %vm150, %v2466, 0
    %2470 = vmatprep.subr.mxu0 %v2311
    %2471 = vmatpush1.msra.mxu0 %v2310
    %2472 = vmatprep.subr.mxu0 0.0
    %2473 = vmatpush1.msra.mxu0 0.0
    %2474 = vmatprep.subr.mxu0 0.0
    %2475 = vmatpush1.msra.mxu0 0.0
    %2476 = vmatprep.subr.mxu0 0.0
    %2477 = vmatpush1.msra.mxu0 0.0
    %2478 = vmatprep.subr.mxu0 0.0
    %2479 = vmatpush1.msra.mxu0 0.0
    %2480 = vmatprep.subr.mxu0 0.0
    %2481 = vmatpush1.msra.mxu0 0.0
    %2482 = vmatprep.subr.mxu0 0.0
    %2483 = vmatpush1.msra.mxu0 0.0
    %2484 = vmatprep.subr.mxu0 0.0
    %2485 = vmatpush1.msra.mxu0 0.0
    %2486 = vmatprep.subr.mxu0 0.0
    %2487 = vmatpush1.msra.mxu0 0.0
    %2488 = vmatprep.subr.mxu0 0.0
    %2489 = vmatpush1.msra.mxu0 0.0
    %2490 = vmatprep.subr.mxu0 0.0
    %2491 = vmatpush1.msra.mxu0 0.0
    %2492 = vmatprep.subr.mxu0 0.0
    %2493 = vmatpush1.msra.mxu0 0.0
    %2494 = vmatprep.subr.mxu0 0.0
    %2495 = vmatpush1.msra.mxu0 0.0
    %2496 = vmatprep.subr.mxu0 0.0
    %2497 = vmatpush1.msra.mxu0 0.0
    %2498 = vmatprep.subr.mxu0 0.0
    %2499 = vmatpush1.msra.mxu0 0.0
    %2500 = vmatprep.subr.mxu0 0.0
    %2501 = vmatpush1.msra.mxu0 0.0
    %2502 = vmatprep.subr.mxu0 0.0
    %2503 = vmatpush1.msra.mxu0 0.0
    %2504 = vmatprep.subr.mxu0 0.0
    %2505 = vmatpush1.msra.mxu0 0.0
    %2506 = vmatprep.subr.mxu0 0.0
    %2507 = vmatpush1.msra.mxu0 0.0
    %2508 = vmatprep.subr.mxu0 0.0
    %2509 = vmatpush1.msra.mxu0 0.0
    %2510 = vmatprep.subr.mxu0 0.0
    %2511 = vmatpush1.msra.mxu0 0.0
    %2512 = vmatprep.subr.mxu0 0.0
    %2513 = vmatpush1.msra.mxu0 0.0
    %2514 = vmatprep.subr.mxu0 0.0
    %2515 = vmatpush1.msra.mxu0 0.0
    %2516 = vmatprep.subr.mxu0 0.0
    %2517 = vmatpush1.msra.mxu0 0.0
    %2518 = vmatprep.subr.mxu0 0.0
    %2519 = vmatpush1.msra.mxu0 0.0
    %2520 = vmatprep.subr.mxu0 0.0
    %2521 = vmatpush1.msra.mxu0 0.0
    %2522 = vmatprep.subr.mxu0 0.0
    %2523 = vmatpush1.msra.mxu0 0.0
    %2524 = vmatprep.subr.mxu0 0.0
    %2525 = vmatpush1.msra.mxu0 0.0
    %2526 = vmatprep.subr.mxu0 0.0
    %2527 = vmatpush1.msra.mxu0 0.0
    %2528 = vmatprep.subr.mxu0 0.0
    %2529 = vmatpush1.msra.mxu0 0.0
    %2530 = vmatprep.subr.mxu0 0.0
    %2531 = vmatpush1.msra.mxu0 0.0
    %2532 = vmatprep.subr.mxu0 0.0
    %2533 = vmatpush1.msra.mxu0 0.0
    %2534 = vmatprep.mubr.f32.mxu0 0.0
    %2535 = vmatmul.mubr.f32.gmra.mrb[0].mxu0 %v2468
    %v2536 = vpop.f32.mrb[0].mxu0
    %v2537 = vadd.f32 0.0, %v2536
    %v2538 = vpop.f32.mrb[0].mxu0
    %v2539 = vadd.f32 0.0, %v2538
    %2540 = vdwg.mxu0
    %v2541 = vadd.f32 %v2464, %v2537
    %v2542 = vadd.f32 %v2465, %v2539
    %2544 = vrot.lane.b32.xlu0 %v2038, 1
    %v2545 = vpop.permute.xlu0 %2544
    %2548 = vrot.lane.b32.xlu0 %v2037, 1
    %v2549 = vpop.permute.xlu0 %2548
    %v2550 = vsel %vm92, %v2549, %v2545
    %v2553 = vsel %vm92, %v2545, %v2549
    %2554 = vrot.lane.b32.xlu0 %v2037, 127
    %v2555 = vpop.permute.xlu0 %2554
    %2556 = vrot.lane.b32.xlu0 %v2038, 127
    %v2557 = vpop.permute.xlu0 %2556
    %v2558 = vsel %vm101, %v2555, %v2557
    %v2562 = vsel %vm101, %v2557, %v2555
    %v2563 = vsel %vm123, %v2558, %v2553
    %v2564 = vsel %vm124, %v2562, %v2550
    %v2565 = vsel %vm143, %v2553, %v2558
    %v2566 = vsel %vm144, %v2550, %v2562
    %v2567 = vld [vmem:[%s657] sm:$0xff]
    %v2569 = vsel %vm150, %v2567, 0
    %2571 = vmatprep.subr.mxu0 %v2564
    %2572 = vmatpush1.msra.mxu0 %v2563
    %2573 = vmatprep.subr.mxu0 0.0
    %2574 = vmatpush1.msra.mxu0 0.0
    %2575 = vmatprep.subr.mxu0 0.0
    %2576 = vmatpush1.msra.mxu0 0.0
    %2577 = vmatprep.subr.mxu0 0.0
    %2578 = vmatpush1.msra.mxu0 0.0
    %2579 = vmatprep.subr.mxu0 0.0
    %2580 = vmatpush1.msra.mxu0 0.0
    %2581 = vmatprep.subr.mxu0 0.0
    %2582 = vmatpush1.msra.mxu0 0.0
    %2583 = vmatprep.subr.mxu0 0.0
    %2584 = vmatpush1.msra.mxu0 0.0
    %2585 = vmatprep.subr.mxu0 0.0
    %2586 = vmatpush1.msra.mxu0 0.0
    %2587 = vmatprep.subr.mxu0 0.0
    %2588 = vmatpush1.msra.mxu0 0.0
    %2589 = vmatprep.subr.mxu0 0.0
    %2590 = vmatpush1.msra.mxu0 0.0
    %2591 = vmatprep.subr.mxu0 0.0
    %2592 = vmatpush1.msra.mxu0 0.0
    %2593 = vmatprep.subr.mxu0 0.0
    %2594 = vmatpush1.msra.mxu0 0.0
    %2595 = vmatprep.subr.mxu0 0.0
    %2596 = vmatpush1.msra.mxu0 0.0
    %2597 = vmatprep.subr.mxu0 0.0
    %2598 = vmatpush1.msra.mxu0 0.0
    %2599 = vmatprep.subr.mxu0 0.0
    %2600 = vmatpush1.msra.mxu0 0.0
    %2601 = vmatprep.subr.mxu0 0.0
    %2602 = vmatpush1.msra.mxu0 0.0
    %2603 = vmatprep.subr.mxu0 0.0
    %2604 = vmatpush1.msra.mxu0 0.0
    %2605 = vmatprep.subr.mxu0 0.0
    %2606 = vmatpush1.msra.mxu0 0.0
    %2607 = vmatprep.subr.mxu0 0.0
    %2608 = vmatpush1.msra.mxu0 0.0
    %2609 = vmatprep.subr.mxu0 0.0
    %2610 = vmatpush1.msra.mxu0 0.0
    %2611 = vmatprep.subr.mxu0 0.0
    %2612 = vmatpush1.msra.mxu0 0.0
    %2613 = vmatprep.subr.mxu0 0.0
    %2614 = vmatpush1.msra.mxu0 0.0
    %2615 = vmatprep.subr.mxu0 0.0
    %2616 = vmatpush1.msra.mxu0 0.0
    %2617 = vmatprep.subr.mxu0 0.0
    %2618 = vmatpush1.msra.mxu0 0.0
    %2619 = vmatprep.subr.mxu0 0.0
    %2620 = vmatpush1.msra.mxu0 0.0
    %2621 = vmatprep.subr.mxu0 0.0
    %2622 = vmatpush1.msra.mxu0 0.0
    %2623 = vmatprep.subr.mxu0 0.0
    %2624 = vmatpush1.msra.mxu0 0.0
    %2625 = vmatprep.subr.mxu0 0.0
    %2626 = vmatpush1.msra.mxu0 0.0
    %2627 = vmatprep.subr.mxu0 0.0
    %2628 = vmatpush1.msra.mxu0 0.0
    %2629 = vmatprep.subr.mxu0 0.0
    %2630 = vmatpush1.msra.mxu0 0.0
    %2631 = vmatprep.subr.mxu0 0.0
    %2632 = vmatpush1.msra.mxu0 0.0
    %2633 = vmatprep.subr.mxu0 0.0
    %2634 = vmatpush1.msra.mxu0 0.0
    %2635 = vmatprep.mubr.f32.mxu0 0.0
    %2636 = vmatmul.mubr.f32.gmra.mrb[0].mxu0 %v2569
    %v2637 = vpop.f32.mrb[0].mxu0
    %v2638 = vadd.f32 0.0, %v2637
    %v2639 = vpop.f32.mrb[0].mxu0
    %v2640 = vadd.f32 0.0, %v2639
    %2641 = vdwg.mxu0
    %v2642 = vadd.f32 %v2541, %v2638
    %v2643 = vadd.f32 %v2542, %v2640
    %v2644 = vld [vmem:[%s735] sm:$0xff]
    %v2646 = vsel %vm150, %v2644, 0
    %2648 = vmatprep.subr.mxu0 %v2038
    %2649 = vmatpush1.msra.mxu0 %v2037
    %2650 = vmatprep.subr.mxu0 0.0
    %2651 = vmatpush1.msra.mxu0 0.0
    %2652 = vmatprep.subr.mxu0 0.0
    %2653 = vmatpush1.msra.mxu0 0.0
    %2654 = vmatprep.subr.mxu0 0.0
    %2655 = vmatpush1.msra.mxu0 0.0
    %2656 = vmatprep.subr.mxu0 0.0
    %2657 = vmatpush1.msra.mxu0 0.0
    %2658 = vmatprep.subr.mxu0 0.0
    %2659 = vmatpush1.msra.mxu0 0.0
    %2660 = vmatprep.subr.mxu0 0.0
    %2661 = vmatpush1.msra.mxu0 0.0
    %2662 = vmatprep.subr.mxu0 0.0
    %2663 = vmatpush1.msra.mxu0 0.0
    %2664 = vmatprep.subr.mxu0 0.0
    %2665 = vmatpush1.msra.mxu0 0.0
    %2666 = vmatprep.subr.mxu0 0.0
    %2667 = vmatpush1.msra.mxu0 0.0
    %2668 = vmatprep.subr.mxu0 0.0
    %2669 = vmatpush1.msra.mxu0 0.0
    %2670 = vmatprep.subr.mxu0 0.0
    %2671 = vmatpush1.msra.mxu0 0.0
    %2672 = vmatprep.subr.mxu0 0.0
    %2673 = vmatpush1.msra.mxu0 0.0
    %2674 = vmatprep.subr.mxu0 0.0
    %2675 = vmatpush1.msra.mxu0 0.0
    %2676 = vmatprep.subr.mxu0 0.0
    %2677 = vmatpush1.msra.mxu0 0.0
    %2678 = vmatprep.subr.mxu0 0.0
    %2679 = vmatpush1.msra.mxu0 0.0
    %2680 = vmatprep.subr.mxu0 0.0
    %2681 = vmatpush1.msra.mxu0 0.0
    %2682 = vmatprep.subr.mxu0 0.0
    %2683 = vmatpush1.msra.mxu0 0.0
    %2684 = vmatprep.subr.mxu0 0.0
    %2685 = vmatpush1.msra.mxu0 0.0
    %2686 = vmatprep.subr.mxu0 0.0
    %2687 = vmatpush1.msra.mxu0 0.0
    %2688 = vmatprep.subr.mxu0 0.0
    %2689 = vmatpush1.msra.mxu0 0.0
    %2690 = vmatprep.subr.mxu0 0.0
    %2691 = vmatpush1.msra.mxu0 0.0
    %2692 = vmatprep.subr.mxu0 0.0
    %2693 = vmatpush1.msra.mxu0 0.0
    %2694 = vmatprep.subr.mxu0 0.0
    %2695 = vmatpush1.msra.mxu0 0.0
    %2696 = vmatprep.subr.mxu0 0.0
    %2697 = vmatpush1.msra.mxu0 0.0
    %2698 = vmatprep.subr.mxu0 0.0
    %2699 = vmatpush1.msra.mxu0 0.0
    %2700 = vmatprep.subr.mxu0 0.0
    %2701 = vmatpush1.msra.mxu0 0.0
    %2702 = vmatprep.subr.mxu0 0.0
    %2703 = vmatpush1.msra.mxu0 0.0
    %2704 = vmatprep.subr.mxu0 0.0
    %2705 = vmatpush1.msra.mxu0 0.0
    %2706 = vmatprep.subr.mxu0 0.0
    %2707 = vmatpush1.msra.mxu0 0.0
    %2708 = vmatprep.subr.mxu0 0.0
    %2709 = vmatpush1.msra.mxu0 0.0
    %2710 = vmatprep.subr.mxu0 0.0
    %2711 = vmatpush1.msra.mxu0 0.0
    %2712 = vmatprep.mubr.f32.mxu0 0.0
    %2713 = vmatmul.mubr.f32.gmra.mrb[0].mxu0 %v2646
    %v2714 = vpop.f32.mrb[0].mxu0
    %v2715 = vadd.f32 0.0, %v2714
    %v2716 = vpop.f32.mrb[0].mxu0
    %v2717 = vadd.f32 0.0, %v2716
    %2718 = vdwg.mxu0
    %v2719 = vadd.f32 %v2642, %v2715
    %v2720 = vadd.f32 %v2643, %v2717
    %v2721 = vld [vmem:[%s813] sm:$0xff]
    %v2723 = vsel %vm150, %v2721, 0
    %2725 = vmatprep.subr.mxu0 %v2566
    %2726 = vmatpush1.msra.mxu0 %v2565
    %2727 = vmatprep.subr.mxu0 0.0
    %2728 = vmatpush1.msra.mxu0 0.0
    %2729 = vmatprep.subr.mxu0 0.0
    %2730 = vmatpush1.msra.mxu0 0.0
    %2731 = vmatprep.subr.mxu0 0.0
    %2732 = vmatpush1.msra.mxu0 0.0
    %2733 = vmatprep.subr.mxu0 0.0
    %2734 = vmatpush1.msra.mxu0 0.0
    %2735 = vmatprep.subr.mxu0 0.0
    %2736 = vmatpush1.msra.mxu0 0.0
    %2737 = vmatprep.subr.mxu0 0.0
    %2738 = vmatpush1.msra.mxu0 0.0
    %2739 = vmatprep.subr.mxu0 0.0
    %2740 = vmatpush1.msra.mxu0 0.0
    %2741 = vmatprep.subr.mxu0 0.0
    %2742 = vmatpush1.msra.mxu0 0.0
    %2743 = vmatprep.subr.mxu0 0.0
    %2744 = vmatpush1.msra.mxu0 0.0
    %2745 = vmatprep.subr.mxu0 0.0
    %2746 = vmatpush1.msra.mxu0 0.0
    %2747 = vmatprep.subr.mxu0 0.0
    %2748 = vmatpush1.msra.mxu0 0.0
    %2749 = vmatprep.subr.mxu0 0.0
    %2750 = vmatpush1.msra.mxu0 0.0
    %2751 = vmatprep.subr.mxu0 0.0
    %2752 = vmatpush1.msra.mxu0 0.0
    %2753 = vmatprep.subr.mxu0 0.0
    %2754 = vmatpush1.msra.mxu0 0.0
    %2755 = vmatprep.subr.mxu0 0.0
    %2756 = vmatpush1.msra.mxu0 0.0
    %2757 = vmatprep.subr.mxu0 0.0
    %2758 = vmatpush1.msra.mxu0 0.0
    %2759 = vmatprep.subr.mxu0 0.0
    %2760 = vmatpush1.msra.mxu0 0.0
    %2761 = vmatprep.subr.mxu0 0.0
    %2762 = vmatpush1.msra.mxu0 0.0
    %2763 = vmatprep.subr.mxu0 0.0
    %2764 = vmatpush1.msra.mxu0 0.0
    %2765 = vmatprep.subr.mxu0 0.0
    %2766 = vmatpush1.msra.mxu0 0.0
    %2767 = vmatprep.subr.mxu0 0.0
    %2768 = vmatpush1.msra.mxu0 0.0
    %2769 = vmatprep.subr.mxu0 0.0
    %2770 = vmatpush1.msra.mxu0 0.0
    %2771 = vmatprep.subr.mxu0 0.0
    %2772 = vmatpush1.msra.mxu0 0.0
    %2773 = vmatprep.subr.mxu0 0.0
    %2774 = vmatpush1.msra.mxu0 0.0
    %2775 = vmatprep.subr.mxu0 0.0
    %2776 = vmatpush1.msra.mxu0 0.0
    %2777 = vmatprep.subr.mxu0 0.0
    %2778 = vmatpush1.msra.mxu0 0.0
    %2779 = vmatprep.subr.mxu0 0.0
    %2780 = vmatpush1.msra.mxu0 0.0
    %2781 = vmatprep.subr.mxu0 0.0
    %2782 = vmatpush1.msra.mxu0 0.0
    %2783 = vmatprep.subr.mxu0 0.0
    %2784 = vmatpush1.msra.mxu0 0.0
    %2785 = vmatprep.subr.mxu0 0.0
    %2786 = vmatpush1.msra.mxu0 0.0
    %2787 = vmatprep.subr.mxu0 0.0
    %2788 = vmatpush1.msra.mxu0 0.0
    %2789 = vmatprep.mubr.f32.mxu0 0.0
    %2790 = vmatmul.mubr.f32.gmra.mrb[0].mxu0 %v2723
    %v2791 = vpop.f32.mrb[0].mxu0
    %v2792 = vadd.f32 0.0, %v2791
    %v2793 = vpop.f32.mrb[0].mxu0
    %v2794 = vadd.f32 0.0, %v2793
    %2795 = vdwg.mxu0
    %v2796 = vadd.f32 %v2719, %v2792
    %v2797 = vadd.f32 %v2720, %v2794
    %2798 = vmatprep.subr.mxu0 0.0
    %2799 = vmatpush1.msra.mxu0 1.0
    %2800 = vmatprep.subr.mxu0 0.0
    %2801 = vmatpush1.msra.mxu0 1.0
    %2802 = vmatprep.subr.mxu0 0.0
    %2803 = vmatpush1.msra.mxu0 1.0
    %2804 = vmatprep.subr.mxu0 0.0
    %2805 = vmatpush1.msra.mxu0 1.0
    %2806 = vmatprep.subr.mxu0 0.0
    %2807 = vmatpush1.msra.mxu0 1.0
    %2808 = vmatprep.subr.mxu0 0.0
    %2809 = vmatpush1.msra.mxu0 1.0
    %2810 = vmatprep.subr.mxu0 0.0
    %2811 = vmatpush1.msra.mxu0 1.0
    %2812 = vmatprep.subr.mxu0 0.0
    %2813 = vmatpush1.msra.mxu0 1.0
    %2814 = vmatprep.subr.mxu0 0.0
    %2815 = vmatpush1.msra.mxu0 1.0
    %2816 = vmatprep.subr.mxu0 0.0
    %2817 = vmatpush1.msra.mxu0 1.0
    %2818 = vmatprep.subr.mxu0 0.0
    %2819 = vmatpush1.msra.mxu0 1.0
    %2820 = vmatprep.subr.mxu0 0.0
    %2821 = vmatpush1.msra.mxu0 1.0
    %2822 = vmatprep.subr.mxu0 0.0
    %2823 = vmatpush1.msra.mxu0 1.0
    %2824 = vmatprep.subr.mxu0 0.0
    %2825 = vmatpush1.msra.mxu0 1.0
    %2826 = vmatprep.subr.mxu0 0.0
    %2827 = vmatpush1.msra.mxu0 1.0
    %2828 = vmatprep.subr.mxu0 0.0
    %2829 = vmatpush1.msra.mxu0 1.0
    %2830 = vmatprep.subr.mxu0 0.0
    %2831 = vmatpush1.msra.mxu0 1.0
    %2832 = vmatprep.subr.mxu0 0.0
    %2833 = vmatpush1.msra.mxu0 1.0
    %2834 = vmatprep.subr.mxu0 0.0
    %2835 = vmatpush1.msra.mxu0 1.0
    %2836 = vmatprep.subr.mxu0 0.0
    %2837 = vmatpush1.msra.mxu0 1.0
    %2838 = vmatprep.subr.mxu0 0.0
    %2839 = vmatpush1.msra.mxu0 1.0
    %2840 = vmatprep.subr.mxu0 0.0
    %2841 = vmatpush1.msra.mxu0 1.0
    %2842 = vmatprep.subr.mxu0 0.0
    %2843 = vmatpush1.msra.mxu0 1.0
    %2844 = vmatprep.subr.mxu0 0.0
    %2845 = vmatpush1.msra.mxu0 1.0
    %2846 = vmatprep.subr.mxu0 0.0
    %2847 = vmatpush1.msra.mxu0 1.0
    %2848 = vmatprep.subr.mxu0 0.0
    %2849 = vmatpush1.msra.mxu0 1.0
    %2850 = vmatprep.subr.mxu0 0.0
    %2851 = vmatpush1.msra.mxu0 1.0
    %2852 = vmatprep.subr.mxu0 0.0
    %2853 = vmatpush1.msra.mxu0 1.0
    %2854 = vmatprep.subr.mxu0 0.0
    %2855 = vmatpush1.msra.mxu0 1.0
    %2856 = vmatprep.subr.mxu0 0.0
    %2857 = vmatpush1.msra.mxu0 1.0
    %2858 = vmatprep.subr.mxu0 0.0
    %2859 = vmatpush1.msra.mxu0 1.0
    %2860 = vmatprep.subr.mxu0 0.0
    %2861 = vmatpush1.msra.mxu0 1.0
    %2862 = vmatprep.mubr.f32.mxu0 %v2797
    %2863 = vmatmul.mubr.f32.gmra.mrb[0].mxu0 %v2796
    %v2864 = vpop.f32.mrb[0].mxu0
    %v2865 = vadd.f32 0.0, %v2864
    %v2866 = vpop.f32.mrb[0].mxu0
    %2867 = vdwg.mxu0
    %v2868 = vmul.f32 %v2796, %v2796
    %v2869 = vmul.f32 %v2797, %v2797
    %2870 = vmatprep.subr.mxu0 0.0
    %2871 = vmatpush1.msra.mxu0 1.0
    %2872 = vmatprep.subr.mxu0 0.0
    %2873 = vmatpush1.msra.mxu0 1.0
    %2874 = vmatprep.subr.mxu0 0.0
    %2875 = vmatpush1.msra.mxu0 1.0
    %2876 = vmatprep.subr.mxu0 0.0
    %2877 = vmatpush1.msra.mxu0 1.0
    %2878 = vmatprep.subr.mxu0 0.0
    %2879 = vmatpush1.msra.mxu0 1.0
    %2880 = vmatprep.subr.mxu0 0.0
    %2881 = vmatpush1.msra.mxu0 1.0
    %2882 = vmatprep.subr.mxu0 0.0
    %2883 = vmatpush1.msra.mxu0 1.0
    %2884 = vmatprep.subr.mxu0 0.0
    %2885 = vmatpush1.msra.mxu0 1.0
    %2886 = vmatprep.subr.mxu0 0.0
    %2887 = vmatpush1.msra.mxu0 1.0
    %2888 = vmatprep.subr.mxu0 0.0
    %2889 = vmatpush1.msra.mxu0 1.0
    %2890 = vmatprep.subr.mxu0 0.0
    %2891 = vmatpush1.msra.mxu0 1.0
    %2892 = vmatprep.subr.mxu0 0.0
    %2893 = vmatpush1.msra.mxu0 1.0
    %2894 = vmatprep.subr.mxu0 0.0
    %2895 = vmatpush1.msra.mxu0 1.0
    %2896 = vmatprep.subr.mxu0 0.0
    %2897 = vmatpush1.msra.mxu0 1.0
    %2898 = vmatprep.subr.mxu0 0.0
    %2899 = vmatpush1.msra.mxu0 1.0
    %2900 = vmatprep.subr.mxu0 0.0
    %2901 = vmatpush1.msra.mxu0 1.0
    %2902 = vmatprep.subr.mxu0 0.0
    %2903 = vmatpush1.msra.mxu0 1.0
    %2904 = vmatprep.subr.mxu0 0.0
    %2905 = vmatpush1.msra.mxu0 1.0
    %2906 = vmatprep.subr.mxu0 0.0
    %2907 = vmatpush1.msra.mxu0 1.0
    %2908 = vmatprep.subr.mxu0 0.0
    %2909 = vmatpush1.msra.mxu0 1.0
    %2910 = vmatprep.subr.mxu0 0.0
    %2911 = vmatpush1.msra.mxu0 1.0
    %2912 = vmatprep.subr.mxu0 0.0
    %2913 = vmatpush1.msra.mxu0 1.0
    %2914 = vmatprep.subr.mxu0 0.0
    %2915 = vmatpush1.msra.mxu0 1.0
    %2916 = vmatprep.subr.mxu0 0.0
    %2917 = vmatpush1.msra.mxu0 1.0
    %2918 = vmatprep.subr.mxu0 0.0
    %2919 = vmatpush1.msra.mxu0 1.0
    %2920 = vmatprep.subr.mxu0 0.0
    %2921 = vmatpush1.msra.mxu0 1.0
    %2922 = vmatprep.subr.mxu0 0.0
    %2923 = vmatpush1.msra.mxu0 1.0
    %2924 = vmatprep.subr.mxu0 0.0
    %2925 = vmatpush1.msra.mxu0 1.0
    %2926 = vmatprep.subr.mxu0 0.0
    %2927 = vmatpush1.msra.mxu0 1.0
    %2928 = vmatprep.subr.mxu0 0.0
    %2929 = vmatpush1.msra.mxu0 1.0
    %2930 = vmatprep.subr.mxu0 0.0
    %2931 = vmatpush1.msra.mxu0 1.0
    %2932 = vmatprep.subr.mxu0 0.0
    %2933 = vmatpush1.msra.mxu0 1.0
    %2934 = vmatprep.mubr.f32.mxu0 %v2869
    %2935 = vmatmul.mubr.f32.gmra.mrb[0].mxu0 %v2868
    %v2936 = vpop.f32.mrb[0].mxu0
    %v2937 = vadd.f32 0.0, %v2936
    %v2938 = vpop.f32.mrb[0].mxu0
    %2939 = vdwg.mxu0
    %v2940 = vmul.f32 %v2865, 0.00390625
    %v2941 = vmul.f32 %v2937, 0.00390625
    %v2942 = vmul.f32 %v2940, %v2940
    %v2943 = vsub.f32 %v2941, %v2942
    %2945 = vset.pattern.permute.xlu0 0
    %2946 = vperm.xlu0 %2945, %v2940
    %v2947 = vpop.permute.xlu0 %2946
    %v2949 = vsub.f32 %v2796, %v2947
    %v2950 = vsub.f32 %v2797, %v2947
    %v2951 = vadd.f32 %v2943, 1e-05
    %v2952 = vrsqrt.pop %v2951
    %2954 = vset.pattern.permute.xlu0 0
    %2955 = vperm.xlu0 %2954, %v2952
    %v2956 = vpop.permute.xlu0 %2955
    %v2958 = vmul.f32 %v2949, %v2956
    %v2959 = vmul.f32 %v2950, %v2956
    %v2960 = vmax.f32 %v2958, 0.0
    %v2961 = vmax.f32 %v2959, 0.0
    %2963 = vrot.lane.b32.xlu0 %v2961, 16
    %v2964 = vpop.permute.xlu0 %2963
    %2967 = vrot.lane.b32.xlu0 %v2960, 16
    %v2968 = vpop.permute.xlu0 %2967
    %v2969 = vsel %vm29, %v2968, %v2964
    %v2972 = vsel %vm29, %v2964, %v2968
    %2973 = vrot.lane.b32.xlu0 %v2960, 112
    %v2974 = vpop.permute.xlu0 %2973
    %2975 = vrot.lane.b32.xlu0 %v2961, 112
    %v2976 = vpop.permute.xlu0 %2975
    %v2977 = vsel %vm38, %v2974, %v2976
    %v2981 = vsel %vm38, %v2976, %v2974
    %v2982 = vsel %vm61, %v2977, %v2972
    %v2983 = vsel %vm62, %v2981, %v2969
    %v2984 = vsel %vm81, %v2972, %v2977
    %v2985 = vsel %vm82, %v2969, %v2981
    %2987 = vrot.lane.b32.xlu0 %v2983, 1
    %v2988 = vpop.permute.xlu0 %2987
    %2991 = vrot.lane.b32.xlu0 %v2982, 1
    %v2992 = vpop.permute.xlu0 %2991
    %v2993 = vsel %vm92, %v2992, %v2988
    %v2996 = vsel %vm92, %v2988, %v2992
    %2997 = vrot.lane.b32.xlu0 %v2982, 127
    %v2998 = vpop.permute.xlu0 %2997
    %2999 = vrot.lane.b32.xlu0 %v2983, 127
    %v3000 = vpop.permute.xlu0 %2999
    %v3001 = vsel %vm101, %v2998, %v3000
    %v3005 = vsel %vm101, %v3000, %v2998
    %v3006 = vsel %vm123, %v3001, %v2996
    %v3007 = vsel %vm124, %v3005, %v2993
    %v3008 = vsel %vm143, %v2996, %v3001
    %v3009 = vsel %vm144, %v2993, %v3005
    %v3010 = vld [vmem:[%s3] sm:$0xff]
    %v3011 = vld [vmem:[%s1104] sm:$0xff]
    %v3013 = vsel %vm150, %v3011, 0
    %3015 = vmatprep.subr.mxu0 %v2983
    %3016 = vmatpush1.msra.mxu0 %v2982
    %3017 = vmatprep.subr.mxu0 0.0
    %3018 = vmatpush1.msra.mxu0 0.0
    %3019 = vmatprep.subr.mxu0 0.0
    %3020 = vmatpush1.msra.mxu0 0.0
    %3021 = vmatprep.subr.mxu0 0.0
    %3022 = vmatpush1.msra.mxu0 0.0
    %3023 = vmatprep.subr.mxu0 0.0
    %3024 = vmatpush1.msra.mxu0 0.0
    %3025 = vmatprep.subr.mxu0 0.0
    %3026 = vmatpush1.msra.mxu0 0.0
    %3027 = vmatprep.subr.mxu0 0.0
    %3028 = vmatpush1.msra.mxu0 0.0
    %3029 = vmatprep.subr.mxu0 0.0
    %3030 = vmatpush1.msra.mxu0 0.0
    %3031 = vmatprep.subr.mxu0 0.0
    %3032 = vmatpush1.msra.mxu0 0.0
    %3033 = vmatprep.subr.mxu0 0.0
    %3034 = vmatpush1.msra.mxu0 0.0
    %3035 = vmatprep.subr.mxu0 0.0
    %3036 = vmatpush1.msra.mxu0 0.0
    %3037 = vmatprep.subr.mxu0 0.0
    %3038 = vmatpush1.msra.mxu0 0.0
    %3039 = vmatprep.subr.mxu0 0.0
    %3040 = vmatpush1.msra.mxu0 0.0
    %3041 = vmatprep.subr.mxu0 0.0
    %3042 = vmatpush1.msra.mxu0 0.0
    %3043 = vmatprep.subr.mxu0 0.0
    %3044 = vmatpush1.msra.mxu0 0.0
    %3045 = vmatprep.subr.mxu0 0.0
    %3046 = vmatpush1.msra.mxu0 0.0
    %3047 = vmatprep.subr.mxu0 0.0
    %3048 = vmatpush1.msra.mxu0 0.0
    %3049 = vmatprep.subr.mxu0 0.0
    %3050 = vmatpush1.msra.mxu0 0.0
    %3051 = vmatprep.subr.mxu0 0.0
    %3052 = vmatpush1.msra.mxu0 0.0
    %3053 = vmatprep.subr.mxu0 0.0
    %3054 = vmatpush1.msra.mxu0 0.0
    %3055 = vmatprep.subr.mxu0 0.0
    %3056 = vmatpush1.msra.mxu0 0.0
    %3057 = vmatprep.subr.mxu0 0.0
    %3058 = vmatpush1.msra.mxu0 0.0
    %3059 = vmatprep.subr.mxu0 0.0
    %3060 = vmatpush1.msra.mxu0 0.0
    %3061 = vmatprep.subr.mxu0 0.0
    %3062 = vmatpush1.msra.mxu0 0.0
    %3063 = vmatprep.subr.mxu0 0.0
    %3064 = vmatpush1.msra.mxu0 0.0
    %3065 = vmatprep.subr.mxu0 0.0
    %3066 = vmatpush1.msra.mxu0 0.0
    %3067 = vmatprep.subr.mxu0 0.0
    %3068 = vmatpush1.msra.mxu0 0.0
    %3069 = vmatprep.subr.mxu0 0.0
    %3070 = vmatpush1.msra.mxu0 0.0
    %3071 = vmatprep.subr.mxu0 0.0
    %3072 = vmatpush1.msra.mxu0 0.0
    %3073 = vmatprep.subr.mxu0 0.0
    %3074 = vmatpush1.msra.mxu0 0.0
    %3075 = vmatprep.subr.mxu0 0.0
    %3076 = vmatpush1.msra.mxu0 0.0
    %3077 = vmatprep.subr.mxu0 0.0
    %3078 = vmatpush1.msra.mxu0 0.0
    %3079 = vmatprep.mubr.f32.mxu0 0.0
    %3080 = vmatmul.mubr.f32.gmra.mrb[0].mxu0 %v3013
    %v3081 = vpop.f32.mrb[0].mxu0
    %v3082 = vadd.f32 0.0, %v3081
    %v3083 = vpop.f32.mrb[0].mxu0
    %v3084 = vadd.f32 0.0, %v3083
    %3085 = vdwg.mxu0
    %v3087 = vsel %vm150, %v3010, 0
    %3089 = vmatprep.subr.mxu0 %v3007
    %3090 = vmatpush1.msra.mxu0 %v3006
    %3091 = vmatprep.subr.mxu0 0.0
    %3092 = vmatpush1.msra.mxu0 0.0
    %3093 = vmatprep.subr.mxu0 0.0
    %3094 = vmatpush1.msra.mxu0 0.0
    %3095 = vmatprep.subr.mxu0 0.0
    %3096 = vmatpush1.msra.mxu0 0.0
    %3097 = vmatprep.subr.mxu0 0.0
    %3098 = vmatpush1.msra.mxu0 0.0
    %3099 = vmatprep.subr.mxu0 0.0
    %3100 = vmatpush1.msra.mxu0 0.0
    %3101 = vmatprep.subr.mxu0 0.0
    %3102 = vmatpush1.msra.mxu0 0.0
    %3103 = vmatprep.subr.mxu0 0.0
    %3104 = vmatpush1.msra.mxu0 0.0
    %3105 = vmatprep.subr.mxu0 0.0
    %3106 = vmatpush1.msra.mxu0 0.0
    %3107 = vmatprep.subr.mxu0 0.0
    %3108 = vmatpush1.msra.mxu0 0.0
    %3109 = vmatprep.subr.mxu0 0.0
    %3110 = vmatpush1.msra.mxu0 0.0
    %3111 = vmatprep.subr.mxu0 0.0
    %3112 = vmatpush1.msra.mxu0 0.0
    %3113 = vmatprep.subr.mxu0 0.0
    %3114 = vmatpush1.msra.mxu0 0.0
    %3115 = vmatprep.subr.mxu0 0.0
    %3116 = vmatpush1.msra.mxu0 0.0
    %3117 = vmatprep.subr.mxu0 0.0
    %3118 = vmatpush1.msra.mxu0 0.0
    %3119 = vmatprep.subr.mxu0 0.0
    %3120 = vmatpush1.msra.mxu0 0.0
    %3121 = vmatprep.subr.mxu0 0.0
    %3122 = vmatpush1.msra.mxu0 0.0
    %3123 = vmatprep.subr.mxu0 0.0
    %3124 = vmatpush1.msra.mxu0 0.0
    %3125 = vmatprep.subr.mxu0 0.0
    %3126 = vmatpush1.msra.mxu0 0.0
    %3127 = vmatprep.subr.mxu0 0.0
    %3128 = vmatpush1.msra.mxu0 0.0
    %3129 = vmatprep.subr.mxu0 0.0
    %3130 = vmatpush1.msra.mxu0 0.0
    %3131 = vmatprep.subr.mxu0 0.0
    %3132 = vmatpush1.msra.mxu0 0.0
    %3133 = vmatprep.subr.mxu0 0.0
    %3134 = vmatpush1.msra.mxu0 0.0
    %3135 = vmatprep.subr.mxu0 0.0
    %3136 = vmatpush1.msra.mxu0 0.0
    %3137 = vmatprep.subr.mxu0 0.0
    %3138 = vmatpush1.msra.mxu0 0.0
    %3139 = vmatprep.subr.mxu0 0.0
    %3140 = vmatpush1.msra.mxu0 0.0
    %3141 = vmatprep.subr.mxu0 0.0
    %3142 = vmatpush1.msra.mxu0 0.0
    %3143 = vmatprep.subr.mxu0 0.0
    %3144 = vmatpush1.msra.mxu0 0.0
    %3145 = vmatprep.subr.mxu0 0.0
    %3146 = vmatpush1.msra.mxu0 0.0
    %3147 = vmatprep.subr.mxu0 0.0
    %3148 = vmatpush1.msra.mxu0 0.0
    %3149 = vmatprep.subr.mxu0 0.0
    %3150 = vmatpush1.msra.mxu0 0.0
    %3151 = vmatprep.subr.mxu0 0.0
    %3152 = vmatpush1.msra.mxu0 0.0
    %3153 = vmatprep.mubr.f32.mxu0 0.0
    %3154 = vmatmul.mubr.f32.gmra.mrb[0].mxu0 %v3087
    %v3155 = vpop.f32.mrb[0].mxu0
    %v3156 = vadd.f32 %v3082, %v3155
    %v3157 = vpop.f32.mrb[0].mxu0
    %v3158 = vadd.f32 %v3084, %v3157
    %3159 = vdwg.mxu0
    %v3160 = vld [vmem:[%s1254] sm:$0xff]
    %v3162 = vsel %vm150, %v3160, 0
    %3164 = vmatprep.subr.mxu0 %v3009
    %3165 = vmatpush1.msra.mxu0 %v3008
    %3166 = vmatprep.subr.mxu0 0.0
    %3167 = vmatpush1.msra.mxu0 0.0
    %3168 = vmatprep.subr.mxu0 0.0
    %3169 = vmatpush1.msra.mxu0 0.0
    %3170 = vmatprep.subr.mxu0 0.0
    %3171 = vmatpush1.msra.mxu0 0.0
    %3172 = vmatprep.subr.mxu0 0.0
    %3173 = vmatpush1.msra.mxu0 0.0
    %3174 = vmatprep.subr.mxu0 0.0
    %3175 = vmatpush1.msra.mxu0 0.0
    %3176 = vmatprep.subr.mxu0 0.0
    %3177 = vmatpush1.msra.mxu0 0.0
    %3178 = vmatprep.subr.mxu0 0.0
    %3179 = vmatpush1.msra.mxu0 0.0
    %3180 = vmatprep.subr.mxu0 0.0
    %3181 = vmatpush1.msra.mxu0 0.0
    %3182 = vmatprep.subr.mxu0 0.0
    %3183 = vmatpush1.msra.mxu0 0.0
    %3184 = vmatprep.subr.mxu0 0.0
    %3185 = vmatpush1.msra.mxu0 0.0
    %3186 = vmatprep.subr.mxu0 0.0
    %3187 = vmatpush1.msra.mxu0 0.0
    %3188 = vmatprep.subr.mxu0 0.0
    %3189 = vmatpush1.msra.mxu0 0.0
    %3190 = vmatprep.subr.mxu0 0.0
    %3191 = vmatpush1.msra.mxu0 0.0
    %3192 = vmatprep.subr.mxu0 0.0
    %3193 = vmatpush1.msra.mxu0 0.0
    %3194 = vmatprep.subr.mxu0 0.0
    %3195 = vmatpush1.msra.mxu0 0.0
    %3196 = vmatprep.subr.mxu0 0.0
    %3197 = vmatpush1.msra.mxu0 0.0
    %3198 = vmatprep.subr.mxu0 0.0
    %3199 = vmatpush1.msra.mxu0 0.0
    %3200 = vmatprep.subr.mxu0 0.0
    %3201 = vmatpush1.msra.mxu0 0.0
    %3202 = vmatprep.subr.mxu0 0.0
    %3203 = vmatpush1.msra.mxu0 0.0
    %3204 = vmatprep.subr.mxu0 0.0
    %3205 = vmatpush1.msra.mxu0 0.0
    %3206 = vmatprep.subr.mxu0 0.0
    %3207 = vmatpush1.msra.mxu0 0.0
    %3208 = vmatprep.subr.mxu0 0.0
    %3209 = vmatpush1.msra.mxu0 0.0
    %3210 = vmatprep.subr.mxu0 0.0
    %3211 = vmatpush1.msra.mxu0 0.0
    %3212 = vmatprep.subr.mxu0 0.0
    %3213 = vmatpush1.msra.mxu0 0.0
    %3214 = vmatprep.subr.mxu0 0.0
    %3215 = vmatpush1.msra.mxu0 0.0
    %3216 = vmatprep.subr.mxu0 0.0
    %3217 = vmatpush1.msra.mxu0 0.0
    %3218 = vmatprep.subr.mxu0 0.0
    %3219 = vmatpush1.msra.mxu0 0.0
    %3220 = vmatprep.subr.mxu0 0.0
    %3221 = vmatpush1.msra.mxu0 0.0
    %3222 = vmatprep.subr.mxu0 0.0
    %3223 = vmatpush1.msra.mxu0 0.0
    %3224 = vmatprep.subr.mxu0 0.0
    %3225 = vmatpush1.msra.mxu0 0.0
    %3226 = vmatprep.subr.mxu0 0.0
    %3227 = vmatpush1.msra.mxu0 0.0
    %3228 = vmatprep.mubr.f32.mxu0 0.0
    %3229 = vmatmul.mubr.f32.gmra.mrb[0].mxu0 %v3162
    %v3230 = vpop.f32.mrb[0].mxu0
    %v3231 = vadd.f32 0.0, %v3230
    %v3232 = vpop.f32.mrb[0].mxu0
    %v3233 = vadd.f32 0.0, %v3232
    %3234 = vdwg.mxu0
    %v3235 = vadd.f32 %v3156, %v3231
    %v3236 = vadd.f32 %v3158, %v3233
    %3237 = vrot.lane.b32.xlu0 %v2961, 1
    %v3238 = vpop.permute.xlu0 %3237
    %3240 = vrot.lane.b32.xlu0 %v2960, 1
    %v3241 = vpop.permute.xlu0 %3240
    %v3242 = vsel %vm92, %v3241, %v3238
    %v3245 = vsel %vm92, %v3238, %v3241
    %3246 = vrot.lane.b32.xlu0 %v2960, 127
    %v3247 = vpop.permute.xlu0 %3246
    %3248 = vrot.lane.b32.xlu0 %v2961, 127
    %v3249 = vpop.permute.xlu0 %3248
    %v3250 = vsel %vm101, %v3247, %v3249
    %v3254 = vsel %vm101, %v3249, %v3247
    %v3255 = vsel %vm123, %v3250, %v3245
    %v3256 = vsel %vm124, %v3254, %v3242
    %v3257 = vsel %vm143, %v3245, %v3250
    %v3258 = vsel %vm144, %v3242, %v3254
    %v3259 = vld [vmem:[%s1354] sm:$0xff]
    %v3261 = vsel %vm150, %v3259, 0
    %3263 = vmatprep.subr.mxu0 %v3256
    %3264 = vmatpush1.msra.mxu0 %v3255
    %3265 = vmatprep.subr.mxu0 0.0
    %3266 = vmatpush1.msra.mxu0 0.0
    %3267 = vmatprep.subr.mxu0 0.0
    %3268 = vmatpush1.msra.mxu0 0.0
    %3269 = vmatprep.subr.mxu0 0.0
    %3270 = vmatpush1.msra.mxu0 0.0
    %3271 = vmatprep.subr.mxu0 0.0
    %3272 = vmatpush1.msra.mxu0 0.0
    %3273 = vmatprep.subr.mxu0 0.0
    %3274 = vmatpush1.msra.mxu0 0.0
    %3275 = vmatprep.subr.mxu0 0.0
    %3276 = vmatpush1.msra.mxu0 0.0
    %3277 = vmatprep.subr.mxu0 0.0
    %3278 = vmatpush1.msra.mxu0 0.0
    %3279 = vmatprep.subr.mxu0 0.0
    %3280 = vmatpush1.msra.mxu0 0.0
    %3281 = vmatprep.subr.mxu0 0.0
    %3282 = vmatpush1.msra.mxu0 0.0
    %3283 = vmatprep.subr.mxu0 0.0
    %3284 = vmatpush1.msra.mxu0 0.0
    %3285 = vmatprep.subr.mxu0 0.0
    %3286 = vmatpush1.msra.mxu0 0.0
    %3287 = vmatprep.subr.mxu0 0.0
    %3288 = vmatpush1.msra.mxu0 0.0
    %3289 = vmatprep.subr.mxu0 0.0
    %3290 = vmatpush1.msra.mxu0 0.0
    %3291 = vmatprep.subr.mxu0 0.0
    %3292 = vmatpush1.msra.mxu0 0.0
    %3293 = vmatprep.subr.mxu0 0.0
    %3294 = vmatpush1.msra.mxu0 0.0
    %3295 = vmatprep.subr.mxu0 0.0
    %3296 = vmatpush1.msra.mxu0 0.0
    %3297 = vmatprep.subr.mxu0 0.0
    %3298 = vmatpush1.msra.mxu0 0.0
    %3299 = vmatprep.subr.mxu0 0.0
    %3300 = vmatpush1.msra.mxu0 0.0
    %3301 = vmatprep.subr.mxu0 0.0
    %3302 = vmatpush1.msra.mxu0 0.0
    %3303 = vmatprep.subr.mxu0 0.0
    %3304 = vmatpush1.msra.mxu0 0.0
    %3305 = vmatprep.subr.mxu0 0.0
    %3306 = vmatpush1.msra.mxu0 0.0
    %3307 = vmatprep.subr.mxu0 0.0
    %3308 = vmatpush1.msra.mxu0 0.0
    %3309 = vmatprep.subr.mxu0 0.0
    %3310 = vmatpush1.msra.mxu0 0.0
    %3311 = vmatprep.subr.mxu0 0.0
    %3312 = vmatpush1.msra.mxu0 0.0
    %3313 = vmatprep.subr.mxu0 0.0
    %3314 = vmatpush1.msra.mxu0 0.0
    %3315 = vmatprep.subr.mxu0 0.0
    %3316 = vmatpush1.msra.mxu0 0.0
    %3317 = vmatprep.subr.mxu0 0.0
    %3318 = vmatpush1.msra.mxu0 0.0
    %3319 = vmatprep.subr.mxu0 0.0
    %3320 = vmatpush1.msra.mxu0 0.0
    %3321 = vmatprep.subr.mxu0 0.0
    %3322 = vmatpush1.msra.mxu0 0.0
    %3323 = vmatprep.subr.mxu0 0.0
    %3324 = vmatpush1.msra.mxu0 0.0
    %3325 = vmatprep.subr.mxu0 0.0
    %3326 = vmatpush1.msra.mxu0 0.0
    %3327 = vmatprep.mubr.f32.mxu0 0.0
    %3328 = vmatmul.mubr.f32.gmra.mrb[0].mxu0 %v3261
    %v3329 = vpop.f32.mrb[0].mxu0
    %v3330 = vadd.f32 0.0, %v3329
    %v3331 = vpop.f32.mrb[0].mxu0
    %v3332 = vadd.f32 0.0, %v3331
    %3333 = vdwg.mxu0
    %v3334 = vadd.f32 %v3235, %v3330
    %v3335 = vadd.f32 %v3236, %v3332
    %v3336 = vld [vmem:[%s1432] sm:$0xff]
    %v3338 = vsel %vm150, %v3336, 0
    %3340 = vmatprep.subr.mxu0 %v2961
    %3341 = vmatpush1.msra.mxu0 %v2960
    %3342 = vmatprep.subr.mxu0 0.0
    %3343 = vmatpush1.msra.mxu0 0.0
    %3344 = vmatprep.subr.mxu0 0.0
    %3345 = vmatpush1.msra.mxu0 0.0
    %3346 = vmatprep.subr.mxu0 0.0
    %3347 = vmatpush1.msra.mxu0 0.0
    %3348 = vmatprep.subr.mxu0 0.0
    %3349 = vmatpush1.msra.mxu0 0.0
    %3350 = vmatprep.subr.mxu0 0.0
    %3351 = vmatpush1.msra.mxu0 0.0
    %3352 = vmatprep.subr.mxu0 0.0
    %3353 = vmatpush1.msra.mxu0 0.0
    %3354 = vmatprep.subr.mxu0 0.0
    %3355 = vmatpush1.msra.mxu0 0.0
    %3356 = vmatprep.subr.mxu0 0.0
    %3357 = vmatpush1.msra.mxu0 0.0
    %3358 = vmatprep.subr.mxu0 0.0
    %3359 = vmatpush1.msra.mxu0 0.0
    %3360 = vmatprep.subr.mxu0 0.0
    %3361 = vmatpush1.msra.mxu0 0.0
    %3362 = vmatprep.subr.mxu0 0.0
    %3363 = vmatpush1.msra.mxu0 0.0
    %3364 = vmatprep.subr.mxu0 0.0
    %3365 = vmatpush1.msra.mxu0 0.0
    %3366 = vmatprep.subr.mxu0 0.0
    %3367 = vmatpush1.msra.mxu0 0.0
    %3368 = vmatprep.subr.mxu0 0.0
    %3369 = vmatpush1.msra.mxu0 0.0
    %3370 = vmatprep.subr.mxu0 0.0
    %3371 = vmatpush1.msra.mxu0 0.0
    %3372 = vmatprep.subr.mxu0 0.0
    %3373 = vmatpush1.msra.mxu0 0.0
    %3374 = vmatprep.subr.mxu0 0.0
    %3375 = vmatpush1.msra.mxu0 0.0
    %3376 = vmatprep.subr.mxu0 0.0
    %3377 = vmatpush1.msra.mxu0 0.0
    %3378 = vmatprep.subr.mxu0 0.0
    %3379 = vmatpush1.msra.mxu0 0.0
    %3380 = vmatprep.subr.mxu0 0.0
    %3381 = vmatpush1.msra.mxu0 0.0
    %3382 = vmatprep.subr.mxu0 0.0
    %3383 = vmatpush1.msra.mxu0 0.0
    %3384 = vmatprep.subr.mxu0 0.0
    %3385 = vmatpush1.msra.mxu0 0.0
    %3386 = vmatprep.subr.mxu0 0.0
    %3387 = vmatpush1.msra.mxu0 0.0
    %3388 = vmatprep.subr.mxu0 0.0
    %3389 = vmatpush1.msra.mxu0 0.0
    %3390 = vmatprep.subr.mxu0 0.0
    %3391 = vmatpush1.msra.mxu0 0.0
    %3392 = vmatprep.subr.mxu0 0.0
    %3393 = vmatpush1.msra.mxu0 0.0
    %3394 = vmatprep.subr.mxu0 0.0
    %3395 = vmatpush1.msra.mxu0 0.0
    %3396 = vmatprep.subr.mxu0 0.0
    %3397 = vmatpush1.msra.mxu0 0.0
    %3398 = vmatprep.subr.mxu0 0.0
    %3399 = vmatpush1.msra.mxu0 0.0
    %3400 = vmatprep.subr.mxu0 0.0
    %3401 = vmatpush1.msra.mxu0 0.0
    %3402 = vmatprep.subr.mxu0 0.0
    %3403 = vmatpush1.msra.mxu0 0.0
    %3404 = vmatprep.mubr.f32.mxu0 0.0
    %3405 = vmatmul.mubr.f32.gmra.mrb[0].mxu0 %v3338
    %v3406 = vpop.f32.mrb[0].mxu0
    %v3407 = vadd.f32 0.0, %v3406
    %v3408 = vpop.f32.mrb[0].mxu0
    %v3409 = vadd.f32 0.0, %v3408
    %3410 = vdwg.mxu0
    %v3411 = vadd.f32 %v3334, %v3407
    %v3412 = vadd.f32 %v3335, %v3409
    %v3413 = vld [vmem:[%s1510] sm:$0xff]
    %v3415 = vsel %vm150, %v3413, 0
    %3417 = vmatprep.subr.mxu0 %v3258
    %3418 = vmatpush1.msra.mxu0 %v3257
    %3419 = vmatprep.subr.mxu0 0.0
    %3420 = vmatpush1.msra.mxu0 0.0
    %3421 = vmatprep.subr.mxu0 0.0
    %3422 = vmatpush1.msra.mxu0 0.0
    %3423 = vmatprep.subr.mxu0 0.0
    %3424 = vmatpush1.msra.mxu0 0.0
    %3425 = vmatprep.subr.mxu0 0.0
    %3426 = vmatpush1.msra.mxu0 0.0
    %3427 = vmatprep.subr.mxu0 0.0
    %3428 = vmatpush1.msra.mxu0 0.0
    %3429 = vmatprep.subr.mxu0 0.0
    %3430 = vmatpush1.msra.mxu0 0.0
    %3431 = vmatprep.subr.mxu0 0.0
    %3432 = vmatpush1.msra.mxu0 0.0
    %3433 = vmatprep.subr.mxu0 0.0
    %3434 = vmatpush1.msra.mxu0 0.0
    %3435 = vmatprep.subr.mxu0 0.0
    %3436 = vmatpush1.msra.mxu0 0.0
    %3437 = vmatprep.subr.mxu0 0.0
    %3438 = vmatpush1.msra.mxu0 0.0
    %3439 = vmatprep.subr.mxu0 0.0
    %3440 = vmatpush1.msra.mxu0 0.0
    %3441 = vmatprep.subr.mxu0 0.0
    %3442 = vmatpush1.msra.mxu0 0.0
    %3443 = vmatprep.subr.mxu0 0.0
    %3444 = vmatpush1.msra.mxu0 0.0
    %3445 = vmatprep.subr.mxu0 0.0
    %3446 = vmatpush1.msra.mxu0 0.0
    %3447 = vmatprep.subr.mxu0 0.0
    %3448 = vmatpush1.msra.mxu0 0.0
    %3449 = vmatprep.subr.mxu0 0.0
    %3450 = vmatpush1.msra.mxu0 0.0
    %3451 = vmatprep.subr.mxu0 0.0
    %3452 = vmatpush1.msra.mxu0 0.0
    %3453 = vmatprep.subr.mxu0 0.0
    %3454 = vmatpush1.msra.mxu0 0.0
    %3455 = vmatprep.subr.mxu0 0.0
    %3456 = vmatpush1.msra.mxu0 0.0
    %3457 = vmatprep.subr.mxu0 0.0
    %3458 = vmatpush1.msra.mxu0 0.0
    %3459 = vmatprep.subr.mxu0 0.0
    %3460 = vmatpush1.msra.mxu0 0.0
    %3461 = vmatprep.subr.mxu0 0.0
    %3462 = vmatpush1.msra.mxu0 0.0
    %3463 = vmatprep.subr.mxu0 0.0
    %3464 = vmatpush1.msra.mxu0 0.0
    %3465 = vmatprep.subr.mxu0 0.0
    %3466 = vmatpush1.msra.mxu0 0.0
    %3467 = vmatprep.subr.mxu0 0.0
    %3468 = vmatpush1.msra.mxu0 0.0
    %3469 = vmatprep.subr.mxu0 0.0
    %3470 = vmatpush1.msra.mxu0 0.0
    %3471 = vmatprep.subr.mxu0 0.0
    %3472 = vmatpush1.msra.mxu0 0.0
    %3473 = vmatprep.subr.mxu0 0.0
    %3474 = vmatpush1.msra.mxu0 0.0
    %3475 = vmatprep.subr.mxu0 0.0
    %3476 = vmatpush1.msra.mxu0 0.0
    %3477 = vmatprep.subr.mxu0 0.0
    %3478 = vmatpush1.msra.mxu0 0.0
    %3479 = vmatprep.subr.mxu0 0.0
    %3480 = vmatpush1.msra.mxu0 0.0
    %3481 = vmatprep.mubr.f32.mxu0 0.0
    %3482 = vmatmul.mubr.f32.gmra.mrb[0].mxu0 %v3415
    %v3483 = vpop.f32.mrb[0].mxu0
    %v3484 = vadd.f32 0.0, %v3483
    %v3485 = vpop.f32.mrb[0].mxu0
    %v3486 = vadd.f32 0.0, %v3485
    %3487 = vdwg.mxu0
    %v3488 = vadd.f32 %v3411, %v3484
    %v3489 = vadd.f32 %v3412, %v3486
    %3491 = vrot.lane.b32.xlu0 %v2985, 1
    %v3492 = vpop.permute.xlu0 %3491
    %3495 = vrot.lane.b32.xlu0 %v2984, 1
    %v3496 = vpop.permute.xlu0 %3495
    %v3497 = vsel %vm92, %v3496, %v3492
    %v3500 = vsel %vm92, %v3492, %v3496
    %3501 = vrot.lane.b32.xlu0 %v2984, 127
    %v3502 = vpop.permute.xlu0 %3501
    %3503 = vrot.lane.b32.xlu0 %v2985, 127
    %v3504 = vpop.permute.xlu0 %3503
    %v3505 = vsel %vm101, %v3502, %v3504
    %v3509 = vsel %vm101, %v3504, %v3502
    %v3510 = vsel %vm123, %v3505, %v3500
    %v3511 = vsel %vm124, %v3509, %v3497
    %v3512 = vsel %vm143, %v3500, %v3505
    %v3513 = vsel %vm144, %v3497, %v3509
    %v3514 = vld [vmem:[%s1612] sm:$0xff]
    %v3516 = vsel %vm150, %v3514, 0
    %3518 = vmatprep.subr.mxu0 %v3511
    %3519 = vmatpush1.msra.mxu0 %v3510
    %3520 = vmatprep.subr.mxu0 0.0
    %3521 = vmatpush1.msra.mxu0 0.0
    %3522 = vmatprep.subr.mxu0 0.0
    %3523 = vmatpush1.msra.mxu0 0.0
    %3524 = vmatprep.subr.mxu0 0.0
    %3525 = vmatpush1.msra.mxu0 0.0
    %3526 = vmatprep.subr.mxu0 0.0
    %3527 = vmatpush1.msra.mxu0 0.0
    %3528 = vmatprep.subr.mxu0 0.0
    %3529 = vmatpush1.msra.mxu0 0.0
    %3530 = vmatprep.subr.mxu0 0.0
    %3531 = vmatpush1.msra.mxu0 0.0
    %3532 = vmatprep.subr.mxu0 0.0
    %3533 = vmatpush1.msra.mxu0 0.0
    %3534 = vmatprep.subr.mxu0 0.0
    %3535 = vmatpush1.msra.mxu0 0.0
    %3536 = vmatprep.subr.mxu0 0.0
    %3537 = vmatpush1.msra.mxu0 0.0
    %3538 = vmatprep.subr.mxu0 0.0
    %3539 = vmatpush1.msra.mxu0 0.0
    %3540 = vmatprep.subr.mxu0 0.0
    %3541 = vmatpush1.msra.mxu0 0.0
    %3542 = vmatprep.subr.mxu0 0.0
    %3543 = vmatpush1.msra.mxu0 0.0
    %3544 = vmatprep.subr.mxu0 0.0
    %3545 = vmatpush1.msra.mxu0 0.0
    %3546 = vmatprep.subr.mxu0 0.0
    %3547 = vmatpush1.msra.mxu0 0.0
    %3548 = vmatprep.subr.mxu0 0.0
    %3549 = vmatpush1.msra.mxu0 0.0
    %3550 = vmatprep.subr.mxu0 0.0
    %3551 = vmatpush1.msra.mxu0 0.0
    %3552 = vmatprep.subr.mxu0 0.0
    %3553 = vmatpush1.msra.mxu0 0.0
    %3554 = vmatprep.subr.mxu0 0.0
    %3555 = vmatpush1.msra.mxu0 0.0
    %3556 = vmatprep.subr.mxu0 0.0
    %3557 = vmatpush1.msra.mxu0 0.0
    %3558 = vmatprep.subr.mxu0 0.0
    %3559 = vmatpush1.msra.mxu0 0.0
    %3560 = vmatprep.subr.mxu0 0.0
    %3561 = vmatpush1.msra.mxu0 0.0
    %3562 = vmatprep.subr.mxu0 0.0
    %3563 = vmatpush1.msra.mxu0 0.0
    %3564 = vmatprep.subr.mxu0 0.0
    %3565 = vmatpush1.msra.mxu0 0.0
    %3566 = vmatprep.subr.mxu0 0.0
    %3567 = vmatpush1.msra.mxu0 0.0
    %3568 = vmatprep.subr.mxu0 0.0
    %3569 = vmatpush1.msra.mxu0 0.0
    %3570 = vmatprep.subr.mxu0 0.0
    %3571 = vmatpush1.msra.mxu0 0.0
    %3572 = vmatprep.subr.mxu0 0.0
    %3573 = vmatpush1.msra.mxu0 0.0
    %3574 = vmatprep.subr.mxu0 0.0
    %3575 = vmatpush1.msra.mxu0 0.0
    %3576 = vmatprep.subr.mxu0 0.0
    %3577 = vmatpush1.msra.mxu0 0.0
    %3578 = vmatprep.subr.mxu0 0.0
    %3579 = vmatpush1.msra.mxu0 0.0
    %3580 = vmatprep.subr.mxu0 0.0
    %3581 = vmatpush1.msra.mxu0 0.0
    %3582 = vmatprep.mubr.f32.mxu0 0.0
    %3583 = vmatmul.mubr.f32.gmra.mrb[0].mxu0 %v3516
    %v3584 = vpop.f32.mrb[0].mxu0
    %v3585 = vadd.f32 0.0, %v3584
    %v3586 = vpop.f32.mrb[0].mxu0
    %v3587 = vadd.f32 0.0, %v3586
    %3588 = vdwg.mxu0
    %v3589 = vadd.f32 %v3488, %v3585
    %v3590 = vadd.f32 %v3489, %v3587
    %v3591 = vld [vmem:[%s1690] sm:$0xff]
    %v3593 = vsel %vm150, %v3591, 0
    %3595 = vmatprep.subr.mxu0 %v2985
    %3596 = vmatpush1.msra.mxu0 %v2984
    %3597 = vmatprep.subr.mxu0 0.0
    %3598 = vmatpush1.msra.mxu0 0.0
    %3599 = vmatprep.subr.mxu0 0.0
    %3600 = vmatpush1.msra.mxu0 0.0
    %3601 = vmatprep.subr.mxu0 0.0
    %3602 = vmatpush1.msra.mxu0 0.0
    %3603 = vmatprep.subr.mxu0 0.0
    %3604 = vmatpush1.msra.mxu0 0.0
    %3605 = vmatprep.subr.mxu0 0.0
    %3606 = vmatpush1.msra.mxu0 0.0
    %3607 = vmatprep.subr.mxu0 0.0
    %3608 = vmatpush1.msra.mxu0 0.0
    %3609 = vmatprep.subr.mxu0 0.0
    %3610 = vmatpush1.msra.mxu0 0.0
    %3611 = vmatprep.subr.mxu0 0.0
    %3612 = vmatpush1.msra.mxu0 0.0
    %3613 = vmatprep.subr.mxu0 0.0
    %3614 = vmatpush1.msra.mxu0 0.0
    %3615 = vmatprep.subr.mxu0 0.0
    %3616 = vmatpush1.msra.mxu0 0.0
    %3617 = vmatprep.subr.mxu0 0.0
    %3618 = vmatpush1.msra.mxu0 0.0
    %3619 = vmatprep.subr.mxu0 0.0
    %3620 = vmatpush1.msra.mxu0 0.0
    %3621 = vmatprep.subr.mxu0 0.0
    %3622 = vmatpush1.msra.mxu0 0.0
    %3623 = vmatprep.subr.mxu0 0.0
    %3624 = vmatpush1.msra.mxu0 0.0
    %3625 = vmatprep.subr.mxu0 0.0
    %3626 = vmatpush1.msra.mxu0 0.0
    %3627 = vmatprep.subr.mxu0 0.0
    %3628 = vmatpush1.msra.mxu0 0.0
    %3629 = vmatprep.subr.mxu0 0.0
    %3630 = vmatpush1.msra.mxu0 0.0
    %3631 = vmatprep.subr.mxu0 0.0
    %3632 = vmatpush1.msra.mxu0 0.0
    %3633 = vmatprep.subr.mxu0 0.0
    %3634 = vmatpush1.msra.mxu0 0.0
    %3635 = vmatprep.subr.mxu0 0.0
    %3636 = vmatpush1.msra.mxu0 0.0
    %3637 = vmatprep.subr.mxu0 0.0
    %3638 = vmatpush1.msra.mxu0 0.0
    %3639 = vmatprep.subr.mxu0 0.0
    %3640 = vmatpush1.msra.mxu0 0.0
    %3641 = vmatprep.subr.mxu0 0.0
    %3642 = vmatpush1.msra.mxu0 0.0
    %3643 = vmatprep.subr.mxu0 0.0
    %3644 = vmatpush1.msra.mxu0 0.0
    %3645 = vmatprep.subr.mxu0 0.0
    %3646 = vmatpush1.msra.mxu0 0.0
    %3647 = vmatprep.subr.mxu0 0.0
    %3648 = vmatpush1.msra.mxu0 0.0
    %3649 = vmatprep.subr.mxu0 0.0
    %3650 = vmatpush1.msra.mxu0 0.0
    %3651 = vmatprep.subr.mxu0 0.0
    %3652 = vmatpush1.msra.mxu0 0.0
    %3653 = vmatprep.subr.mxu0 0.0
    %3654 = vmatpush1.msra.mxu0 0.0
    %3655 = vmatprep.subr.mxu0 0.0
    %3656 = vmatpush1.msra.mxu0 0.0
    %3657 = vmatprep.subr.mxu0 0.0
    %3658 = vmatpush1.msra.mxu0 0.0
    %3659 = vmatprep.mubr.f32.mxu0 0.0
    %3660 = vmatmul.mubr.f32.gmra.mrb[0].mxu0 %v3593
    %v3661 = vpop.f32.mrb[0].mxu0
    %v3662 = vadd.f32 0.0, %v3661
    %v3663 = vpop.f32.mrb[0].mxu0
    %v3664 = vadd.f32 0.0, %v3663
    %3665 = vdwg.mxu0
    %v3666 = vadd.f32 %v3589, %v3662
    %v3667 = vadd.f32 %v3590, %v3664
    %v3668 = vld [vmem:[%s1768] sm:$0xff]
    %v3670 = vsel %vm150, %v3668, 0
    %3672 = vmatprep.subr.mxu0 %v3513
    %3673 = vmatpush1.msra.mxu0 %v3512
    %3674 = vmatprep.subr.mxu0 0.0
    %3675 = vmatpush1.msra.mxu0 0.0
    %3676 = vmatprep.subr.mxu0 0.0
    %3677 = vmatpush1.msra.mxu0 0.0
    %3678 = vmatprep.subr.mxu0 0.0
    %3679 = vmatpush1.msra.mxu0 0.0
    %3680 = vmatprep.subr.mxu0 0.0
    %3681 = vmatpush1.msra.mxu0 0.0
    %3682 = vmatprep.subr.mxu0 0.0
    %3683 = vmatpush1.msra.mxu0 0.0
    %3684 = vmatprep.subr.mxu0 0.0
    %3685 = vmatpush1.msra.mxu0 0.0
    %3686 = vmatprep.subr.mxu0 0.0
    %3687 = vmatpush1.msra.mxu0 0.0
    %3688 = vmatprep.subr.mxu0 0.0
    %3689 = vmatpush1.msra.mxu0 0.0
    %3690 = vmatprep.subr.mxu0 0.0
    %3691 = vmatpush1.msra.mxu0 0.0
    %3692 = vmatprep.subr.mxu0 0.0
    %3693 = vmatpush1.msra.mxu0 0.0
    %3694 = vmatprep.subr.mxu0 0.0
    %3695 = vmatpush1.msra.mxu0 0.0
    %3696 = vmatprep.subr.mxu0 0.0
    %3697 = vmatpush1.msra.mxu0 0.0
    %3698 = vmatprep.subr.mxu0 0.0
    %3699 = vmatpush1.msra.mxu0 0.0
    %3700 = vmatprep.subr.mxu0 0.0
    %3701 = vmatpush1.msra.mxu0 0.0
    %3702 = vmatprep.subr.mxu0 0.0
    %3703 = vmatpush1.msra.mxu0 0.0
    %3704 = vmatprep.subr.mxu0 0.0
    %3705 = vmatpush1.msra.mxu0 0.0
    %3706 = vmatprep.subr.mxu0 0.0
    %3707 = vmatpush1.msra.mxu0 0.0
    %3708 = vmatprep.subr.mxu0 0.0
    %3709 = vmatpush1.msra.mxu0 0.0
    %3710 = vmatprep.subr.mxu0 0.0
    %3711 = vmatpush1.msra.mxu0 0.0
    %3712 = vmatprep.subr.mxu0 0.0
    %3713 = vmatpush1.msra.mxu0 0.0
    %3714 = vmatprep.subr.mxu0 0.0
    %3715 = vmatpush1.msra.mxu0 0.0
    %3716 = vmatprep.subr.mxu0 0.0
    %3717 = vmatpush1.msra.mxu0 0.0
    %3718 = vmatprep.subr.mxu0 0.0
    %3719 = vmatpush1.msra.mxu0 0.0
    %3720 = vmatprep.subr.mxu0 0.0
    %3721 = vmatpush1.msra.mxu0 0.0
    %3722 = vmatprep.subr.mxu0 0.0
    %3723 = vmatpush1.msra.mxu0 0.0
    %3724 = vmatprep.subr.mxu0 0.0
    %3725 = vmatpush1.msra.mxu0 0.0
    %3726 = vmatprep.subr.mxu0 0.0
    %3727 = vmatpush1.msra.mxu0 0.0
    %3728 = vmatprep.subr.mxu0 0.0
    %3729 = vmatpush1.msra.mxu0 0.0
    %3730 = vmatprep.subr.mxu0 0.0
    %3731 = vmatpush1.msra.mxu0 0.0
    %3732 = vmatprep.subr.mxu0 0.0
    %3733 = vmatpush1.msra.mxu0 0.0
    %3734 = vmatprep.subr.mxu0 0.0
    %3735 = vmatpush1.msra.mxu0 0.0
    %3736 = vmatprep.mubr.f32.mxu0 0.0
    %3737 = vmatmul.mubr.f32.gmra.mrb[0].mxu0 %v3670
    %v3738 = vpop.f32.mrb[0].mxu0
    %v3739 = vadd.f32 0.0, %v3738
    %v3740 = vpop.f32.mrb[0].mxu0
    %v3741 = vadd.f32 0.0, %v3740
    %3742 = vdwg.mxu0
    %v3743 = vadd.f32 %v3666, %v3739
    %v3744 = vadd.f32 %v3667, %v3741
    %3745 = vmatprep.subr.mxu0 0.0
    %3746 = vmatpush1.msra.mxu0 1.0
    %3747 = vmatprep.subr.mxu0 0.0
    %3748 = vmatpush1.msra.mxu0 1.0
    %3749 = vmatprep.subr.mxu0 0.0
    %3750 = vmatpush1.msra.mxu0 1.0
    %3751 = vmatprep.subr.mxu0 0.0
    %3752 = vmatpush1.msra.mxu0 1.0
    %3753 = vmatprep.subr.mxu0 0.0
    %3754 = vmatpush1.msra.mxu0 1.0
    %3755 = vmatprep.subr.mxu0 0.0
    %3756 = vmatpush1.msra.mxu0 1.0
    %3757 = vmatprep.subr.mxu0 0.0
    %3758 = vmatpush1.msra.mxu0 1.0
    %3759 = vmatprep.subr.mxu0 0.0
    %3760 = vmatpush1.msra.mxu0 1.0
    %3761 = vmatprep.subr.mxu0 0.0
    %3762 = vmatpush1.msra.mxu0 1.0
    %3763 = vmatprep.subr.mxu0 0.0
    %3764 = vmatpush1.msra.mxu0 1.0
    %3765 = vmatprep.subr.mxu0 0.0
    %3766 = vmatpush1.msra.mxu0 1.0
    %3767 = vmatprep.subr.mxu0 0.0
    %3768 = vmatpush1.msra.mxu0 1.0
    %3769 = vmatprep.subr.mxu0 0.0
    %3770 = vmatpush1.msra.mxu0 1.0
    %3771 = vmatprep.subr.mxu0 0.0
    %3772 = vmatpush1.msra.mxu0 1.0
    %3773 = vmatprep.subr.mxu0 0.0
    %3774 = vmatpush1.msra.mxu0 1.0
    %3775 = vmatprep.subr.mxu0 0.0
    %3776 = vmatpush1.msra.mxu0 1.0
    %3777 = vmatprep.subr.mxu0 0.0
    %3778 = vmatpush1.msra.mxu0 1.0
    %3779 = vmatprep.subr.mxu0 0.0
    %3780 = vmatpush1.msra.mxu0 1.0
    %3781 = vmatprep.subr.mxu0 0.0
    %3782 = vmatpush1.msra.mxu0 1.0
    %3783 = vmatprep.subr.mxu0 0.0
    %3784 = vmatpush1.msra.mxu0 1.0
    %3785 = vmatprep.subr.mxu0 0.0
    %3786 = vmatpush1.msra.mxu0 1.0
    %3787 = vmatprep.subr.mxu0 0.0
    %3788 = vmatpush1.msra.mxu0 1.0
    %3789 = vmatprep.subr.mxu0 0.0
    %3790 = vmatpush1.msra.mxu0 1.0
    %3791 = vmatprep.subr.mxu0 0.0
    %3792 = vmatpush1.msra.mxu0 1.0
    %3793 = vmatprep.subr.mxu0 0.0
    %3794 = vmatpush1.msra.mxu0 1.0
    %3795 = vmatprep.subr.mxu0 0.0
    %3796 = vmatpush1.msra.mxu0 1.0
    %3797 = vmatprep.subr.mxu0 0.0
    %3798 = vmatpush1.msra.mxu0 1.0
    %3799 = vmatprep.subr.mxu0 0.0
    %3800 = vmatpush1.msra.mxu0 1.0
    %3801 = vmatprep.subr.mxu0 0.0
    %3802 = vmatpush1.msra.mxu0 1.0
    %3803 = vmatprep.subr.mxu0 0.0
    %3804 = vmatpush1.msra.mxu0 1.0
    %3805 = vmatprep.subr.mxu0 0.0
    %3806 = vmatpush1.msra.mxu0 1.0
    %3807 = vmatprep.subr.mxu0 0.0
    %3808 = vmatpush1.msra.mxu0 1.0
    %3809 = vmatprep.mubr.f32.mxu0 %v3744
    %3810 = vmatmul.mubr.f32.gmra.mrb[0].mxu0 %v3743
    %v3811 = vpop.f32.mrb[0].mxu0
    %v3812 = vadd.f32 0.0, %v3811
    %v3813 = vpop.f32.mrb[0].mxu0
    %3814 = vdwg.mxu0
    %v3815 = vmul.f32 %v3743, %v3743
    %v3816 = vmul.f32 %v3744, %v3744
    %3817 = vmatprep.subr.mxu0 0.0
    %3818 = vmatpush1.msra.mxu0 1.0
    %3819 = vmatprep.subr.mxu0 0.0
    %3820 = vmatpush1.msra.mxu0 1.0
    %3821 = vmatprep.subr.mxu0 0.0
    %3822 = vmatpush1.msra.mxu0 1.0
    %3823 = vmatprep.subr.mxu0 0.0
    %3824 = vmatpush1.msra.mxu0 1.0
    %3825 = vmatprep.subr.mxu0 0.0
    %3826 = vmatpush1.msra.mxu0 1.0
    %3827 = vmatprep.subr.mxu0 0.0
    %3828 = vmatpush1.msra.mxu0 1.0
    %3829 = vmatprep.subr.mxu0 0.0
    %3830 = vmatpush1.msra.mxu0 1.0
    %3831 = vmatprep.subr.mxu0 0.0
    %3832 = vmatpush1.msra.mxu0 1.0
    %3833 = vmatprep.subr.mxu0 0.0
    %3834 = vmatpush1.msra.mxu0 1.0
    %3835 = vmatprep.subr.mxu0 0.0
    %3836 = vmatpush1.msra.mxu0 1.0
    %3837 = vmatprep.subr.mxu0 0.0
    %3838 = vmatpush1.msra.mxu0 1.0
    %3839 = vmatprep.subr.mxu0 0.0
    %3840 = vmatpush1.msra.mxu0 1.0
    %3841 = vmatprep.subr.mxu0 0.0
    %3842 = vmatpush1.msra.mxu0 1.0
    %3843 = vmatprep.subr.mxu0 0.0
    %3844 = vmatpush1.msra.mxu0 1.0
    %3845 = vmatprep.subr.mxu0 0.0
    %3846 = vmatpush1.msra.mxu0 1.0
    %3847 = vmatprep.subr.mxu0 0.0
    %3848 = vmatpush1.msra.mxu0 1.0
    %3849 = vmatprep.subr.mxu0 0.0
    %3850 = vmatpush1.msra.mxu0 1.0
    %3851 = vmatprep.subr.mxu0 0.0
    %3852 = vmatpush1.msra.mxu0 1.0
    %3853 = vmatprep.subr.mxu0 0.0
    %3854 = vmatpush1.msra.mxu0 1.0
    %3855 = vmatprep.subr.mxu0 0.0
    %3856 = vmatpush1.msra.mxu0 1.0
    %3857 = vmatprep.subr.mxu0 0.0
    %3858 = vmatpush1.msra.mxu0 1.0
    %3859 = vmatprep.subr.mxu0 0.0
    %3860 = vmatpush1.msra.mxu0 1.0
    %3861 = vmatprep.subr.mxu0 0.0
    %3862 = vmatpush1.msra.mxu0 1.0
    %3863 = vmatprep.subr.mxu0 0.0
    %3864 = vmatpush1.msra.mxu0 1.0
    %3865 = vmatprep.subr.mxu0 0.0
    %3866 = vmatpush1.msra.mxu0 1.0
    %3867 = vmatprep.subr.mxu0 0.0
    %3868 = vmatpush1.msra.mxu0 1.0
    %3869 = vmatprep.subr.mxu0 0.0
    %3870 = vmatpush1.msra.mxu0 1.0
    %3871 = vmatprep.subr.mxu0 0.0
    %3872 = vmatpush1.msra.mxu0 1.0
    %3873 = vmatprep.subr.mxu0 0.0
    %3874 = vmatpush1.msra.mxu0 1.0
    %3875 = vmatprep.subr.mxu0 0.0
    %3876 = vmatpush1.msra.mxu0 1.0
    %3877 = vmatprep.subr.mxu0 0.0
    %3878 = vmatpush1.msra.mxu0 1.0
    %3879 = vmatprep.subr.mxu0 0.0
    %3880 = vmatpush1.msra.mxu0 1.0
    %3881 = vmatprep.mubr.f32.mxu0 %v3816
    %3882 = vmatmul.mubr.f32.gmra.mrb[0].mxu0 %v3815
    %v3883 = vpop.f32.mrb[0].mxu0
    %v3884 = vadd.f32 0.0, %v3883
    %v3885 = vpop.f32.mrb[0].mxu0
    %3886 = vdwg.mxu0
    %v3887 = vmul.f32 %v3812, 0.00390625
    %v3888 = vmul.f32 %v3884, 0.00390625
    %v3889 = vmul.f32 %v3887, %v3887
    %v3890 = vsub.f32 %v3888, %v3889
    %3892 = vset.pattern.permute.xlu0 0
    %3893 = vperm.xlu0 %3892, %v3887
    %v3894 = vpop.permute.xlu0 %3893
    %v3896 = vsub.f32 %v3743, %v3894
    %v3897 = vsub.f32 %v3744, %v3894
    %v3898 = vadd.f32 %v3890, 1e-05
    %v3899 = vrsqrt.pop %v3898
    %3901 = vset.pattern.permute.xlu0 0
    %3902 = vperm.xlu0 %3901, %v3899
    %v3903 = vpop.permute.xlu0 %3902
    %v3905 = vmul.f32 %v3896, %v3903
    %v3906 = vmul.f32 %v3897, %v3903
    %v3907 = vadd.f32 %v2013, %v3905
    %v3908 = vadd.f32 %v2014, %v3906
    %s3909 = scalar_lea.vmem [#allocation2], 16
    %3910 = vst [vmem:[%s3909] sm:$0xff] %v3907
    %3911 = vst [vmem:[%s3909 + $0x8] sm:$0xff] %v3908
    // Predicated region
    $region18: #{tpu_custom_call.1} parent=1 // pred_check
      _
    $region19: #{tpu_custom_call.1} parent=1 // pred_check_branch
      %3913 = sbr.rel (0) target = $region21
    $region20: #{tpu_custom_call.1} parent=1 // pred_region
      %s3915 = ssub.s32 512, 512
      %3916 = vsyncadd [#allocation3], %s3915
      %s3917 = sshll.u32 [#allocation2], 4
      %s3918 = int_to_ptr.vmem [resolvable:$true] %s3917
      %3923 = dma.vmem_to_hbm [thread:$0]  %s3918, 512, %s4, [#allocation3], 256, 256, 16
    $region21: #{tpu_custom_call.1} parent=1 // pred_fallthru
      _
    // Predicated region
    $region22: #{tpu_custom_call.1} parent=1 // pred_check
      _
    $region23: #{tpu_custom_call.1} parent=1 // pred_check_branch
      %3925 = sbr.rel (0) target = $region25
    $region24: #{tpu_custom_call.1} parent=1 // pred_region
      %3926 = dma.done [#allocation3], 512
    $region25: #{tpu_custom_call.1} parent=1 // pred_fallthru
      _
    %3927 = vsyncpa [#allocation3], 1

</llo_original>
